<compile_context>
chip_gen: v6e
topology: v6e:2x2x1
jax: 0.10.0
libtpu: 0.0.40
codegen_flags: <defaults>
</compile_context>

<pallas_src>
import functools
import math

import jax
import jax.numpy as jnp
from jax import lax
from jax.experimental import pallas as pl
from jax.experimental.pallas import tpu as pltpu


# --------------------------------------------------------------------------- kernel

def _linker_kernel(inp_ref, kpm_ref, mask_ref, wp_ref, bp_ref,
                   wqkv_ref, wo_ref, w1_ref, w2_ref, small_ref,
                   corr_ref, *, n_layers, n_heads, d, hd, fc, scale, eps, corr_eps):
    """Whole Linker forward for ONE batch element.

    Rows [0:S] of the input block are the x-stream, rows [S:2S] the y-stream; they share
    all encoder weights so all batch-independent math runs on the (2S, D) slab at once.
    """
    x_in = inp_ref[0]                       # (2S, in_feat)
    kbias = kpm_ref[0]                      # (1, S) additive key-padding bias (0 / -1e9)
    two_s = x_in.shape[0]
    s = two_s // 2

    # ---- shared input projector (both streams at once) ----
    h = jnp.dot(x_in, wp_ref[...], preferred_element_type=jnp.float32) + bp_ref[...]

    for l in range(n_layers):
        sm = small_ref[l]                   # (8, P) packed small params
        bqkv = sm[0:1, :3 * d]
        bo   = sm[1:2, :d]
        b1   = sm[2:3, :fc]
        b2   = sm[3:4, :d]
        g1   = sm[4:5, :d]
        be1  = sm[5:6, :d]
        g2   = sm[6:7, :d]
        be2  = sm[7:8, :d]

        # ---- fused QKV projection: one lane-dense (2S, D) @ (D, 3D) matmul ----
        qkv = jnp.dot(h, wqkv_ref[l], preferred_element_type=jnp.float32) + bqkv
        qkv = qkv.reshape(2, s, 3 * d)      # (stream, S, 3D)

        # ---- self attention: per-head scores, batched over the 2 streams ----
        heads = []
        for hh in range(n_heads):
            q_h = qkv[:, :, hh * hd:(hh + 1) * hd] * scale
            k_h = qkv[:, :, d + hh * hd: d + (hh + 1) * hd]
            v_h = qkv[:, :, 2 * d + hh * hd: 2 * d + (hh + 1) * hd]
            sc = lax.dot_general(q_h, k_h, (((2,), (2,)), ((0,), (0,))),
                                 preferred_element_type=jnp.float32)       # (2, S, S)
            sc = sc + kbias[None]
            m = jnp.max(sc, axis=-1, keepdims=True)
            e = jnp.exp(sc - m)
            denom = jnp.sum(e, axis=-1, keepdims=True)
            o_h = lax.dot_general(e, v_h, (((2,), (1,)), ((0,), (0,))),
                                  preferred_element_type=jnp.float32)      # (2, S, hd)
            # deferred softmax normalization: EUP reciprocal of an (S,1) scale
            heads.append(o_h * pl.reciprocal(denom, approx=True))

        o_cat = jnp.concatenate(heads, axis=-1).reshape(two_s, d)          # (2S, D)
        attn = jnp.dot(o_cat, wo_ref[l], preferred_element_type=jnp.float32) + bo

        # ---- residual + LayerNorm 1 ----
        h1 = h + attn
        mu = jnp.mean(h1, axis=-1, keepdims=True)
        var = jnp.mean((h1 - mu) ** 2, axis=-1, keepdims=True)
        h1 = (h1 - mu) * lax.rsqrt(var + eps) * g1 + be1

        # ---- feed-forward (relu) ----
        f = jnp.maximum(
            jnp.dot(h1, w1_ref[l], preferred_element_type=jnp.float32) + b1, 0.0)
        f = jnp.dot(f, w2_ref[l], preferred_element_type=jnp.float32) + b2

        # ---- residual + LayerNorm 2 ----
        h2 = h1 + f
        mu2 = jnp.mean(h2, axis=-1, keepdims=True)
        var2 = jnp.mean((h2 - mu2) ** 2, axis=-1, keepdims=True)
        h = (h2 - mu2) * lax.rsqrt(var2 + eps) * g2 + be2

    # ---- masked cosine-similarity correlation matrix ----
    mask = mask_ref[0]                      # (S, 1) float 1/0 padding mask
    hx = h[:s] * mask                       # (S, D)
    hy = h[s:] * mask
    nx = jnp.sqrt(jnp.sum(hx * hx, axis=-1, keepdims=True))                # (S, 1)
    ny = jnp.sqrt(jnp.sum(hy * hy, axis=-1, keepdims=True))                # (S, 1)
    num = lax.dot_general(hx, hy, (((1,), (1,)), ((), ())),
                          preferred_element_type=jnp.float32)              # (S, S)
    nprod = lax.dot_general(nx, ny, (((1,), (1,)), ((), ())),
                            preferred_element_type=jnp.float32)            # outer product
    corr_ref[0] = num / jnp.maximum(nprod, corr_eps)


# --------------------------------------------------------------------------- wrapper

def linker_forward(params, pdg_x, feature_x, pdg_y, feature_y, padding_mask, *, cfg):
    bsz, s = pdg_x.shape
    d = cfg["link_width"]
    nh = cfg["link_n_head"]
    hd = d // nh
    fc = cfg["link_fc"]
    n_layers = cfg["link_n_layers"]

    # embedding gather + concat (JAX glue); x/y streams share all weights, so they are
    # stacked along the row axis of each batch element: rows [0:S]=x, [S:2S]=y.
    ex = jnp.concatenate([params["pdg_table"][pdg_x], feature_x], axis=-1)
    ey = jnp.concatenate([params["pdg_table"][pdg_y], feature_y], axis=-1)
    inp = jnp.concatenate([ex, ey], axis=1)                                  # (B, 2S, in_feat)
    in_feat = inp.shape[-1]

    # src_key_padding_mask = ~padding_mask (True in padding_mask == valid token)
    kpm = jnp.where(padding_mask, 0.0, -1e9).astype(jnp.float32)[:, None, :]  # (B,1,S)
    mask_f = padding_mask.astype(jnp.float32)[..., None]                      # (B,S,1)

    P = params["small"].shape[-1]

    kernel = functools.partial(
        _linker_kernel, n_layers=n_layers, n_heads=nh, d=d, hd=hd, fc=fc,
        scale=1.0 / math.sqrt(hd), eps=1e-5, corr_eps=1e-6)

    return pl.pallas_call(
        kernel,
        out_shape=jax.ShapeDtypeStruct((bsz, s, s), jnp.float32),
        grid=(bsz,),
        in_specs=[
            pl.BlockSpec((1, 2 * s, in_feat), lambda b: (b, 0, 0)),   # stacked x/y input
            pl.BlockSpec((1, 1, s), lambda b: (b, 0, 0)),             # key-padding bias
            pl.BlockSpec((1, s, 1), lambda b: (b, 0, 0)),             # corr mask
            pl.BlockSpec((in_feat, d), lambda b: (0, 0)),             # projector W
            pl.BlockSpec((1, d), lambda b: (0, 0)),                   # projector b
            pl.BlockSpec((n_layers, d, 3 * d), lambda b: (0, 0, 0)),  # fused Wqkv (all layers)
            pl.BlockSpec((n_layers, d, d), lambda b: (0, 0, 0)),      # Wo
            pl.BlockSpec((n_layers, d, fc), lambda b: (0, 0, 0)),     # FFN W1
            pl.BlockSpec((n_layers, fc, d), lambda b: (0, 0, 0)),     # FFN W2
            pl.BlockSpec((n_layers, 8, P), lambda b: (0, 0, 0)),      # packed small params
        ],
        out_specs=pl.BlockSpec((1, s, s), lambda b: (b, 0, 0)),
        compiler_params=pltpu.CompilerParams(
            dimension_semantics=("parallel",),
            vmem_limit_bytes=32 * 1024 * 1024),
    )(inp, kpm, mask_f, params["proj_w"], params["proj_b"],
      params["wqkv"], params["wo"], params["w1"], params["w2"], params["small"])


# --------------------------------------------------------------------------- params

def init_params(cfg, seed=42):
    base = jax.random.PRNGKey(seed)
    counter = [0]

    def nk():
        counter[0] += 1
        return jax.random.fold_in(base, counter[0])

    d = cfg["link_width"]
    fc = cfg["link_fc"]
    in_feat = cfg["n_features"] + cfg["pdg_emb"]
    P = max(3 * d, fc, d)

    def unif(shape, fan_in):
        lim = 1.0 / math.sqrt(fan_in)
        return jax.random.uniform(nk(), shape, jnp.float32, -lim, lim)

    def pad_row(v):
        return jnp.pad(v, (0, P - v.shape[0]))

    wqkv, wo, w1, w2, small = [], [], [], [], []
    for _ in range(cfg["link_n_layers"]):
        wqkv.append(unif((d, 3 * d), d))
        wo.append(unif((d, d), d))
        w1.append(unif((d, fc), d))
        w2.append(unif((fc, d), fc))
        rows = [
            unif((3 * d,), d),              # bqkv
            unif((d,), d),                  # bo
            unif((fc,), d),                 # b1
            unif((d,), fc),                 # b2
            jnp.ones((d,), jnp.float32),    # ln1 gamma
            jnp.zeros((d,), jnp.float32),   # ln1 beta
            jnp.ones((d,), jnp.float32),    # ln2 gamma
            jnp.zeros((d,), jnp.float32),   # ln2 beta
        ]
        small.append(jnp.stack([pad_row(r) for r in rows]))

    return {
        "pdg_table": 0.1 * jax.random.normal(
            nk(), (cfg["num_pdg"] + 1, cfg["pdg_emb"]), jnp.float32),
        "proj_w": unif((in_feat, d), in_feat),
        "proj_b": unif((1, d), in_feat),
        "wqkv": jnp.stack(wqkv),
        "wo": jnp.stack(wo),
        "w1": jnp.stack(w1),
        "w2": jnp.stack(w2),
        "small": jnp.stack(small),
    }


# --------------------------------------------------------------------------- main

if __name__ == "__main__":
    B, S = 2, 8
    cfg = dict(
        n_features=4, link_width=64, link_n_head=4, link_n_layers=2,
        link_fc=128, pdg_emb=8, num_pdg=32,
    )

    params = init_params(cfg)

    key = jax.random.PRNGKey(0)
    k1, k2, k3, k4 = jax.random.split(key, 4)
    pdg_x = jax.random.randint(k1, (B, S), 0, cfg["num_pdg"] + 1)
    pdg_y = jax.random.randint(k2, (B, S), 0, cfg["num_pdg"] + 1)
    feature_x = jax.random.normal(k3, (B, S, cfg["n_features"]), jnp.float32)
    feature_y = jax.random.normal(k4, (B, S, cfg["n_features"]), jnp.float32)
    padding_mask = jnp.array(
        [[True] * S, [True] * (S - 3) + [False] * 3], dtype=jnp.bool_
    )

    fwd = jax.jit(functools.partial(linker_forward, cfg=cfg))
    corr = fwd(params, pdg_x, feature_x, pdg_y, feature_y, padding_mask)
    jax.block_until_ready(corr)

    assert corr.shape == (B, S, S), corr.shape
    assert bool(jnp.all(jnp.isfinite(corr)))
    assert bool(jnp.all(jnp.abs(corr) <= 1.0 + 1e-4))
    print("KERNEL_OK")
</pallas_src>

<mosaic_0001>
module attributes {stable_mosaic.version = 11 : i64} {
  func.func @_linker_kernel(%arg0: i32, %arg1: memref<1x16x12xf32, #tpu.memory_space<vmem>>, %arg2: memref<1x1x8xf32, #tpu.memory_space<vmem>>, %arg3: memref<1x8x1xf32, #tpu.memory_space<vmem>>, %arg4: memref<12x64xf32, #tpu.memory_space<vmem>>, %arg5: memref<1x64xf32, #tpu.memory_space<vmem>>, %arg6: memref<2x64x192xf32, #tpu.memory_space<vmem>>, %arg7: memref<2x64x64xf32, #tpu.memory_space<vmem>>, %arg8: memref<2x64x128xf32, #tpu.memory_space<vmem>>, %arg9: memref<2x128x64xf32, #tpu.memory_space<vmem>>, %arg10: memref<2x8x192xf32, #tpu.memory_space<vmem>>, %arg11: memref<1x8x8xf32, #tpu.memory_space<vmem>>) attributes {dimension_semantics = [#tpu.dimension_semantics<parallel>], iteration_bounds = array<i64: 2>, scalar_prefetch = 0 : i64, scratch_operands = 0 : i64, tpu.core_type = #tpu.core_type<tc>, window_params = [{transform_indices = @transform_0, window_bounds = array<i64: 1, 16, 12>}, {transform_indices = @transform_1, window_bounds = array<i64: 1, 1, 8>}, {transform_indices = @transform_2, window_bounds = array<i64: 1, 8, 1>}, {pipeline_mode = #tpu.pipeline_mode<synchronous>, transform_indices = @transform_3, window_bounds = array<i64: 12, 64>}, {pipeline_mode = #tpu.pipeline_mode<synchronous>, transform_indices = @transform_4, window_bounds = array<i64: 1, 64>}, {pipeline_mode = #tpu.pipeline_mode<synchronous>, transform_indices = @transform_5, window_bounds = array<i64: 2, 64, 192>}, {pipeline_mode = #tpu.pipeline_mode<synchronous>, transform_indices = @transform_6, window_bounds = array<i64: 2, 64, 64>}, {pipeline_mode = #tpu.pipeline_mode<synchronous>, transform_indices = @transform_7, window_bounds = array<i64: 2, 64, 128>}, {pipeline_mode = #tpu.pipeline_mode<synchronous>, transform_indices = @transform_8, window_bounds = array<i64: 2, 128, 64>}, {pipeline_mode = #tpu.pipeline_mode<synchronous>, transform_indices = @transform_9, window_bounds = array<i64: 2, 8, 192>}, {transform_indices = @transform_10, window_bounds = array<i64: 1, 8, 8>}]} {
    %c0 = arith.constant 0 : index
    %c0_0 = arith.constant 0 : index
    %c0_1 = arith.constant 0 : index
    %0 = vector.load %arg1[%c0, %c0_0, %c0_1] : memref<1x16x12xf32, #tpu.memory_space<vmem>>, vector<1x16x12xf32>
    %1 = vector.shape_cast %0 : vector<1x16x12xf32> to vector<16x12xf32>
    %c0_2 = arith.constant 0 : index
    %c0_3 = arith.constant 0 : index
    %c0_4 = arith.constant 0 : index
    %2 = vector.load %arg2[%c0_2, %c0_3, %c0_4] : memref<1x1x8xf32, #tpu.memory_space<vmem>>, vector<1x1x8xf32>
    %3 = vector.shape_cast %2 : vector<1x1x8xf32> to vector<1x8xf32>
    %c0_5 = arith.constant 0 : index
    %c0_6 = arith.constant 0 : index
    %4 = vector.load %arg4[%c0_5, %c0_6] : memref<12x64xf32, #tpu.memory_space<vmem>>, vector<12x64xf32>
    %cst = arith.constant dense<0.000000e+00> : vector<16x64xf32>
    %5 = tpu.matmul %1, %4, %cst {dimension_numbers = #tpu.dot_dimension_numbers<[1], [0], [0], [1], [0, 0, 1, 1], [], []>} : vector<16x12xf32>, vector<12x64xf32>, vector<16x64xf32> -> vector<16x64xf32>
    %c0_7 = arith.constant 0 : index
    %c0_8 = arith.constant 0 : index
    %6 = vector.load %arg5[%c0_7, %c0_8] : memref<1x64xf32, #tpu.memory_space<vmem>>, vector<1x64xf32>
    %7 = vector.broadcast %6 : vector<1x64xf32> to vector<16x64xf32>
    %8 = arith.addf %5, %7 : vector<16x64xf32>
    %c0_9 = arith.constant 0 : index
    %c0_10 = arith.constant 0 : index
    %c0_11 = arith.constant 0 : index
    %9 = vector.load %arg10[%c0_9, %c0_10, %c0_11] : memref<2x8x192xf32, #tpu.memory_space<vmem>>, vector<1x8x192xf32>
    %10 = vector.shape_cast %9 : vector<1x8x192xf32> to vector<8x192xf32>
    %11 = vector.extract_strided_slice %10 {offsets = [0, 0], sizes = [1, 192], strides = [1, 1]} : vector<8x192xf32> to vector<1x192xf32>
    %12 = vector.extract_strided_slice %10 {offsets = [1, 0], sizes = [1, 64], strides = [1, 1]} : vector<8x192xf32> to vector<1x64xf32>
    %13 = vector.extract_strided_slice %10 {offsets = [2, 0], sizes = [1, 128], strides = [1, 1]} : vector<8x192xf32> to vector<1x128xf32>
    %14 = vector.extract_strided_slice %10 {offsets = [3, 0], sizes = [1, 64], strides = [1, 1]} : vector<8x192xf32> to vector<1x64xf32>
    %15 = vector.extract_strided_slice %10 {offsets = [4, 0], sizes = [1, 64], strides = [1, 1]} : vector<8x192xf32> to vector<1x64xf32>
    %16 = vector.extract_strided_slice %10 {offsets = [5, 0], sizes = [1, 64], strides = [1, 1]} : vector<8x192xf32> to vector<1x64xf32>
    %17 = vector.extract_strided_slice %10 {offsets = [6, 0], sizes = [1, 64], strides = [1, 1]} : vector<8x192xf32> to vector<1x64xf32>
    %18 = vector.extract_strided_slice %10 {offsets = [7, 0], sizes = [1, 64], strides = [1, 1]} : vector<8x192xf32> to vector<1x64xf32>
    %c0_12 = arith.constant 0 : index
    %c0_13 = arith.constant 0 : index
    %c0_14 = arith.constant 0 : index
    %19 = vector.load %arg6[%c0_12, %c0_13, %c0_14] : memref<2x64x192xf32, #tpu.memory_space<vmem>>, vector<1x64x192xf32>
    %20 = vector.shape_cast %19 : vector<1x64x192xf32> to vector<64x192xf32>
    %cst_15 = arith.constant dense<0.000000e+00> : vector<16x192xf32>
    %21 = tpu.matmul %8, %20, %cst_15 {dimension_numbers = #tpu.dot_dimension_numbers<[1], [0], [0], [1], [0, 0, 1, 1], [], []>} : vector<16x64xf32>, vector<64x192xf32>, vector<16x192xf32> -> vector<16x192xf32>
    %22 = vector.broadcast %11 : vector<1x192xf32> to vector<16x192xf32>
    %23 = arith.addf %21, %22 : vector<16x192xf32>
    %24 = vector.shape_cast %23 : vector<16x192xf32> to vector<2x8x192xf32>
    %25 = vector.extract_strided_slice %24 {offsets = [0, 0, 0], sizes = [2, 8, 16], strides = [1, 1, 1]} : vector<2x8x192xf32> to vector<2x8x16xf32>
    %cst_16 = arith.constant 2.500000e-01 : f32
    %26 = vector.broadcast %cst_16 : f32 to vector<2x8x16xf32>
    %27 = arith.mulf %25, %26 : vector<2x8x16xf32>
    %28 = vector.extract_strided_slice %24 {offsets = [0, 0, 64], sizes = [2, 8, 16], strides = [1, 1, 1]} : vector<2x8x192xf32> to vector<2x8x16xf32>
    %29 = vector.extract_strided_slice %24 {offsets = [0, 0, 128], sizes = [2, 8, 16], strides = [1, 1, 1]} : vector<2x8x192xf32> to vector<2x8x16xf32>
    %cst_17 = arith.constant dense<0.000000e+00> : vector<2x8x8xf32>
    %30 = tpu.matmul %27, %28, %cst_17 {dimension_numbers = #tpu.dot_dimension_numbers<[2], [2], [1], [1], [0, 0, 0, 1, 1, 1], [0], [0]>} : vector<2x8x16xf32>, vector<2x8x16xf32>, vector<2x8x8xf32> -> vector<2x8x8xf32>
    %31 = vector.shape_cast %3 : vector<1x8xf32> to vector<1x1x8xf32>
    %32 = vector.broadcast %31 : vector<1x1x8xf32> to vector<2x8x8xf32>
    %33 = arith.addf %30, %32 : vector<2x8x8xf32>
    %cst_18 = arith.constant dense<0xFF800000> : vector<2x8xf32>
    %34 = vector.multi_reduction <maximumf>, %33, %cst_18 [2] : vector<2x8x8xf32> to vector<2x8xf32>
    %35 = vector.shape_cast %34 : vector<2x8xf32> to vector<2x8x1xf32>
    %36 = vector.broadcast %35 : vector<2x8x1xf32> to vector<2x8x8xf32>
    %37 = arith.subf %33, %36 : vector<2x8x8xf32>
    %38 = math.exp %37 : vector<2x8x8xf32>
    %cst_19 = arith.constant dense<0.000000e+00> : vector<2x8xf32>
    %39 = vector.multi_reduction <add>, %38, %cst_19 [2] : vector<2x8x8xf32> to vector<2x8xf32>
    %40 = vector.shape_cast %39 : vector<2x8xf32> to vector<2x8x1xf32>
    %cst_20 = arith.constant dense<0.000000e+00> : vector<2x8x16xf32>
    %41 = tpu.matmul %38, %29, %cst_20 {dimension_numbers = #tpu.dot_dimension_numbers<[2], [1], [1], [2], [0, 0, 0, 1, 1, 2], [0], [0]>} : vector<2x8x8xf32>, vector<2x8x16xf32>, vector<2x8x16xf32> -> vector<2x8x16xf32>
    %42 = tpu.reciprocal %40 {approx = true} : vector<2x8x1xf32> -> vector<2x8x1xf32>
    %43 = vector.broadcast %42 : vector<2x8x1xf32> to vector<2x8x16xf32>
    %44 = arith.mulf %41, %43 : vector<2x8x16xf32>
    %45 = vector.extract_strided_slice %24 {offsets = [0, 0, 16], sizes = [2, 8, 16], strides = [1, 1, 1]} : vector<2x8x192xf32> to vector<2x8x16xf32>
    %cst_21 = arith.constant 2.500000e-01 : f32
    %46 = vector.broadcast %cst_21 : f32 to vector<2x8x16xf32>
    %47 = arith.mulf %45, %46 : vector<2x8x16xf32>
    %48 = vector.extract_strided_slice %24 {offsets = [0, 0, 80], sizes = [2, 8, 16], strides = [1, 1, 1]} : vector<2x8x192xf32> to vector<2x8x16xf32>
    %49 = vector.extract_strided_slice %24 {offsets = [0, 0, 144], sizes = [2, 8, 16], strides = [1, 1, 1]} : vector<2x8x192xf32> to vector<2x8x16xf32>
    %cst_22 = arith.constant dense<0.000000e+00> : vector<2x8x8xf32>
    %50 = tpu.matmul %47, %48, %cst_22 {dimension_numbers = #tpu.dot_dimension_numbers<[2], [2], [1], [1], [0, 0, 0, 1, 1, 1], [0], [0]>} : vector<2x8x16xf32>, vector<2x8x16xf32>, vector<2x8x8xf32> -> vector<2x8x8xf32>
    %51 = vector.shape_cast %3 : vector<1x8xf32> to vector<1x1x8xf32>
    %52 = vector.broadcast %51 : vector<1x1x8xf32> to vector<2x8x8xf32>
    %53 = arith.addf %50, %52 : vector<2x8x8xf32>
    %cst_23 = arith.constant dense<0xFF800000> : vector<2x8xf32>
    %54 = vector.multi_reduction <maximumf>, %53, %cst_23 [2] : vector<2x8x8xf32> to vector<2x8xf32>
    %55 = vector.shape_cast %54 : vector<2x8xf32> to vector<2x8x1xf32>
    %56 = vector.broadcast %55 : vector<2x8x1xf32> to vector<2x8x8xf32>
    %57 = arith.subf %53, %56 : vector<2x8x8xf32>
    %58 = math.exp %57 : vector<2x8x8xf32>
    %cst_24 = arith.constant dense<0.000000e+00> : vector<2x8xf32>
    %59 = vector.multi_reduction <add>, %58, %cst_24 [2] : vector<2x8x8xf32> to vector<2x8xf32>
    %60 = vector.shape_cast %59 : vector<2x8xf32> to vector<2x8x1xf32>
    %cst_25 = arith.constant dense<0.000000e+00> : vector<2x8x16xf32>
    %61 = tpu.matmul %58, %49, %cst_25 {dimension_numbers = #tpu.dot_dimension_numbers<[2], [1], [1], [2], [0, 0, 0, 1, 1, 2], [0], [0]>} : vector<2x8x8xf32>, vector<2x8x16xf32>, vector<2x8x16xf32> -> vector<2x8x16xf32>
    %62 = tpu.reciprocal %60 {approx = true} : vector<2x8x1xf32> -> vector<2x8x1xf32>
    %63 = vector.broadcast %62 : vector<2x8x1xf32> to vector<2x8x16xf32>
    %64 = arith.mulf %61, %63 : vector<2x8x16xf32>
    %65 = vector.extract_strided_slice %24 {offsets = [0, 0, 32], sizes = [2, 8, 16], strides = [1, 1, 1]} : vector<2x8x192xf32> to vector<2x8x16xf32>
    %cst_26 = arith.constant 2.500000e-01 : f32
    %66 = vector.broadcast %cst_26 : f32 to vector<2x8x16xf32>
    %67 = arith.mulf %65, %66 : vector<2x8x16xf32>
    %68 = vector.extract_strided_slice %24 {offsets = [0, 0, 96], sizes = [2, 8, 16], strides = [1, 1, 1]} : vector<2x8x192xf32> to vector<2x8x16xf32>
    %69 = vector.extract_strided_slice %24 {offsets = [0, 0, 160], sizes = [2, 8, 16], strides = [1, 1, 1]} : vector<2x8x192xf32> to vector<2x8x16xf32>
    %cst_27 = arith.constant dense<0.000000e+00> : vector<2x8x8xf32>
    %70 = tpu.matmul %67, %68, %cst_27 {dimension_numbers = #tpu.dot_dimension_numbers<[2], [2], [1], [1], [0, 0, 0, 1, 1, 1], [0], [0]>} : vector<2x8x16xf32>, vector<2x8x16xf32>, vector<2x8x8xf32> -> vector<2x8x8xf32>
    %71 = vector.shape_cast %3 : vector<1x8xf32> to vector<1x1x8xf32>
    %72 = vector.broadcast %71 : vector<1x1x8xf32> to vector<2x8x8xf32>
    %73 = arith.addf %70, %72 : vector<2x8x8xf32>
    %cst_28 = arith.constant dense<0xFF800000> : vector<2x8xf32>
    %74 = vector.multi_reduction <maximumf>, %73, %cst_28 [2] : vector<2x8x8xf32> to vector<2x8xf32>
    %75 = vector.shape_cast %74 : vector<2x8xf32> to vector<2x8x1xf32>
    %76 = vector.broadcast %75 : vector<2x8x1xf32> to vector<2x8x8xf32>
    %77 = arith.subf %73, %76 : vector<2x8x8xf32>
    %78 = math.exp %77 : vector<2x8x8xf32>
    %cst_29 = arith.constant dense<0.000000e+00> : vector<2x8xf32>
    %79 = vector.multi_reduction <add>, %78, %cst_29 [2] : vector<2x8x8xf32> to vector<2x8xf32>
    %80 = vector.shape_cast %79 : vector<2x8xf32> to vector<2x8x1xf32>
    %cst_30 = arith.constant dense<0.000000e+00> : vector<2x8x16xf32>
    %81 = tpu.matmul %78, %69, %cst_30 {dimension_numbers = #tpu.dot_dimension_numbers<[2], [1], [1], [2], [0, 0, 0, 1, 1, 2], [0], [0]>} : vector<2x8x8xf32>, vector<2x8x16xf32>, vector<2x8x16xf32> -> vector<2x8x16xf32>
    %82 = tpu.reciprocal %80 {approx = true} : vector<2x8x1xf32> -> vector<2x8x1xf32>
    %83 = vector.broadcast %82 : vector<2x8x1xf32> to vector<2x8x16xf32>
    %84 = arith.mulf %81, %83 : vector<2x8x16xf32>
    %85 = vector.extract_strided_slice %24 {offsets = [0, 0, 48], sizes = [2, 8, 16], strides = [1, 1, 1]} : vector<2x8x192xf32> to vector<2x8x16xf32>
    %cst_31 = arith.constant 2.500000e-01 : f32
    %86 = vector.broadcast %cst_31 : f32 to vector<2x8x16xf32>
    %87 = arith.mulf %85, %86 : vector<2x8x16xf32>
    %88 = vector.extract_strided_slice %24 {offsets = [0, 0, 112], sizes = [2, 8, 16], strides = [1, 1, 1]} : vector<2x8x192xf32> to vector<2x8x16xf32>
    %89 = vector.extract_strided_slice %24 {offsets = [0, 0, 176], sizes = [2, 8, 16], strides = [1, 1, 1]} : vector<2x8x192xf32> to vector<2x8x16xf32>
    %cst_32 = arith.constant dense<0.000000e+00> : vector<2x8x8xf32>
    %90 = tpu.matmul %87, %88, %cst_32 {dimension_numbers = #tpu.dot_dimension_numbers<[2], [2], [1], [1], [0, 0, 0, 1, 1, 1], [0], [0]>} : vector<2x8x16xf32>, vector<2x8x16xf32>, vector<2x8x8xf32> -> vector<2x8x8xf32>
    %91 = vector.shape_cast %3 : vector<1x8xf32> to vector<1x1x8xf32>
    %92 = vector.broadcast %91 : vector<1x1x8xf32> to vector<2x8x8xf32>
    %93 = arith.addf %90, %92 : vector<2x8x8xf32>
    %cst_33 = arith.constant dense<0xFF800000> : vector<2x8xf32>
    %94 = vector.multi_reduction <maximumf>, %93, %cst_33 [2] : vector<2x8x8xf32> to vector<2x8xf32>
    %95 = vector.shape_cast %94 : vector<2x8xf32> to vector<2x8x1xf32>
    %96 = vector.broadcast %95 : vector<2x8x1xf32> to vector<2x8x8xf32>
    %97 = arith.subf %93, %96 : vector<2x8x8xf32>
    %98 = math.exp %97 : vector<2x8x8xf32>
    %cst_34 = arith.constant dense<0.000000e+00> : vector<2x8xf32>
    %99 = vector.multi_reduction <add>, %98, %cst_34 [2] : vector<2x8x8xf32> to vector<2x8xf32>
    %100 = vector.shape_cast %99 : vector<2x8xf32> to vector<2x8x1xf32>
    %cst_35 = arith.constant dense<0.000000e+00> : vector<2x8x16xf32>
    %101 = tpu.matmul %98, %89, %cst_35 {dimension_numbers = #tpu.dot_dimension_numbers<[2], [1], [1], [2], [0, 0, 0, 1, 1, 2], [0], [0]>} : vector<2x8x8xf32>, vector<2x8x16xf32>, vector<2x8x16xf32> -> vector<2x8x16xf32>
    %102 = tpu.reciprocal %100 {approx = true} : vector<2x8x1xf32> -> vector<2x8x1xf32>
    %103 = vector.broadcast %102 : vector<2x8x1xf32> to vector<2x8x16xf32>
    %104 = arith.mulf %101, %103 : vector<2x8x16xf32>
    %105 = tpu.concatenate %44, %64, %84, %104 in 2 : vector<2x8x16xf32>, vector<2x8x16xf32>, vector<2x8x16xf32>, vector<2x8x16xf32> -> vector<2x8x64xf32>
    %106 = vector.shape_cast %105 : vector<2x8x64xf32> to vector<16x64xf32>
    %c0_36 = arith.constant 0 : index
    %c0_37 = arith.constant 0 : index
    %c0_38 = arith.constant 0 : index
    %107 = vector.load %arg7[%c0_36, %c0_37, %c0_38] : memref<2x64x64xf32, #tpu.memory_space<vmem>>, vector<1x64x64xf32>
    %108 = vector.shape_cast %107 : vector<1x64x64xf32> to vector<64x64xf32>
    %cst_39 = arith.constant dense<0.000000e+00> : vector<16x64xf32>
    %109 = tpu.matmul %106, %108, %cst_39 {dimension_numbers = #tpu.dot_dimension_numbers<[1], [0], [0], [1], [0, 0, 1, 1], [], []>} : vector<16x64xf32>, vector<64x64xf32>, vector<16x64xf32> -> vector<16x64xf32>
    %110 = vector.broadcast %12 : vector<1x64xf32> to vector<16x64xf32>
    %111 = arith.addf %109, %110 : vector<16x64xf32>
    %112 = arith.addf %8, %111 : vector<16x64xf32>
    %cst_40 = arith.constant dense<0.000000e+00> : vector<16xf32>
    %113 = vector.multi_reduction <add>, %112, %cst_40 [1] : vector<16x64xf32> to vector<16xf32>
    %114 = vector.shape_cast %113 : vector<16xf32> to vector<16x1xf32>
    %cst_41 = arith.constant 6.400000e+01 : f32
    %115 = vector.broadcast %cst_41 : f32 to vector<16x1xf32>
    %116 = arith.divf %114, %115 : vector<16x1xf32>
    %117 = vector.broadcast %116 : vector<16x1xf32> to vector<16x64xf32>
    %118 = arith.subf %112, %117 : vector<16x64xf32>
    %119 = arith.mulf %118, %118 : vector<16x64xf32>
    %cst_42 = arith.constant dense<0.000000e+00> : vector<16xf32>
    %120 = vector.multi_reduction <add>, %119, %cst_42 [1] : vector<16x64xf32> to vector<16xf32>
    %121 = vector.shape_cast %120 : vector<16xf32> to vector<16x1xf32>
    %cst_43 = arith.constant 6.400000e+01 : f32
    %122 = vector.broadcast %cst_43 : f32 to vector<16x1xf32>
    %123 = arith.divf %121, %122 : vector<16x1xf32>
    %124 = vector.broadcast %116 : vector<16x1xf32> to vector<16x64xf32>
    %125 = arith.subf %112, %124 : vector<16x64xf32>
    %cst_44 = arith.constant 9.99999974E-6 : f32
    %126 = vector.broadcast %cst_44 : f32 to vector<16x1xf32>
    %127 = arith.addf %123, %126 : vector<16x1xf32>
    %128 = math.rsqrt %127 : vector<16x1xf32>
    %129 = vector.broadcast %128 : vector<16x1xf32> to vector<16x64xf32>
    %130 = arith.mulf %125, %129 : vector<16x64xf32>
    %131 = vector.broadcast %15 : vector<1x64xf32> to vector<16x64xf32>
    %132 = arith.mulf %130, %131 : vector<16x64xf32>
    %133 = vector.broadcast %16 : vector<1x64xf32> to vector<16x64xf32>
    %134 = arith.addf %132, %133 : vector<16x64xf32>
    %c0_45 = arith.constant 0 : index
    %c0_46 = arith.constant 0 : index
    %c0_47 = arith.constant 0 : index
    %135 = vector.load %arg8[%c0_45, %c0_46, %c0_47] : memref<2x64x128xf32, #tpu.memory_space<vmem>>, vector<1x64x128xf32>
    %136 = vector.shape_cast %135 : vector<1x64x128xf32> to vector<64x128xf32>
    %cst_48 = arith.constant dense<0.000000e+00> : vector<16x128xf32>
    %137 = tpu.matmul %134, %136, %cst_48 {dimension_numbers = #tpu.dot_dimension_numbers<[1], [0], [0], [1], [0, 0, 1, 1], [], []>} : vector<16x64xf32>, vector<64x128xf32>, vector<16x128xf32> -> vector<16x128xf32>
    %138 = vector.broadcast %13 : vector<1x128xf32> to vector<16x128xf32>
    %139 = arith.addf %137, %138 : vector<16x128xf32>
    %cst_49 = arith.constant 0.000000e+00 : f32
    %140 = vector.broadcast %cst_49 : f32 to vector<16x128xf32>
    %141 = arith.maximumf %139, %140 : vector<16x128xf32>
    %c0_50 = arith.constant 0 : index
    %c0_51 = arith.constant 0 : index
    %c0_52 = arith.constant 0 : index
    %142 = vector.load %arg9[%c0_50, %c0_51, %c0_52] : memref<2x128x64xf32, #tpu.memory_space<vmem>>, vector<1x128x64xf32>
    %143 = vector.shape_cast %142 : vector<1x128x64xf32> to vector<128x64xf32>
    %cst_53 = arith.constant dense<0.000000e+00> : vector<16x64xf32>
    %144 = tpu.matmul %141, %143, %cst_53 {dimension_numbers = #tpu.dot_dimension_numbers<[1], [0], [0], [1], [0, 0, 1, 1], [], []>} : vector<16x128xf32>, vector<128x64xf32>, vector<16x64xf32> -> vector<16x64xf32>
    %145 = vector.broadcast %14 : vector<1x64xf32> to vector<16x64xf32>
    %146 = arith.addf %144, %145 : vector<16x64xf32>
    %147 = arith.addf %134, %146 : vector<16x64xf32>
    %cst_54 = arith.constant dense<0.000000e+00> : vector<16xf32>
    %148 = vector.multi_reduction <add>, %147, %cst_54 [1] : vector<16x64xf32> to vector<16xf32>
    %149 = vector.shape_cast %148 : vector<16xf32> to vector<16x1xf32>
    %cst_55 = arith.constant 6.400000e+01 : f32
    %150 = vector.broadcast %cst_55 : f32 to vector<16x1xf32>
    %151 = arith.divf %149, %150 : vector<16x1xf32>
    %152 = vector.broadcast %151 : vector<16x1xf32> to vector<16x64xf32>
    %153 = arith.subf %147, %152 : vector<16x64xf32>
    %154 = arith.mulf %153, %153 : vector<16x64xf32>
    %cst_56 = arith.constant dense<0.000000e+00> : vector<16xf32>
    %155 = vector.multi_reduction <add>, %154, %cst_56 [1] : vector<16x64xf32> to vector<16xf32>
    %156 = vector.shape_cast %155 : vector<16xf32> to vector<16x1xf32>
    %cst_57 = arith.constant 6.400000e+01 : f32
    %157 = vector.broadcast %cst_57 : f32 to vector<16x1xf32>
    %158 = arith.divf %156, %157 : vector<16x1xf32>
    %159 = vector.broadcast %151 : vector<16x1xf32> to vector<16x64xf32>
    %160 = arith.subf %147, %159 : vector<16x64xf32>
    %cst_58 = arith.constant 9.99999974E-6 : f32
    %161 = vector.broadcast %cst_58 : f32 to vector<16x1xf32>
    %162 = arith.addf %158, %161 : vector<16x1xf32>
    %163 = math.rsqrt %162 : vector<16x1xf32>
    %164 = vector.broadcast %163 : vector<16x1xf32> to vector<16x64xf32>
    %165 = arith.mulf %160, %164 : vector<16x64xf32>
    %166 = vector.broadcast %17 : vector<1x64xf32> to vector<16x64xf32>
    %167 = arith.mulf %165, %166 : vector<16x64xf32>
    %168 = vector.broadcast %18 : vector<1x64xf32> to vector<16x64xf32>
    %169 = arith.addf %167, %168 : vector<16x64xf32>
    %c1 = arith.constant 1 : index
    %c0_59 = arith.constant 0 : index
    %c0_60 = arith.constant 0 : index
    %170 = vector.load %arg10[%c1, %c0_59, %c0_60] : memref<2x8x192xf32, #tpu.memory_space<vmem>>, vector<1x8x192xf32>
    %171 = vector.shape_cast %170 : vector<1x8x192xf32> to vector<8x192xf32>
    %172 = vector.extract_strided_slice %171 {offsets = [0, 0], sizes = [1, 192], strides = [1, 1]} : vector<8x192xf32> to vector<1x192xf32>
    %173 = vector.extract_strided_slice %171 {offsets = [1, 0], sizes = [1, 64], strides = [1, 1]} : vector<8x192xf32> to vector<1x64xf32>
    %174 = vector.extract_strided_slice %171 {offsets = [2, 0], sizes = [1, 128], strides = [1, 1]} : vector<8x192xf32> to vector<1x128xf32>
    %175 = vector.extract_strided_slice %171 {offsets = [3, 0], sizes = [1, 64], strides = [1, 1]} : vector<8x192xf32> to vector<1x64xf32>
    %176 = vector.extract_strided_slice %171 {offsets = [4, 0], sizes = [1, 64], strides = [1, 1]} : vector<8x192xf32> to vector<1x64xf32>
    %177 = vector.extract_strided_slice %171 {offsets = [5, 0], sizes = [1, 64], strides = [1, 1]} : vector<8x192xf32> to vector<1x64xf32>
    %178 = vector.extract_strided_slice %171 {offsets = [6, 0], sizes = [1, 64], strides = [1, 1]} : vector<8x192xf32> to vector<1x64xf32>
    %179 = vector.extract_strided_slice %171 {offsets = [7, 0], sizes = [1, 64], strides = [1, 1]} : vector<8x192xf32> to vector<1x64xf32>
    %c1_61 = arith.constant 1 : index
    %c0_62 = arith.constant 0 : index
    %c0_63 = arith.constant 0 : index
    %180 = vector.load %arg6[%c1_61, %c0_62, %c0_63] : memref<2x64x192xf32, #tpu.memory_space<vmem>>, vector<1x64x192xf32>
    %181 = vector.shape_cast %180 : vector<1x64x192xf32> to vector<64x192xf32>
    %cst_64 = arith.constant dense<0.000000e+00> : vector<16x192xf32>
    %182 = tpu.matmul %169, %181, %cst_64 {dimension_numbers = #tpu.dot_dimension_numbers<[1], [0], [0], [1], [0, 0, 1, 1], [], []>} : vector<16x64xf32>, vector<64x192xf32>, vector<16x192xf32> -> vector<16x192xf32>
    %183 = vector.broadcast %172 : vector<1x192xf32> to vector<16x192xf32>
    %184 = arith.addf %182, %183 : vector<16x192xf32>
    %185 = vector.shape_cast %184 : vector<16x192xf32> to vector<2x8x192xf32>
    %186 = vector.extract_strided_slice %185 {offsets = [0, 0, 0], sizes = [2, 8, 16], strides = [1, 1, 1]} : vector<2x8x192xf32> to vector<2x8x16xf32>
    %cst_65 = arith.constant 2.500000e-01 : f32
    %187 = vector.broadcast %cst_65 : f32 to vector<2x8x16xf32>
    %188 = arith.mulf %186, %187 : vector<2x8x16xf32>
    %189 = vector.extract_strided_slice %185 {offsets = [0, 0, 64], sizes = [2, 8, 16], strides = [1, 1, 1]} : vector<2x8x192xf32> to vector<2x8x16xf32>
    %190 = vector.extract_strided_slice %185 {offsets = [0, 0, 128], sizes = [2, 8, 16], strides = [1, 1, 1]} : vector<2x8x192xf32> to vector<2x8x16xf32>
    %cst_66 = arith.constant dense<0.000000e+00> : vector<2x8x8xf32>
    %191 = tpu.matmul %188, %189, %cst_66 {dimension_numbers = #tpu.dot_dimension_numbers<[2], [2], [1], [1], [0, 0, 0, 1, 1, 1], [0], [0]>} : vector<2x8x16xf32>, vector<2x8x16xf32>, vector<2x8x8xf32> -> vector<2x8x8xf32>
    %192 = vector.shape_cast %3 : vector<1x8xf32> to vector<1x1x8xf32>
    %193 = vector.broadcast %192 : vector<1x1x8xf32> to vector<2x8x8xf32>
    %194 = arith.addf %191, %193 : vector<2x8x8xf32>
    %cst_67 = arith.constant dense<0xFF800000> : vector<2x8xf32>
    %195 = vector.multi_reduction <maximumf>, %194, %cst_67 [2] : vector<2x8x8xf32> to vector<2x8xf32>
    %196 = vector.shape_cast %195 : vector<2x8xf32> to vector<2x8x1xf32>
    %197 = vector.broadcast %196 : vector<2x8x1xf32> to vector<2x8x8xf32>
    %198 = arith.subf %194, %197 : vector<2x8x8xf32>
    %199 = math.exp %198 : vector<2x8x8xf32>
    %cst_68 = arith.constant dense<0.000000e+00> : vector<2x8xf32>
    %200 = vector.multi_reduction <add>, %199, %cst_68 [2] : vector<2x8x8xf32> to vector<2x8xf32>
    %201 = vector.shape_cast %200 : vector<2x8xf32> to vector<2x8x1xf32>
    %cst_69 = arith.constant dense<0.000000e+00> : vector<2x8x16xf32>
    %202 = tpu.matmul %199, %190, %cst_69 {dimension_numbers = #tpu.dot_dimension_numbers<[2], [1], [1], [2], [0, 0, 0, 1, 1, 2], [0], [0]>} : vector<2x8x8xf32>, vector<2x8x16xf32>, vector<2x8x16xf32> -> vector<2x8x16xf32>
    %203 = tpu.reciprocal %201 {approx = true} : vector<2x8x1xf32> -> vector<2x8x1xf32>
    %204 = vector.broadcast %203 : vector<2x8x1xf32> to vector<2x8x16xf32>
    %205 = arith.mulf %202, %204 : vector<2x8x16xf32>
    %206 = vector.extract_strided_slice %185 {offsets = [0, 0, 16], sizes = [2, 8, 16], strides = [1, 1, 1]} : vector<2x8x192xf32> to vector<2x8x16xf32>
    %cst_70 = arith.constant 2.500000e-01 : f32
    %207 = vector.broadcast %cst_70 : f32 to vector<2x8x16xf32>
    %208 = arith.mulf %206, %207 : vector<2x8x16xf32>
    %209 = vector.extract_strided_slice %185 {offsets = [0, 0, 80], sizes = [2, 8, 16], strides = [1, 1, 1]} : vector<2x8x192xf32> to vector<2x8x16xf32>
    %210 = vector.extract_strided_slice %185 {offsets = [0, 0, 144], sizes = [2, 8, 16], strides = [1, 1, 1]} : vector<2x8x192xf32> to vector<2x8x16xf32>
    %cst_71 = arith.constant dense<0.000000e+00> : vector<2x8x8xf32>
    %211 = tpu.matmul %208, %209, %cst_71 {dimension_numbers = #tpu.dot_dimension_numbers<[2], [2], [1], [1], [0, 0, 0, 1, 1, 1], [0], [0]>} : vector<2x8x16xf32>, vector<2x8x16xf32>, vector<2x8x8xf32> -> vector<2x8x8xf32>
    %212 = vector.shape_cast %3 : vector<1x8xf32> to vector<1x1x8xf32>
    %213 = vector.broadcast %212 : vector<1x1x8xf32> to vector<2x8x8xf32>
    %214 = arith.addf %211, %213 : vector<2x8x8xf32>
    %cst_72 = arith.constant dense<0xFF800000> : vector<2x8xf32>
    %215 = vector.multi_reduction <maximumf>, %214, %cst_72 [2] : vector<2x8x8xf32> to vector<2x8xf32>
    %216 = vector.shape_cast %215 : vector<2x8xf32> to vector<2x8x1xf32>
    %217 = vector.broadcast %216 : vector<2x8x1xf32> to vector<2x8x8xf32>
    %218 = arith.subf %214, %217 : vector<2x8x8xf32>
    %219 = math.exp %218 : vector<2x8x8xf32>
    %cst_73 = arith.constant dense<0.000000e+00> : vector<2x8xf32>
    %220 = vector.multi_reduction <add>, %219, %cst_73 [2] : vector<2x8x8xf32> to vector<2x8xf32>
    %221 = vector.shape_cast %220 : vector<2x8xf32> to vector<2x8x1xf32>
    %cst_74 = arith.constant dense<0.000000e+00> : vector<2x8x16xf32>
    %222 = tpu.matmul %219, %210, %cst_74 {dimension_numbers = #tpu.dot_dimension_numbers<[2], [1], [1], [2], [0, 0, 0, 1, 1, 2], [0], [0]>} : vector<2x8x8xf32>, vector<2x8x16xf32>, vector<2x8x16xf32> -> vector<2x8x16xf32>
    %223 = tpu.reciprocal %221 {approx = true} : vector<2x8x1xf32> -> vector<2x8x1xf32>
    %224 = vector.broadcast %223 : vector<2x8x1xf32> to vector<2x8x16xf32>
    %225 = arith.mulf %222, %224 : vector<2x8x16xf32>
    %226 = vector.extract_strided_slice %185 {offsets = [0, 0, 32], sizes = [2, 8, 16], strides = [1, 1, 1]} : vector<2x8x192xf32> to vector<2x8x16xf32>
    %cst_75 = arith.constant 2.500000e-01 : f32
    %227 = vector.broadcast %cst_75 : f32 to vector<2x8x16xf32>
    %228 = arith.mulf %226, %227 : vector<2x8x16xf32>
    %229 = vector.extract_strided_slice %185 {offsets = [0, 0, 96], sizes = [2, 8, 16], strides = [1, 1, 1]} : vector<2x8x192xf32> to vector<2x8x16xf32>
    %230 = vector.extract_strided_slice %185 {offsets = [0, 0, 160], sizes = [2, 8, 16], strides = [1, 1, 1]} : vector<2x8x192xf32> to vector<2x8x16xf32>
    %cst_76 = arith.constant dense<0.000000e+00> : vector<2x8x8xf32>
    %231 = tpu.matmul %228, %229, %cst_76 {dimension_numbers = #tpu.dot_dimension_numbers<[2], [2], [1], [1], [0, 0, 0, 1, 1, 1], [0], [0]>} : vector<2x8x16xf32>, vector<2x8x16xf32>, vector<2x8x8xf32> -> vector<2x8x8xf32>
    %232 = vector.shape_cast %3 : vector<1x8xf32> to vector<1x1x8xf32>
    %233 = vector.broadcast %232 : vector<1x1x8xf32> to vector<2x8x8xf32>
    %234 = arith.addf %231, %233 : vector<2x8x8xf32>
    %cst_77 = arith.constant dense<0xFF800000> : vector<2x8xf32>
    %235 = vector.multi_reduction <maximumf>, %234, %cst_77 [2] : vector<2x8x8xf32> to vector<2x8xf32>
    %236 = vector.shape_cast %235 : vector<2x8xf32> to vector<2x8x1xf32>
    %237 = vector.broadcast %236 : vector<2x8x1xf32> to vector<2x8x8xf32>
    %238 = arith.subf %234, %237 : vector<2x8x8xf32>
    %239 = math.exp %238 : vector<2x8x8xf32>
    %cst_78 = arith.constant dense<0.000000e+00> : vector<2x8xf32>
    %240 = vector.multi_reduction <add>, %239, %cst_78 [2] : vector<2x8x8xf32> to vector<2x8xf32>
    %241 = vector.shape_cast %240 : vector<2x8xf32> to vector<2x8x1xf32>
    %cst_79 = arith.constant dense<0.000000e+00> : vector<2x8x16xf32>
    %242 = tpu.matmul %239, %230, %cst_79 {dimension_numbers = #tpu.dot_dimension_numbers<[2], [1], [1], [2], [0, 0, 0, 1, 1, 2], [0], [0]>} : vector<2x8x8xf32>, vector<2x8x16xf32>, vector<2x8x16xf32> -> vector<2x8x16xf32>
    %243 = tpu.reciprocal %241 {approx = true} : vector<2x8x1xf32> -> vector<2x8x1xf32>
    %244 = vector.broadcast %243 : vector<2x8x1xf32> to vector<2x8x16xf32>
    %245 = arith.mulf %242, %244 : vector<2x8x16xf32>
    %246 = vector.extract_strided_slice %185 {offsets = [0, 0, 48], sizes = [2, 8, 16], strides = [1, 1, 1]} : vector<2x8x192xf32> to vector<2x8x16xf32>
    %cst_80 = arith.constant 2.500000e-01 : f32
    %247 = vector.broadcast %cst_80 : f32 to vector<2x8x16xf32>
    %248 = arith.mulf %246, %247 : vector<2x8x16xf32>
    %249 = vector.extract_strided_slice %185 {offsets = [0, 0, 112], sizes = [2, 8, 16], strides = [1, 1, 1]} : vector<2x8x192xf32> to vector<2x8x16xf32>
    %250 = vector.extract_strided_slice %185 {offsets = [0, 0, 176], sizes = [2, 8, 16], strides = [1, 1, 1]} : vector<2x8x192xf32> to vector<2x8x16xf32>
    %cst_81 = arith.constant dense<0.000000e+00> : vector<2x8x8xf32>
    %251 = tpu.matmul %248, %249, %cst_81 {dimension_numbers = #tpu.dot_dimension_numbers<[2], [2], [1], [1], [0, 0, 0, 1, 1, 1], [0], [0]>} : vector<2x8x16xf32>, vector<2x8x16xf32>, vector<2x8x8xf32> -> vector<2x8x8xf32>
    %252 = vector.shape_cast %3 : vector<1x8xf32> to vector<1x1x8xf32>
    %253 = vector.broadcast %252 : vector<1x1x8xf32> to vector<2x8x8xf32>
    %254 = arith.addf %251, %253 : vector<2x8x8xf32>
    %cst_82 = arith.constant dense<0xFF800000> : vector<2x8xf32>
    %255 = vector.multi_reduction <maximumf>, %254, %cst_82 [2] : vector<2x8x8xf32> to vector<2x8xf32>
    %256 = vector.shape_cast %255 : vector<2x8xf32> to vector<2x8x1xf32>
    %257 = vector.broadcast %256 : vector<2x8x1xf32> to vector<2x8x8xf32>
    %258 = arith.subf %254, %257 : vector<2x8x8xf32>
    %259 = math.exp %258 : vector<2x8x8xf32>
    %cst_83 = arith.constant dense<0.000000e+00> : vector<2x8xf32>
    %260 = vector.multi_reduction <add>, %259, %cst_83 [2] : vector<2x8x8xf32> to vector<2x8xf32>
    %261 = vector.shape_cast %260 : vector<2x8xf32> to vector<2x8x1xf32>
    %cst_84 = arith.constant dense<0.000000e+00> : vector<2x8x16xf32>
    %262 = tpu.matmul %259, %250, %cst_84 {dimension_numbers = #tpu.dot_dimension_numbers<[2], [1], [1], [2], [0, 0, 0, 1, 1, 2], [0], [0]>} : vector<2x8x8xf32>, vector<2x8x16xf32>, vector<2x8x16xf32> -> vector<2x8x16xf32>
    %263 = tpu.reciprocal %261 {approx = true} : vector<2x8x1xf32> -> vector<2x8x1xf32>
    %264 = vector.broadcast %263 : vector<2x8x1xf32> to vector<2x8x16xf32>
    %265 = arith.mulf %262, %264 : vector<2x8x16xf32>
    %266 = tpu.concatenate %205, %225, %245, %265 in 2 : vector<2x8x16xf32>, vector<2x8x16xf32>, vector<2x8x16xf32>, vector<2x8x16xf32> -> vector<2x8x64xf32>
    %267 = vector.shape_cast %266 : vector<2x8x64xf32> to vector<16x64xf32>
    %c1_85 = arith.constant 1 : index
    %c0_86 = arith.constant 0 : index
    %c0_87 = arith.constant 0 : index
    %268 = vector.load %arg7[%c1_85, %c0_86, %c0_87] : memref<2x64x64xf32, #tpu.memory_space<vmem>>, vector<1x64x64xf32>
    %269 = vector.shape_cast %268 : vector<1x64x64xf32> to vector<64x64xf32>
    %cst_88 = arith.constant dense<0.000000e+00> : vector<16x64xf32>
    %270 = tpu.matmul %267, %269, %cst_88 {dimension_numbers = #tpu.dot_dimension_numbers<[1], [0], [0], [1], [0, 0, 1, 1], [], []>} : vector<16x64xf32>, vector<64x64xf32>, vector<16x64xf32> -> vector<16x64xf32>
    %271 = vector.broadcast %173 : vector<1x64xf32> to vector<16x64xf32>
    %272 = arith.addf %270, %271 : vector<16x64xf32>
    %273 = arith.addf %169, %272 : vector<16x64xf32>
    %cst_89 = arith.constant dense<0.000000e+00> : vector<16xf32>
    %274 = vector.multi_reduction <add>, %273, %cst_89 [1] : vector<16x64xf32> to vector<16xf32>
    %275 = vector.shape_cast %274 : vector<16xf32> to vector<16x1xf32>
    %cst_90 = arith.constant 6.400000e+01 : f32
    %276 = vector.broadcast %cst_90 : f32 to vector<16x1xf32>
    %277 = arith.divf %275, %276 : vector<16x1xf32>
    %278 = vector.broadcast %277 : vector<16x1xf32> to vector<16x64xf32>
    %279 = arith.subf %273, %278 : vector<16x64xf32>
    %280 = arith.mulf %279, %279 : vector<16x64xf32>
    %cst_91 = arith.constant dense<0.000000e+00> : vector<16xf32>
    %281 = vector.multi_reduction <add>, %280, %cst_91 [1] : vector<16x64xf32> to vector<16xf32>
    %282 = vector.shape_cast %281 : vector<16xf32> to vector<16x1xf32>
    %cst_92 = arith.constant 6.400000e+01 : f32
    %283 = vector.broadcast %cst_92 : f32 to vector<16x1xf32>
    %284 = arith.divf %282, %283 : vector<16x1xf32>
    %285 = vector.broadcast %277 : vector<16x1xf32> to vector<16x64xf32>
    %286 = arith.subf %273, %285 : vector<16x64xf32>
    %cst_93 = arith.constant 9.99999974E-6 : f32
    %287 = vector.broadcast %cst_93 : f32 to vector<16x1xf32>
    %288 = arith.addf %284, %287 : vector<16x1xf32>
    %289 = math.rsqrt %288 : vector<16x1xf32>
    %290 = vector.broadcast %289 : vector<16x1xf32> to vector<16x64xf32>
    %291 = arith.mulf %286, %290 : vector<16x64xf32>
    %292 = vector.broadcast %176 : vector<1x64xf32> to vector<16x64xf32>
    %293 = arith.mulf %291, %292 : vector<16x64xf32>
    %294 = vector.broadcast %177 : vector<1x64xf32> to vector<16x64xf32>
    %295 = arith.addf %293, %294 : vector<16x64xf32>
    %c1_94 = arith.constant 1 : index
    %c0_95 = arith.constant 0 : index
    %c0_96 = arith.constant 0 : index
    %296 = vector.load %arg8[%c1_94, %c0_95, %c0_96] : memref<2x64x128xf32, #tpu.memory_space<vmem>>, vector<1x64x128xf32>
    %297 = vector.shape_cast %296 : vector<1x64x128xf32> to vector<64x128xf32>
    %cst_97 = arith.constant dense<0.000000e+00> : vector<16x128xf32>
    %298 = tpu.matmul %295, %297, %cst_97 {dimension_numbers = #tpu.dot_dimension_numbers<[1], [0], [0], [1], [0, 0, 1, 1], [], []>} : vector<16x64xf32>, vector<64x128xf32>, vector<16x128xf32> -> vector<16x128xf32>
    %299 = vector.broadcast %174 : vector<1x128xf32> to vector<16x128xf32>
    %300 = arith.addf %298, %299 : vector<16x128xf32>
    %cst_98 = arith.constant 0.000000e+00 : f32
    %301 = vector.broadcast %cst_98 : f32 to vector<16x128xf32>
    %302 = arith.maximumf %300, %301 : vector<16x128xf32>
    %c1_99 = arith.constant 1 : index
    %c0_100 = arith.constant 0 : index
    %c0_101 = arith.constant 0 : index
    %303 = vector.load %arg9[%c1_99, %c0_100, %c0_101] : memref<2x128x64xf32, #tpu.memory_space<vmem>>, vector<1x128x64xf32>
    %304 = vector.shape_cast %303 : vector<1x128x64xf32> to vector<128x64xf32>
    %cst_102 = arith.constant dense<0.000000e+00> : vector<16x64xf32>
    %305 = tpu.matmul %302, %304, %cst_102 {dimension_numbers = #tpu.dot_dimension_numbers<[1], [0], [0], [1], [0, 0, 1, 1], [], []>} : vector<16x128xf32>, vector<128x64xf32>, vector<16x64xf32> -> vector<16x64xf32>
    %306 = vector.broadcast %175 : vector<1x64xf32> to vector<16x64xf32>
    %307 = arith.addf %305, %306 : vector<16x64xf32>
    %308 = arith.addf %295, %307 : vector<16x64xf32>
    %cst_103 = arith.constant dense<0.000000e+00> : vector<16xf32>
    %309 = vector.multi_reduction <add>, %308, %cst_103 [1] : vector<16x64xf32> to vector<16xf32>
    %310 = vector.shape_cast %309 : vector<16xf32> to vector<16x1xf32>
    %cst_104 = arith.constant 6.400000e+01 : f32
    %311 = vector.broadcast %cst_104 : f32 to vector<16x1xf32>
    %312 = arith.divf %310, %311 : vector<16x1xf32>
    %313 = vector.broadcast %312 : vector<16x1xf32> to vector<16x64xf32>
    %314 = arith.subf %308, %313 : vector<16x64xf32>
    %315 = arith.mulf %314, %314 : vector<16x64xf32>
    %cst_105 = arith.constant dense<0.000000e+00> : vector<16xf32>
    %316 = vector.multi_reduction <add>, %315, %cst_105 [1] : vector<16x64xf32> to vector<16xf32>
    %317 = vector.shape_cast %316 : vector<16xf32> to vector<16x1xf32>
    %cst_106 = arith.constant 6.400000e+01 : f32
    %318 = vector.broadcast %cst_106 : f32 to vector<16x1xf32>
    %319 = arith.divf %317, %318 : vector<16x1xf32>
    %320 = vector.broadcast %312 : vector<16x1xf32> to vector<16x64xf32>
    %321 = arith.subf %308, %320 : vector<16x64xf32>
    %cst_107 = arith.constant 9.99999974E-6 : f32
    %322 = vector.broadcast %cst_107 : f32 to vector<16x1xf32>
    %323 = arith.addf %319, %322 : vector<16x1xf32>
    %324 = math.rsqrt %323 : vector<16x1xf32>
    %325 = vector.broadcast %324 : vector<16x1xf32> to vector<16x64xf32>
    %326 = arith.mulf %321, %325 : vector<16x64xf32>
    %327 = vector.broadcast %178 : vector<1x64xf32> to vector<16x64xf32>
    %328 = arith.mulf %326, %327 : vector<16x64xf32>
    %329 = vector.broadcast %179 : vector<1x64xf32> to vector<16x64xf32>
    %330 = arith.addf %328, %329 : vector<16x64xf32>
    %c0_108 = arith.constant 0 : index
    %c0_109 = arith.constant 0 : index
    %c0_110 = arith.constant 0 : index
    %331 = vector.load %arg3[%c0_108, %c0_109, %c0_110] : memref<1x8x1xf32, #tpu.memory_space<vmem>>, vector<1x8x1xf32>
    %332 = vector.shape_cast %331 : vector<1x8x1xf32> to vector<8x1xf32>
    %333 = vector.extract_strided_slice %330 {offsets = [0, 0], sizes = [8, 64], strides = [1, 1]} : vector<16x64xf32> to vector<8x64xf32>
    %334 = vector.broadcast %332 : vector<8x1xf32> to vector<8x64xf32>
    %335 = arith.mulf %333, %334 : vector<8x64xf32>
    %336 = vector.extract_strided_slice %330 {offsets = [8, 0], sizes = [8, 64], strides = [1, 1]} : vector<16x64xf32> to vector<8x64xf32>
    %337 = vector.broadcast %332 : vector<8x1xf32> to vector<8x64xf32>
    %338 = arith.mulf %336, %337 : vector<8x64xf32>
    %339 = arith.mulf %335, %335 : vector<8x64xf32>
    %cst_111 = arith.constant dense<0.000000e+00> : vector<8xf32>
    %340 = vector.multi_reduction <add>, %339, %cst_111 [1] : vector<8x64xf32> to vector<8xf32>
    %341 = vector.shape_cast %340 : vector<8xf32> to vector<8x1xf32>
    %342 = math.sqrt %341 : vector<8x1xf32>
    %343 = arith.mulf %338, %338 : vector<8x64xf32>
    %cst_112 = arith.constant dense<0.000000e+00> : vector<8xf32>
    %344 = vector.multi_reduction <add>, %343, %cst_112 [1] : vector<8x64xf32> to vector<8xf32>
    %345 = vector.shape_cast %344 : vector<8xf32> to vector<8x1xf32>
    %346 = math.sqrt %345 : vector<8x1xf32>
    %cst_113 = arith.constant dense<0.000000e+00> : vector<8x8xf32>
    %347 = tpu.matmul %335, %338, %cst_113 {dimension_numbers = #tpu.dot_dimension_numbers<[1], [1], [0], [0], [0, 0, 1, 0], [], []>} : vector<8x64xf32>, vector<8x64xf32>, vector<8x8xf32> -> vector<8x8xf32>
    %cst_114 = arith.constant dense<0.000000e+00> : vector<8x8xf32>
    %348 = tpu.matmul %342, %346, %cst_114 {dimension_numbers = #tpu.dot_dimension_numbers<[1], [1], [0], [0], [0, 0, 1, 0], [], []>} : vector<8x1xf32>, vector<8x1xf32>, vector<8x8xf32> -> vector<8x8xf32>
    %cst_115 = arith.constant 9.99999997E-7 : f32
    %349 = vector.broadcast %cst_115 : f32 to vector<8x8xf32>
    %350 = arith.maximumf %348, %349 : vector<8x8xf32>
    %351 = arith.divf %347, %350 : vector<8x8xf32>
    %c0_116 = arith.constant 0 : index
    %c0_117 = arith.constant 0 : index
    %c0_118 = arith.constant 0 : index
    %352 = vector.load %arg11[%c0_116, %c0_117, %c0_118] : memref<1x8x8xf32, #tpu.memory_space<vmem>>, vector<1x8x8xf32>
    %353 = vector.shape_cast %352 : vector<1x8x8xf32> to vector<8x8xf32>
    %354 = vector.shape_cast %351 : vector<8x8xf32> to vector<1x8x8xf32>
    tpu.vector_store %arg11[%c0_116, %c0_117, %c0_118], %354 {strides = array<i32>} : memref<1x8x8xf32, #tpu.memory_space<vmem>>, vector<1x8x8xf32>,
    return
  }
  func.func @transform_0(%arg0: i32) -> (i32, i32, i32) {
    %c0_i32 = arith.constant 0 : i32
    %c0_i32_0 = arith.constant 0 : i32
    %c0_i32_1 = arith.constant 0 : i32
    return %arg0, %c0_i32, %c0_i32_0 : i32, i32, i32
  }
  func.func @transform_1(%arg0: i32) -> (i32, i32, i32) {
    %c0_i32 = arith.constant 0 : i32
    %c0_i32_0 = arith.constant 0 : i32
    %c0_i32_1 = arith.constant 0 : i32
    return %arg0, %c0_i32, %c0_i32_0 : i32, i32, i32
  }
  func.func @transform_2(%arg0: i32) -> (i32, i32, i32) {
    %c0_i32 = arith.constant 0 : i32
    %c0_i32_0 = arith.constant 0 : i32
    %c0_i32_1 = arith.constant 0 : i32
    return %arg0, %c0_i32, %c0_i32_0 : i32, i32, i32
  }
  func.func @transform_3(%arg0: i32) -> (i32, i32) {
    %c0_i32 = arith.constant 0 : i32
    %c0_i32_0 = arith.constant 0 : i32
    %c0_i32_1 = arith.constant 0 : i32
    return %c0_i32, %c0_i32_0 : i32, i32
  }
  func.func @transform_4(%arg0: i32) -> (i32, i32) {
    %c0_i32 = arith.constant 0 : i32
    %c0_i32_0 = arith.constant 0 : i32
    %c0_i32_1 = arith.constant 0 : i32
    return %c0_i32, %c0_i32_0 : i32, i32
  }
  func.func @transform_5(%arg0: i32) -> (i32, i32, i32) {
    %c0_i32 = arith.constant 0 : i32
    %c0_i32_0 = arith.constant 0 : i32
    %c0_i32_1 = arith.constant 0 : i32
    %c0_i32_2 = arith.constant 0 : i32
    return %c0_i32, %c0_i32_0, %c0_i32_1 : i32, i32, i32
  }
  func.func @transform_6(%arg0: i32) -> (i32, i32, i32) {
    %c0_i32 = arith.constant 0 : i32
    %c0_i32_0 = arith.constant 0 : i32
    %c0_i32_1 = arith.constant 0 : i32
    %c0_i32_2 = arith.constant 0 : i32
    return %c0_i32, %c0_i32_0, %c0_i32_1 : i32, i32, i32
  }
  func.func @transform_7(%arg0: i32) -> (i32, i32, i32) {
    %c0_i32 = arith.constant 0 : i32
    %c0_i32_0 = arith.constant 0 : i32
    %c0_i32_1 = arith.constant 0 : i32
    %c0_i32_2 = arith.constant 0 : i32
    return %c0_i32, %c0_i32_0, %c0_i32_1 : i32, i32, i32
  }
  func.func @transform_8(%arg0: i32) -> (i32, i32, i32) {
    %c0_i32 = arith.constant 0 : i32
    %c0_i32_0 = arith.constant 0 : i32
    %c0_i32_1 = arith.constant 0 : i32
    %c0_i32_2 = arith.constant 0 : i32
    return %c0_i32, %c0_i32_0, %c0_i32_1 : i32, i32, i32
  }
  func.func @transform_9(%arg0: i32) -> (i32, i32, i32) {
    %c0_i32 = arith.constant 0 : i32
    %c0_i32_0 = arith.constant 0 : i32
    %c0_i32_1 = arith.constant 0 : i32
    %c0_i32_2 = arith.constant 0 : i32
    return %c0_i32, %c0_i32_0, %c0_i32_1 : i32, i32, i32
  }
  func.func @transform_10(%arg0: i32) -> (i32, i32, i32) {
    %c0_i32 = arith.constant 0 : i32
    %c0_i32_0 = arith.constant 0 : i32
    %c0_i32_1 = arith.constant 0 : i32
    return %arg0, %c0_i32, %c0_i32_0 : i32, i32, i32
  }
}

</mosaic_0001>

<llo_original>
// kernel: linker_forward.1
$region0: #{linker_forward.1}
  #allocation0 [shape = 'u32[]', space=smem, size = 0x4, offset = 0x4, fixed_abs, tag = 'smem constant byte address 0x4 - core index']
  #allocation1 [shape = 'u32[144,128]{1,0:T(1,128)}', space=vmem, size = 0x12000, scoped, tag = 'internal scratch']
  %s0 = inlined_call_operand.vmem [shape: f32[2,16,12], index: 0, kind: input, shape index: {}]
  %s1 = inlined_call_operand.vmem [shape: f32[2,1,8], index: 1, kind: input, shape index: {}]
  %s2 = inlined_call_operand.vmem [shape: f32[2,8,1], index: 2, kind: input, shape index: {}]
  %s3 = inlined_call_operand.vmem [shape: f32[12,64], index: 3, kind: input, shape index: {}]
  %s4 = inlined_call_operand.vmem [shape: f32[1,64], index: 4, kind: input, shape index: {}]
  %s5 = inlined_call_operand.vmem [shape: f32[2,64,192], index: 5, kind: input, shape index: {}]
  %s6 = inlined_call_operand.vmem [shape: f32[2,64,64], index: 6, kind: input, shape index: {}]
  %s7 = inlined_call_operand.vmem [shape: f32[2,64,128], index: 7, kind: input, shape index: {}]
  %s8 = inlined_call_operand.vmem [shape: f32[2,128,64], index: 8, kind: input, shape index: {}]
  %s9 = inlined_call_operand.vmem [shape: f32[2,8,192], index: 9, kind: input, shape index: {}]
  %s10 = inlined_call_operand.hbm [shape: f32[2,8,8], index: 10, kind: output, shape index: {}]
  %s11 = sld [smem:[#allocation0]]
  $region73: #{linker_forward.1} parent=0
    _
  %s13 = ssub.s32 1, %s11
  %s14 = scalar_select 0, %s13, %s11
  $region1: #{linker_forward.1} parent=0
    #allocation2 [shape = 'u8[8192]{0}', space=vmem, size = 0x2000, scoped, tag = 'output window, operand 0']
    #allocation3 [shape = 's32[2]{0}', space=sflag, size = 0x8, scoped, tag = 'scoped memory for linker_forward.1']
    %15 = vsyncpa [#allocation3], 0
    %s16 = scalar_lea.sflag [#allocation3], 1
    %17 = vsyncpa %s16, 0
    loop: start=0, step=1, limit=4
    $region2: #{linker_forward.1} parent=1 // loop_pre_header
      _
    $region3: #{linker_forward.1} parent=1 // loop_header
      %s19 = sphi 0, %s23
      %p20 = scmp.ge.s32.totalorder %s19, 4
      %s29 = sphi 0, %s31
      %s32 = sphi 0, %s29
      %s33 = sphi 0, %s32
      %s49 = sphi 0, %s33
      %s55 = sphi 0, %s57
      %s58 = sphi 0, %s55
      %s59 = sphi 0, %s58
      %s75 = sphi 0, %s59
      %s81 = sphi 0, %s83
      %s84 = sphi 0, %s81
      %s85 = sphi 0, %s84
      %s101 = sphi 0, %s85
      %s105 = sphi 0, %s105
      %s107 = sphi 0, %s105
      %s108 = sphi 0, %s107
      %s122 = sphi 0, %s108
      %s126 = sphi 0, %s126
      %s128 = sphi 0, %s126
      %s129 = sphi 0, %s128
      %s143 = sphi 0, %s129
      %s147 = sphi 0, %s147
      %s149 = sphi 0, %s147
      %s150 = sphi 0, %s149
      %s164 = sphi 0, %s150
      %s168 = sphi 0, %s168
      %s170 = sphi 0, %s168
      %s171 = sphi 0, %s170
      %s185 = sphi 0, %s171
      %s189 = sphi 0, %s189
      %s191 = sphi 0, %s189
      %s192 = sphi 0, %s191
      %s206 = sphi 0, %s192
      %s210 = sphi 0, %s210
      %s212 = sphi 0, %s210
      %s213 = sphi 0, %s212
      %s227 = sphi 0, %s213
      %s231 = sphi 0, %s231
      %s233 = sphi 0, %s231
      %s234 = sphi 0, %s233
      %s248 = sphi 0, %s234
      %s254 = sphi 0, %s256
      %s257 = sphi 0, %s254
      %s258 = sphi 0, %s257
      %s274 = sphi 0, %s258
    $region4: #{linker_forward.1} parent=1 // loop_header_branch
      %22 = sbr.rel (%p20) target = $region8
    $region5: #{linker_forward.1} parent=1 // loop_body
      %s24 = ssub.s32 %s19, 1
      %s25 = ssub.s32 %s19, 2
      %s26 = sadd.s32 %s19, 1
      %s27 = ssub.s32 %s19, %s26
      %p28 = scmp.eq.s32.totalorder %s27, 0
      %s30 = sadd.s32 %s29, 1
      %s31 = scalar_select %p28, %s29, %s30
      %p34 = pneg %p28
      %p35 = scmp.eq.s32.totalorder %s19, 1
      %p36 = por %p34, %p35
      %p37 = scmp.ne.s32.totalorder %s29, %s32
      %p38 = scmp.eq.s32.totalorder %s19, 0
      %p39 = por %p37, %p38
      %p40 = scmp.ne.s32.totalorder %s29, %s32
      %p41 = scmp.eq.s32.totalorder %s24, 1
      %p42 = por %p40, %p41
      %p43 = scmp.ne.s32.totalorder %s32, %s33
      %p44 = scmp.eq.s32.totalorder %s24, 0
      %p45 = por %p43, %p44
      %p46 = scmp.ne.s32.totalorder %s32, %s33
      %p47 = scmp.eq.s32.totalorder %s25, 1
      %p48 = por %p46, %p47
      %p50 = scmp.ne.s32.totalorder %s33, %s49
      %p51 = scmp.eq.s32.totalorder %s25, 0
      %p52 = por %p50, %p51
      %s53 = ssub.s32 %s19, %s26
      %p54 = scmp.eq.s32.totalorder %s53, 0
      %s56 = sadd.s32 %s55, 1
      %s57 = scalar_select %p54, %s55, %s56
      %p60 = pneg %p54
      %p61 = scmp.eq.s32.totalorder %s19, 1
      %p62 = por %p60, %p61
      %p63 = scmp.ne.s32.totalorder %s55, %s58
      %p64 = scmp.eq.s32.totalorder %s19, 0
      %p65 = por %p63, %p64
      %p66 = scmp.ne.s32.totalorder %s55, %s58
      %p67 = scmp.eq.s32.totalorder %s24, 1
      %p68 = por %p66, %p67
      %p69 = scmp.ne.s32.totalorder %s58, %s59
      %p70 = scmp.eq.s32.totalorder %s24, 0
      %p71 = por %p69, %p70
      %p72 = scmp.ne.s32.totalorder %s58, %s59
      %p73 = scmp.eq.s32.totalorder %s25, 1
      %p74 = por %p72, %p73
      %p76 = scmp.ne.s32.totalorder %s59, %s75
      %p77 = scmp.eq.s32.totalorder %s25, 0
      %p78 = por %p76, %p77
      %s79 = ssub.s32 %s19, %s26
      %p80 = scmp.eq.s32.totalorder %s79, 0
      %s82 = sadd.s32 %s81, 1
      %s83 = scalar_select %p80, %s81, %s82
      %p86 = pneg %p80
      %p87 = scmp.eq.s32.totalorder %s19, 1
      %p88 = por %p86, %p87
      %p89 = scmp.ne.s32.totalorder %s81, %s84
      %p90 = scmp.eq.s32.totalorder %s19, 0
      %p91 = por %p89, %p90
      %p92 = scmp.ne.s32.totalorder %s81, %s84
      %p93 = scmp.eq.s32.totalorder %s24, 1
      %p94 = por %p92, %p93
      %p95 = scmp.ne.s32.totalorder %s84, %s85
      %p96 = scmp.eq.s32.totalorder %s24, 0
      %p97 = por %p95, %p96
      %p98 = scmp.ne.s32.totalorder %s84, %s85
      %p99 = scmp.eq.s32.totalorder %s25, 1
      %p100 = por %p98, %p99
      %p102 = scmp.ne.s32.totalorder %s85, %s101
      %p103 = scmp.eq.s32.totalorder %s25, 0
      %p104 = por %p102, %p103
      %s106 = sadd.s32 %s105, 1
      %p109 = scmp.eq.s32.totalorder %s19, 1
      %p110 = scmp.ne.s32.totalorder %s105, %s107
      %p111 = scmp.eq.s32.totalorder %s19, 0
      %p112 = por %p110, %p111
      %p113 = scmp.ne.s32.totalorder %s105, %s107
      %p114 = scmp.eq.s32.totalorder %s24, 1
      %p115 = por %p113, %p114
      %p116 = scmp.ne.s32.totalorder %s107, %s108
      %p117 = scmp.eq.s32.totalorder %s24, 0
      %p118 = por %p116, %p117
      %p119 = scmp.ne.s32.totalorder %s107, %s108
      %p120 = scmp.eq.s32.totalorder %s25, 1
      %p121 = por %p119, %p120
      %p123 = scmp.ne.s32.totalorder %s108, %s122
      %p124 = scmp.eq.s32.totalorder %s25, 0
      %p125 = por %p123, %p124
      %s127 = sadd.s32 %s126, 1
      %p130 = scmp.eq.s32.totalorder %s19, 1
      %p131 = scmp.ne.s32.totalorder %s126, %s128
      %p132 = scmp.eq.s32.totalorder %s19, 0
      %p133 = por %p131, %p132
      %p134 = scmp.ne.s32.totalorder %s126, %s128
      %p135 = scmp.eq.s32.totalorder %s24, 1
      %p136 = por %p134, %p135
      %p137 = scmp.ne.s32.totalorder %s128, %s129
      %p138 = scmp.eq.s32.totalorder %s24, 0
      %p139 = por %p137, %p138
      %p140 = scmp.ne.s32.totalorder %s128, %s129
      %p141 = scmp.eq.s32.totalorder %s25, 1
      %p142 = por %p140, %p141
      %p144 = scmp.ne.s32.totalorder %s129, %s143
      %p145 = scmp.eq.s32.totalorder %s25, 0
      %p146 = por %p144, %p145
      %s148 = sadd.s32 %s147, 1
      %p151 = scmp.eq.s32.totalorder %s19, 1
      %p152 = scmp.ne.s32.totalorder %s147, %s149
      %p153 = scmp.eq.s32.totalorder %s19, 0
      %p154 = por %p152, %p153
      %p155 = scmp.ne.s32.totalorder %s147, %s149
      %p156 = scmp.eq.s32.totalorder %s24, 1
      %p157 = por %p155, %p156
      %p158 = scmp.ne.s32.totalorder %s149, %s150
      %p159 = scmp.eq.s32.totalorder %s24, 0
      %p160 = por %p158, %p159
      %p161 = scmp.ne.s32.totalorder %s149, %s150
      %p162 = scmp.eq.s32.totalorder %s25, 1
      %p163 = por %p161, %p162
      %p165 = scmp.ne.s32.totalorder %s150, %s164
      %p166 = scmp.eq.s32.totalorder %s25, 0
      %p167 = por %p165, %p166
      %s169 = sadd.s32 %s168, 1
      %p172 = scmp.eq.s32.totalorder %s19, 1
      %p173 = scmp.ne.s32.totalorder %s168, %s170
      %p174 = scmp.eq.s32.totalorder %s19, 0
      %p175 = por %p173, %p174
      %p176 = scmp.ne.s32.totalorder %s168, %s170
      %p177 = scmp.eq.s32.totalorder %s24, 1
      %p178 = por %p176, %p177
      %p179 = scmp.ne.s32.totalorder %s170, %s171
      %p180 = scmp.eq.s32.totalorder %s24, 0
      %p181 = por %p179, %p180
      %p182 = scmp.ne.s32.totalorder %s170, %s171
      %p183 = scmp.eq.s32.totalorder %s25, 1
      %p184 = por %p182, %p183
      %p186 = scmp.ne.s32.totalorder %s171, %s185
      %p187 = scmp.eq.s32.totalorder %s25, 0
      %p188 = por %p186, %p187
      %s190 = sadd.s32 %s189, 1
      %p193 = scmp.eq.s32.totalorder %s19, 1
      %p194 = scmp.ne.s32.totalorder %s189, %s191
      %p195 = scmp.eq.s32.totalorder %s19, 0
      %p196 = por %p194, %p195
      %p197 = scmp.ne.s32.totalorder %s189, %s191
      %p198 = scmp.eq.s32.totalorder %s24, 1
      %p199 = por %p197, %p198
      %p200 = scmp.ne.s32.totalorder %s191, %s192
      %p201 = scmp.eq.s32.totalorder %s24, 0
      %p202 = por %p200, %p201
      %p203 = scmp.ne.s32.totalorder %s191, %s192
      %p204 = scmp.eq.s32.totalorder %s25, 1
      %p205 = por %p203, %p204
      %p207 = scmp.ne.s32.totalorder %s192, %s206
      %p208 = scmp.eq.s32.totalorder %s25, 0
      %p209 = por %p207, %p208
      %s211 = sadd.s32 %s210, 1
      %p214 = scmp.eq.s32.totalorder %s19, 1
      %p215 = scmp.ne.s32.totalorder %s210, %s212
      %p216 = scmp.eq.s32.totalorder %s19, 0
      %p217 = por %p215, %p216
      %p218 = scmp.ne.s32.totalorder %s210, %s212
      %p219 = scmp.eq.s32.totalorder %s24, 1
      %p220 = por %p218, %p219
      %p221 = scmp.ne.s32.totalorder %s212, %s213
      %p222 = scmp.eq.s32.totalorder %s24, 0
      %p223 = por %p221, %p222
      %p224 = scmp.ne.s32.totalorder %s212, %s213
      %p225 = scmp.eq.s32.totalorder %s25, 1
      %p226 = por %p224, %p225
      %p228 = scmp.ne.s32.totalorder %s213, %s227
      %p229 = scmp.eq.s32.totalorder %s25, 0
      %p230 = por %p228, %p229
      %s232 = sadd.s32 %s231, 1
      %p235 = scmp.eq.s32.totalorder %s19, 1
      %p236 = scmp.ne.s32.totalorder %s231, %s233
      %p237 = scmp.eq.s32.totalorder %s19, 0
      %p238 = por %p236, %p237
      %p239 = scmp.ne.s32.totalorder %s231, %s233
      %p240 = scmp.eq.s32.totalorder %s24, 1
      %p241 = por %p239, %p240
      %p242 = scmp.ne.s32.totalorder %s233, %s234
      %p243 = scmp.eq.s32.totalorder %s24, 0
      %p244 = por %p242, %p243
      %p245 = scmp.ne.s32.totalorder %s233, %s234
      %p246 = scmp.eq.s32.totalorder %s25, 1
      %p247 = por %p245, %p246
      %p249 = scmp.ne.s32.totalorder %s234, %s248
      %p250 = scmp.eq.s32.totalorder %s25, 0
      %p251 = por %p249, %p250
      %s252 = ssub.s32 %s19, %s26
      %p253 = scmp.eq.s32.totalorder %s252, 0
      %s255 = sadd.s32 %s254, 1
      %s256 = scalar_select %p253, %s254, %s255
      %p259 = pneg %p253
      %p260 = scmp.eq.s32.totalorder %s19, 1
      %p261 = por %p259, %p260
      %p262 = scmp.ne.s32.totalorder %s254, %s257
      %p263 = scmp.eq.s32.totalorder %s19, 0
      %p264 = por %p262, %p263
      %p265 = scmp.ne.s32.totalorder %s254, %s257
      %p266 = scmp.eq.s32.totalorder %s24, 1
      %p267 = por %p265, %p266
      %p268 = scmp.ne.s32.totalorder %s257, %s258
      %p269 = scmp.eq.s32.totalorder %s24, 0
      %p270 = por %p268, %p269
      %p271 = scmp.ne.s32.totalorder %s257, %s258
      %p272 = scmp.eq.s32.totalorder %s25, 1
      %p273 = por %p271, %p272
      %p275 = scmp.ne.s32.totalorder %s258, %s274
      %p276 = scmp.eq.s32.totalorder %s25, 0
      %p277 = por %p275, %p276
      %p278 = scmp.le.s32.totalorder 1, %s19
      %p279 = scmp.lt.s32.totalorder %s19, 3
      %p280 = pnand %p278, %p279
      %p281 = pneg %p280
      // Predicated region
      $region9: #{linker_forward.1} parent=5 // pred_check
        _
      $region10: #{linker_forward.1} parent=5 // pred_check_branch
        %283 = sbr.rel (%p280) target = $region12
      $region11: #{linker_forward.1} parent=5 // pred_region
        %s284 = ssub.s32 %s19, 1
        // Predicated region
        $region13: #{linker_forward.1} parent=11 // pred_check
          %p285 = pneg %p118
        $region14: #{linker_forward.1} parent=11 // pred_check_branch
          %287 = sbr.rel (%p285) target = $region16
        $region15: #{linker_forward.1} parent=11 // pred_region
          _
        $region16: #{linker_forward.1} parent=11 // pred_fallthru
          _
        // Predicated region
        $region17: #{linker_forward.1} parent=11 // pred_check
          %p288 = pneg %p139
        $region18: #{linker_forward.1} parent=11 // pred_check_branch
          %290 = sbr.rel (%p288) target = $region20
        $region19: #{linker_forward.1} parent=11 // pred_region
          _
        $region20: #{linker_forward.1} parent=11 // pred_fallthru
          _
        // Predicated region
        $region21: #{linker_forward.1} parent=11 // pred_check
          %p291 = pneg %p160
        $region22: #{linker_forward.1} parent=11 // pred_check_branch
          %293 = sbr.rel (%p291) target = $region24
        $region23: #{linker_forward.1} parent=11 // pred_region
          _
        $region24: #{linker_forward.1} parent=11 // pred_fallthru
          _
        // Predicated region
        $region25: #{linker_forward.1} parent=11 // pred_check
          %p294 = pneg %p181
        $region26: #{linker_forward.1} parent=11 // pred_check_branch
          %296 = sbr.rel (%p294) target = $region28
        $region27: #{linker_forward.1} parent=11 // pred_region
          _
        $region28: #{linker_forward.1} parent=11 // pred_fallthru
          _
        // Predicated region
        $region29: #{linker_forward.1} parent=11 // pred_check
          %p297 = pneg %p202
        $region30: #{linker_forward.1} parent=11 // pred_check_branch
          %299 = sbr.rel (%p297) target = $region32
        $region31: #{linker_forward.1} parent=11 // pred_region
          _
        $region32: #{linker_forward.1} parent=11 // pred_fallthru
          _
        // Predicated region
        $region33: #{linker_forward.1} parent=11 // pred_check
          %p300 = pneg %p223
        $region34: #{linker_forward.1} parent=11 // pred_check_branch
          %302 = sbr.rel (%p300) target = $region36
        $region35: #{linker_forward.1} parent=11 // pred_region
          _
        $region36: #{linker_forward.1} parent=11 // pred_fallthru
          _
        // Predicated region
        $region37: #{linker_forward.1} parent=11 // pred_check
          %p303 = pneg %p244
        $region38: #{linker_forward.1} parent=11 // pred_check_branch
          %305 = sbr.rel (%p303) target = $region40
        $region39: #{linker_forward.1} parent=11 // pred_region
          _
        $region40: #{linker_forward.1} parent=11 // pred_fallthru
          _
      $region12: #{linker_forward.1} parent=5 // pred_fallthru
        _
      %p306 = scmp.lt.s32.totalorder %s19, 2
      // Predicated region
      $region41: #{linker_forward.1} parent=5 // pred_check
        %p307 = pneg %p306
      $region42: #{linker_forward.1} parent=5 // pred_check_branch
        %309 = sbr.rel (%p307) target = $region44
      $region43: #{linker_forward.1} parent=5 // pred_region
        // Predicated region
        $region45: #{linker_forward.1} parent=43 // pred_check
          %p310 = pneg %p39
        $region46: #{linker_forward.1} parent=43 // pred_check_branch
          %312 = sbr.rel (%p310) target = $region48
        $region47: #{linker_forward.1} parent=43 // pred_region
          %p313 = scmp.lt.s32.totalorder %s19, 1
          %s314 = scalar_select %p313, %s19, 1
          %s315 = smul.addr %s314, 2
          %s316 = smul.addr %s315, 8
          %s317 = scalar_lea.vmem %s0, %s316
        $region48: #{linker_forward.1} parent=43 // pred_fallthru
          _
        // Predicated region
        $region49: #{linker_forward.1} parent=43 // pred_check
          %p318 = pneg %p65
        $region50: #{linker_forward.1} parent=43 // pred_check_branch
          %320 = sbr.rel (%p318) target = $region52
        $region51: #{linker_forward.1} parent=43 // pred_region
          %p321 = scmp.lt.s32.totalorder %s19, 1
          %s322 = scalar_select %p321, %s19, 1
          %s323 = scalar_lea.vmem %s1, %s322
        $region52: #{linker_forward.1} parent=43 // pred_fallthru
          _
        // Predicated region
        $region53: #{linker_forward.1} parent=43 // pred_check
          %p324 = pneg %p91
        $region54: #{linker_forward.1} parent=43 // pred_check_branch
          %326 = sbr.rel (%p324) target = $region56
        $region55: #{linker_forward.1} parent=43 // pred_region
          %p327 = scmp.lt.s32.totalorder %s19, 1
          %s328 = scalar_select %p327, %s19, 1
          %s329 = smul.addr %s328, 8
          %s330 = scalar_lea.vmem %s2, %s329
        $region56: #{linker_forward.1} parent=43 // pred_fallthru
          _
      $region44: #{linker_forward.1} parent=5 // pred_fallthru
        _
      %p331 = scmp.le.s32.totalorder 1, %s19
      %p332 = scmp.lt.s32.totalorder %s19, 3
      %p333 = pnand %p331, %p332
      %p334 = pneg %p333
      // Predicated region
      $region57: #{linker_forward.1} parent=5 // pred_check
        _
      $region58: #{linker_forward.1} parent=5 // pred_check_branch
        %336 = sbr.rel (%p333) target = $region60
      $region59: #{linker_forward.1} parent=5 // pred_region
        %s337 = ssub.s32 %s19, 1
        %p338 = scmp.lt.s32.totalorder %s24, 1
        %s339 = scalar_select %p338, %s24, 1
        %s340 = smul.addr %s339, 2
        %s341 = smul.addr %s340, 8
        %s342 = scalar_lea.vmem %s0, %s341
        %p343 = pneg %p45
        %p344 = pneg %p42
        %p345 = scmp.lt.s32.totalorder %s24, 1
        %s346 = scalar_select %p345, %s24, 1
        %s347 = scalar_lea.vmem %s1, %s346
        %p348 = pneg %p71
        %p349 = pneg %p68
        %p350 = scmp.lt.s32.totalorder %s24, 1
        %s351 = scalar_select %p350, %s24, 1
        %s352 = smul.addr %s351, 8
        %s353 = scalar_lea.vmem %s2, %s352
        %p354 = pneg %p97
        %p355 = pneg %p94
        %p356 = pneg %p118
        %p357 = pneg %p115
        %p358 = pneg %p139
        %p359 = pneg %p136
        %p360 = pneg %p160
        %p361 = pneg %p157
        %p362 = pneg %p181
        %p363 = pneg %p178
        %p364 = pneg %p202
        %p365 = pneg %p199
        %p366 = pneg %p223
        %p367 = pneg %p220
        %p368 = pneg %p244
        %p369 = pneg %p241
        %p370 = pneg %p270
        %p371 = pneg %p267
        %s372 = sand.u32 %s257, 1
        %s373 = scalar_lea.sflag [#allocation3], %s372
        %s374 = sand.u32 %s257, 1
        %s375 = smul.addr %s374, 8
        %s376 = scalar_lea.vmem [#allocation2], %s375
        %p377 = scmp.lt.s32.totalorder %s24, 1
        %s378 = scalar_select %p377, %s24, 1
        %s379 = smul.addr %s378, 2
        %s380 = smul.addr %s379, 8
        %s381 = scalar_lea.vmem %s0, %s380
        %p382 = scmp.lt.s32.totalorder %s24, 1
        %s383 = scalar_select %p382, %s24, 1
        %s384 = scalar_lea.vmem %s1, %s383
        %p385 = scmp.lt.s32.totalorder %s24, 1
        %s386 = scalar_select %p385, %s24, 1
        %s387 = smul.addr %s386, 8
        %s388 = scalar_lea.vmem %s2, %s387
        %v389 = vld [vmem:[%s381] sm:$0xff]
        %v390 = vld [vmem:[%s381 + $0x8] sm:$0xff]
        %v391 = vld [vmem:[%s384] sm:$0x1]
        %v392 = vld [vmem:[%s3] sm:$0xff]
        %v393 = vld [vmem:[%s3 + $0x8] sm:$0xf]
        %v394 = vld [vmem:[%s4] sm:$0x1]
        %v396 = vlaneseq
        %v397 = vshrl.u32 %v396, 7
        %v398 = vsub.s32 0, %v397
        %v399 = vrot.slane %v394, %v398
        %vm401 = vcmask 97280
        %v403 = vsel %vm401, %v389, 0
        %v406 = vsel %vm401, %v390, 0
        %vm408 = vcmask 1043456
        %v410 = vsel %vm408, %v393, 0
        %412 = vmatprep.subr.mxu0 0.0
        %413 = vmatpush1.msra.mxu0 0.0
        %414 = vmatprep.subr.mxu0 0.0
        %415 = vmatpush1.msra.mxu0 0.0
        %416 = vmatprep.subr.mxu0 0.0
        %417 = vmatpush1.msra.mxu0 0.0
        %418 = vmatprep.subr.mxu0 0.0
        %419 = vmatpush1.msra.mxu0 0.0
        %420 = vmatprep.subr.mxu0 0.0
        %421 = vmatpush1.msra.mxu0 0.0
        %422 = vmatprep.subr.mxu0 0.0
        %423 = vmatpush1.msra.mxu0 0.0
        %424 = vmatprep.subr.mxu0 0.0
        %425 = vmatpush1.msra.mxu0 0.0
        %426 = vmatprep.subr.mxu0 0.0
        %427 = vmatpush1.msra.mxu0 0.0
        %428 = vmatprep.subr.mxu0 0.0
        %429 = vmatpush1.msra.mxu0 0.0
        %430 = vmatprep.subr.mxu0 0.0
        %431 = vmatpush1.msra.mxu0 0.0
        %432 = vmatprep.subr.mxu0 0.0
        %433 = vmatpush1.msra.mxu0 0.0
        %434 = vmatprep.subr.mxu0 0.0
        %435 = vmatpush1.msra.mxu0 0.0
        %436 = vmatprep.subr.mxu0 0.0
        %437 = vmatpush1.msra.mxu0 0.0
        %438 = vmatprep.subr.mxu0 0.0
        %439 = vmatpush1.msra.mxu0 0.0
        %440 = vmatprep.subr.mxu0 0.0
        %441 = vmatpush1.msra.mxu0 %v410
        %442 = vmatprep.subr.mxu0 0.0
        %443 = vmatpush1.msra.mxu0 %v392
        %444 = vmatprep.subr.mxu0 0.0
        %445 = vmatpush2.msra.mxu0 0.0
        %446 = vmatprep.subr.mxu0 0.0
        %447 = vmatpush2.msra.mxu0 0.0
        %448 = vmatprep.subr.mxu0 0.0
        %449 = vmatpush2.msra.mxu0 0.0
        %450 = vmatprep.subr.mxu0 0.0
        %451 = vmatpush2.msra.mxu0 0.0
        %452 = vmatprep.subr.mxu0 0.0
        %453 = vmatpush2.msra.mxu0 0.0
        %454 = vmatprep.subr.mxu0 0.0
        %455 = vmatpush2.msra.mxu0 0.0
        %456 = vmatprep.subr.mxu0 0.0
        %457 = vmatpush2.msra.mxu0 0.0
        %458 = vmatprep.subr.mxu0 0.0
        %459 = vmatpush2.msra.mxu0 0.0
        %460 = vmatprep.subr.mxu0 0.0
        %461 = vmatpush2.msra.mxu0 0.0
        %462 = vmatprep.subr.mxu0 0.0
        %463 = vmatpush2.msra.mxu0 0.0
        %464 = vmatprep.subr.mxu0 0.0
        %465 = vmatpush2.msra.mxu0 0.0
        %466 = vmatprep.subr.mxu0 0.0
        %467 = vmatpush2.msra.mxu0 0.0
        %468 = vmatprep.subr.mxu0 0.0
        %469 = vmatpush2.msra.mxu0 0.0
        %470 = vmatprep.subr.mxu0 0.0
        %471 = vmatpush2.msra.mxu0 0.0
        %472 = vmatprep.subr.mxu0 0.0
        %473 = vmatpush2.msra.mxu0 0.0
        %474 = vmatprep.subr.mxu0 0.0
        %475 = vmatpush2.msra.mxu0 0.0
        %476 = vmatprep.mubr.f32.mxu0 0.0
        %477 = vmatmul.mubr.f32.gmra.mxu0 %v403
        %v478 = vpop.f32.mrf.mxu0
        %v479 = vadd.f32 %v399, %v478
        %v480 = vpop.f32.mrf.mxu0
        %481 = vmatprep.mubr.f32.mxu0 0.0
        %482 = vmatmul.mubr.f32.gmra.mxu0 %v406
        %v483 = vpop.f32.mrf.mxu0
        %v484 = vadd.f32 %v399, %v483
        %v485 = vpop.f32.mrf.mxu0
        %486 = vdwg.mxu0
        %v487 = vld [vmem:[%s9] sm:$0xff]
        %v488 = vld [vmem:[%s9 + $0x8] sm:$0xff]
        %v489 = vld [vmem:[%s5] sm:$0xff]
        %v490 = vld [vmem:[%s5 + $0x8] sm:$0xff]
        %v491 = vld [vmem:[%s5 + $0x10] sm:$0xff]
        %v492 = vld [vmem:[%s5 + $0x18] sm:$0xff]
        %v493 = vld [vmem:[%s5 + $0x20] sm:$0xff]
        %v494 = vld [vmem:[%s5 + $0x28] sm:$0xff]
        %v495 = vld [vmem:[%s5 + $0x30] sm:$0xff]
        %v496 = vld [vmem:[%s5 + $0x38] sm:$0xff]
        %v497 = vld [vmem:[%s5 + $0x40] sm:$0xff]
        %v498 = vld [vmem:[%s5 + $0x48] sm:$0xff]
        %v499 = vld [vmem:[%s5 + $0x50] sm:$0xff]
        %v500 = vld [vmem:[%s5 + $0x58] sm:$0xff]
        %v501 = vld [vmem:[%s5 + $0x60] sm:$0xff]
        %v502 = vld [vmem:[%s5 + $0x68] sm:$0xff]
        %v503 = vld [vmem:[%s5 + $0x70] sm:$0xff]
        %v504 = vld [vmem:[%s5 + $0x78] sm:$0xff]
        %v505 = vlaneseq
        %v506 = vshrl.u32 %v505, 7
        %v507 = vsub.s32 0, %v506
        %v508 = vrot.slane %v487, %v507
        %v509 = vlaneseq
        %v510 = vshrl.u32 %v509, 7
        %v511 = vsub.s32 0, %v510
        %v512 = vrot.slane %v488, %v511
        %vm513 = vcmask 523264
        %v515 = vsel %vm513, %v479, 0
        %v518 = vsel %vm513, %v484, 0
        %520 = vmatprep.subr.mxu0 0.0
        %521 = vmatpush1.msra.mxu0 0.0
        %522 = vmatprep.subr.mxu0 0.0
        %523 = vmatpush1.msra.mxu0 0.0
        %524 = vmatprep.subr.mxu0 0.0
        %525 = vmatpush1.msra.mxu0 0.0
        %526 = vmatprep.subr.mxu0 0.0
        %527 = vmatpush1.msra.mxu0 0.0
        %528 = vmatprep.subr.mxu0 0.0
        %529 = vmatpush1.msra.mxu0 0.0
        %530 = vmatprep.subr.mxu0 0.0
        %531 = vmatpush1.msra.mxu0 0.0
        %532 = vmatprep.subr.mxu0 0.0
        %533 = vmatpush1.msra.mxu0 0.0
        %534 = vmatprep.subr.mxu0 0.0
        %535 = vmatpush1.msra.mxu0 0.0
        %536 = vmatprep.subr.mxu0 %v504
        %537 = vmatpush1.msra.mxu0 %v503
        %538 = vmatprep.subr.mxu0 %v502
        %539 = vmatpush1.msra.mxu0 %v501
        %540 = vmatprep.subr.mxu0 %v500
        %541 = vmatpush1.msra.mxu0 %v499
        %542 = vmatprep.subr.mxu0 %v498
        %543 = vmatpush1.msra.mxu0 %v497
        %544 = vmatprep.subr.mxu0 %v496
        %545 = vmatpush1.msra.mxu0 %v495
        %546 = vmatprep.subr.mxu0 %v494
        %547 = vmatpush1.msra.mxu0 %v493
        %548 = vmatprep.subr.mxu0 %v492
        %549 = vmatpush1.msra.mxu0 %v491
        %550 = vmatprep.subr.mxu0 %v490
        %551 = vmatpush1.msra.mxu0 %v489
        %552 = vmatprep.subr.mxu0 0.0
        %553 = vmatpush2.msra.mxu0 0.0
        %554 = vmatprep.subr.mxu0 0.0
        %555 = vmatpush2.msra.mxu0 0.0
        %556 = vmatprep.subr.mxu0 0.0
        %557 = vmatpush2.msra.mxu0 0.0
        %558 = vmatprep.subr.mxu0 0.0
        %559 = vmatpush2.msra.mxu0 0.0
        %560 = vmatprep.subr.mxu0 0.0
        %561 = vmatpush2.msra.mxu0 0.0
        %562 = vmatprep.subr.mxu0 0.0
        %563 = vmatpush2.msra.mxu0 0.0
        %564 = vmatprep.subr.mxu0 0.0
        %565 = vmatpush2.msra.mxu0 0.0
        %566 = vmatprep.subr.mxu0 0.0
        %567 = vmatpush2.msra.mxu0 0.0
        %568 = vmatprep.subr.mxu0 0.0
        %569 = vmatpush2.msra.mxu0 0.0
        %570 = vmatprep.subr.mxu0 0.0
        %571 = vmatpush2.msra.mxu0 0.0
        %572 = vmatprep.subr.mxu0 0.0
        %573 = vmatpush2.msra.mxu0 0.0
        %574 = vmatprep.subr.mxu0 0.0
        %575 = vmatpush2.msra.mxu0 0.0
        %576 = vmatprep.subr.mxu0 0.0
        %577 = vmatpush2.msra.mxu0 0.0
        %578 = vmatprep.subr.mxu0 0.0
        %579 = vmatpush2.msra.mxu0 0.0
        %580 = vmatprep.subr.mxu0 0.0
        %581 = vmatpush2.msra.mxu0 0.0
        %582 = vmatprep.subr.mxu0 0.0
        %583 = vmatpush2.msra.mxu0 0.0
        %584 = vmatprep.mubr.f32.mxu0 0.0
        %585 = vmatmul.mubr.f32.gmra.mxu0 %v515
        %v586 = vpop.f32.mrf.mxu0
        %v587 = vadd.f32 %v508, %v586
        %v588 = vpop.f32.mrf.mxu0
        %v589 = vadd.f32 %v512, %v588
        %590 = vmatprep.mubr.f32.mxu0 0.0
        %591 = vmatmul.mubr.f32.gmra.mxu0 %v518
        %v592 = vpop.f32.mrf.mxu0
        %v593 = vadd.f32 %v508, %v592
        %v594 = vpop.f32.mrf.mxu0
        %v595 = vadd.f32 %v512, %v594
        %596 = vdwg.mxu0
        %v597 = vmul.f32 %v587, 0.25
        %v598 = vmul.f32 %v593, 0.25
        %v600 = vlaneseq
        %v601 = vshrl.u32 %v600, 7
        %v602 = vsub.s32 0, %v601
        %v603 = vrot.slane %v391, %v602
        %606 = vrot.lane.b32.xlu0 %v587, 64
        %v607 = vpop.permute.xlu0 %606
        %vm608 = vcmask 130048
        %v610 = vsel %vm608, %v597, 0
        %v612 = vsel %vm608, %v607, 0
        %614 = vmatprep.subr.mxu0 0.0
        %615 = vmatpush1.xpose.msra.mxu0 0.0
        %616 = vmatprep.subr.mxu0 0.0
        %617 = vmatpush1.xpose.msra.mxu0 0.0
        %618 = vmatprep.subr.mxu0 0.0
        %619 = vmatpush1.xpose.msra.mxu0 0.0
        %620 = vmatprep.subr.mxu0 0.0
        %621 = vmatpush1.xpose.msra.mxu0 0.0
        %622 = vmatprep.subr.mxu0 0.0
        %623 = vmatpush1.xpose.msra.mxu0 0.0
        %624 = vmatprep.subr.mxu0 0.0
        %625 = vmatpush1.xpose.msra.mxu0 0.0
        %626 = vmatprep.subr.mxu0 0.0
        %627 = vmatpush1.xpose.msra.mxu0 0.0
        %628 = vmatprep.subr.mxu0 0.0
        %629 = vmatpush1.xpose.msra.mxu0 0.0
        %630 = vmatprep.subr.mxu0 0.0
        %631 = vmatpush1.xpose.msra.mxu0 0.0
        %632 = vmatprep.subr.mxu0 0.0
        %633 = vmatpush1.xpose.msra.mxu0 0.0
        %634 = vmatprep.subr.mxu0 0.0
        %635 = vmatpush1.xpose.msra.mxu0 0.0
        %636 = vmatprep.subr.mxu0 0.0
        %637 = vmatpush1.xpose.msra.mxu0 0.0
        %638 = vmatprep.subr.mxu0 0.0
        %639 = vmatpush1.xpose.msra.mxu0 0.0
        %640 = vmatprep.subr.mxu0 0.0
        %641 = vmatpush1.xpose.msra.mxu0 0.0
        %642 = vmatprep.subr.mxu0 0.0
        %643 = vmatpush1.xpose.msra.mxu0 0.0
        %644 = vmatprep.subr.mxu0 0.0
        %645 = vmatpush1.xpose.msra.mxu0 %v612
        %646 = vmatprep.subr.mxu0 0.0
        %647 = vmatpush2.xpose.msra.mxu0 0.0
        %648 = vmatprep.subr.mxu0 0.0
        %649 = vmatpush2.xpose.msra.mxu0 0.0
        %650 = vmatprep.subr.mxu0 0.0
        %651 = vmatpush2.xpose.msra.mxu0 0.0
        %652 = vmatprep.subr.mxu0 0.0
        %653 = vmatpush2.xpose.msra.mxu0 0.0
        %654 = vmatprep.subr.mxu0 0.0
        %655 = vmatpush2.xpose.msra.mxu0 0.0
        %656 = vmatprep.subr.mxu0 0.0
        %657 = vmatpush2.xpose.msra.mxu0 0.0
        %658 = vmatprep.subr.mxu0 0.0
        %659 = vmatpush2.xpose.msra.mxu0 0.0
        %660 = vmatprep.subr.mxu0 0.0
        %661 = vmatpush2.xpose.msra.mxu0 0.0
        %662 = vmatprep.subr.mxu0 0.0
        %663 = vmatpush2.xpose.msra.mxu0 0.0
        %664 = vmatprep.subr.mxu0 0.0
        %665 = vmatpush2.xpose.msra.mxu0 0.0
        %666 = vmatprep.subr.mxu0 0.0
        %667 = vmatpush2.xpose.msra.mxu0 0.0
        %668 = vmatprep.subr.mxu0 0.0
        %669 = vmatpush2.xpose.msra.mxu0 0.0
        %670 = vmatprep.subr.mxu0 0.0
        %671 = vmatpush2.xpose.msra.mxu0 0.0
        %672 = vmatprep.subr.mxu0 0.0
        %673 = vmatpush2.xpose.msra.mxu0 0.0
        %674 = vmatprep.subr.mxu0 0.0
        %675 = vmatpush2.xpose.msra.mxu0 0.0
        %676 = vmatprep.subr.mxu0 0.0
        %677 = vmatpush2.xpose.msra.mxu0 0.0
        %678 = vmatprep.mubr.f32.mxu0 0.0
        %679 = vmatmul.mubr.f32.gmra.mxu0 %v610
        %v680 = vpop.f32.mrf.mxu0
        %v681 = vadd.f32 %v603, %v680
        %v682 = vpop.f32.mrf.mxu0
        %683 = vdwg.mxu0
        %685 = vrot.lane.b32.xlu0 %v593, 64
        %v686 = vpop.permute.xlu0 %685
        %v688 = vsel %vm608, %v598, 0
        %v690 = vsel %vm608, %v686, 0
        %692 = vmatprep.subr.mxu0 0.0
        %693 = vmatpush1.xpose.msra.mxu0 0.0
        %694 = vmatprep.subr.mxu0 0.0
        %695 = vmatpush1.xpose.msra.mxu0 0.0
        %696 = vmatprep.subr.mxu0 0.0
        %697 = vmatpush1.xpose.msra.mxu0 0.0
        %698 = vmatprep.subr.mxu0 0.0
        %699 = vmatpush1.xpose.msra.mxu0 0.0
        %700 = vmatprep.subr.mxu0 0.0
        %701 = vmatpush1.xpose.msra.mxu0 0.0
        %702 = vmatprep.subr.mxu0 0.0
        %703 = vmatpush1.xpose.msra.mxu0 0.0
        %704 = vmatprep.subr.mxu0 0.0
        %705 = vmatpush1.xpose.msra.mxu0 0.0
        %706 = vmatprep.subr.mxu0 0.0
        %707 = vmatpush1.xpose.msra.mxu0 0.0
        %708 = vmatprep.subr.mxu0 0.0
        %709 = vmatpush1.xpose.msra.mxu0 0.0
        %710 = vmatprep.subr.mxu0 0.0
        %711 = vmatpush1.xpose.msra.mxu0 0.0
        %712 = vmatprep.subr.mxu0 0.0
        %713 = vmatpush1.xpose.msra.mxu0 0.0
        %714 = vmatprep.subr.mxu0 0.0
        %715 = vmatpush1.xpose.msra.mxu0 0.0
        %716 = vmatprep.subr.mxu0 0.0
        %717 = vmatpush1.xpose.msra.mxu0 0.0
        %718 = vmatprep.subr.mxu0 0.0
        %719 = vmatpush1.xpose.msra.mxu0 0.0
        %720 = vmatprep.subr.mxu0 0.0
        %721 = vmatpush1.xpose.msra.mxu0 0.0
        %722 = vmatprep.subr.mxu0 0.0
        %723 = vmatpush1.xpose.msra.mxu0 %v690
        %724 = vmatprep.subr.mxu0 0.0
        %725 = vmatpush2.xpose.msra.mxu0 0.0
        %726 = vmatprep.subr.mxu0 0.0
        %727 = vmatpush2.xpose.msra.mxu0 0.0
        %728 = vmatprep.subr.mxu0 0.0
        %729 = vmatpush2.xpose.msra.mxu0 0.0
        %730 = vmatprep.subr.mxu0 0.0
        %731 = vmatpush2.xpose.msra.mxu0 0.0
        %732 = vmatprep.subr.mxu0 0.0
        %733 = vmatpush2.xpose.msra.mxu0 0.0
        %734 = vmatprep.subr.mxu0 0.0
        %735 = vmatpush2.xpose.msra.mxu0 0.0
        %736 = vmatprep.subr.mxu0 0.0
        %737 = vmatpush2.xpose.msra.mxu0 0.0
        %738 = vmatprep.subr.mxu0 0.0
        %739 = vmatpush2.xpose.msra.mxu0 0.0
        %740 = vmatprep.subr.mxu0 0.0
        %741 = vmatpush2.xpose.msra.mxu0 0.0
        %742 = vmatprep.subr.mxu0 0.0
        %743 = vmatpush2.xpose.msra.mxu0 0.0
        %744 = vmatprep.subr.mxu0 0.0
        %745 = vmatpush2.xpose.msra.mxu0 0.0
        %746 = vmatprep.subr.mxu0 0.0
        %747 = vmatpush2.xpose.msra.mxu0 0.0
        %748 = vmatprep.subr.mxu0 0.0
        %749 = vmatpush2.xpose.msra.mxu0 0.0
        %750 = vmatprep.subr.mxu0 0.0
        %751 = vmatpush2.xpose.msra.mxu0 0.0
        %752 = vmatprep.subr.mxu0 0.0
        %753 = vmatpush2.xpose.msra.mxu0 0.0
        %754 = vmatprep.subr.mxu0 0.0
        %755 = vmatpush2.xpose.msra.mxu0 0.0
        %756 = vmatprep.mubr.f32.mxu0 0.0
        %757 = vmatmul.mubr.f32.gmra.mxu0 %v688
        %v758 = vpop.f32.mrf.mxu0
        %v759 = vadd.f32 %v603, %v758
        %v760 = vpop.f32.mrf.mxu0
        %761 = vdwg.mxu0
        %vm762 = vcmask 64512
        %v763 = vsel %vm762, %v681, -inf
        %764 = vmax.xlane.f32.xlu0 %v763
        %v765 = vpop.xlane.xlu0 %764
        %v766 = vsel %vm762, %v759, -inf
        %767 = vmax.xlane.f32.xlu0 %v766
        %v768 = vpop.xlane.xlu0 %767
        %v769 = vsub.f32 %v681, %v765
        %v770 = vsub.f32 %v759, %v768
        %v771 = vmul.f32 %v769, 1.442695
        %v772 = vpow.pop %v771
        %v773 = vmul.f32 %v770, 1.442695
        %v774 = vpow.pop %v773
        %v775 = vsel %vm762, %v772, 0.0
        %776 = vadd.xlane.f32.xlu0 %v775
        %v777 = vpop.xlane.xlu0 %776
        %v778 = vsel %vm762, %v774, 0.0
        %779 = vadd.xlane.f32.xlu0 %v778
        %v780 = vpop.xlane.xlu0 %779
        %v782 = vsel %vm762, %v772, 0
        %784 = vmatprep.subr.mxu0 0.0
        %785 = vmatpush1.msra.mxu0 0.0
        %786 = vmatprep.subr.mxu0 0.0
        %787 = vmatpush1.msra.mxu0 0.0
        %788 = vmatprep.subr.mxu0 0.0
        %789 = vmatpush1.msra.mxu0 0.0
        %790 = vmatprep.subr.mxu0 0.0
        %791 = vmatpush1.msra.mxu0 0.0
        %792 = vmatprep.subr.mxu0 0.0
        %793 = vmatpush1.msra.mxu0 0.0
        %794 = vmatprep.subr.mxu0 0.0
        %795 = vmatpush1.msra.mxu0 0.0
        %796 = vmatprep.subr.mxu0 0.0
        %797 = vmatpush1.msra.mxu0 0.0
        %798 = vmatprep.subr.mxu0 0.0
        %799 = vmatpush1.msra.mxu0 0.0
        %800 = vmatprep.subr.mxu0 0.0
        %801 = vmatpush1.msra.mxu0 0.0
        %802 = vmatprep.subr.mxu0 0.0
        %803 = vmatpush1.msra.mxu0 0.0
        %804 = vmatprep.subr.mxu0 0.0
        %805 = vmatpush1.msra.mxu0 0.0
        %806 = vmatprep.subr.mxu0 0.0
        %807 = vmatpush1.msra.mxu0 0.0
        %808 = vmatprep.subr.mxu0 0.0
        %809 = vmatpush1.msra.mxu0 0.0
        %810 = vmatprep.subr.mxu0 0.0
        %811 = vmatpush1.msra.mxu0 0.0
        %812 = vmatprep.subr.mxu0 0.0
        %813 = vmatpush1.msra.mxu0 0.0
        %814 = vmatprep.subr.mxu0 0.0
        %815 = vmatpush1.msra.mxu0 %v589
        %816 = vmatprep.subr.mxu0 0.0
        %817 = vmatpush2.msra.mxu0 0.0
        %818 = vmatprep.subr.mxu0 0.0
        %819 = vmatpush2.msra.mxu0 0.0
        %820 = vmatprep.subr.mxu0 0.0
        %821 = vmatpush2.msra.mxu0 0.0
        %822 = vmatprep.subr.mxu0 0.0
        %823 = vmatpush2.msra.mxu0 0.0
        %824 = vmatprep.subr.mxu0 0.0
        %825 = vmatpush2.msra.mxu0 0.0
        %826 = vmatprep.subr.mxu0 0.0
        %827 = vmatpush2.msra.mxu0 0.0
        %828 = vmatprep.subr.mxu0 0.0
        %829 = vmatpush2.msra.mxu0 0.0
        %830 = vmatprep.subr.mxu0 0.0
        %831 = vmatpush2.msra.mxu0 0.0
        %832 = vmatprep.subr.mxu0 0.0
        %833 = vmatpush2.msra.mxu0 0.0
        %834 = vmatprep.subr.mxu0 0.0
        %835 = vmatpush2.msra.mxu0 0.0
        %836 = vmatprep.subr.mxu0 0.0
        %837 = vmatpush2.msra.mxu0 0.0
        %838 = vmatprep.subr.mxu0 0.0
        %839 = vmatpush2.msra.mxu0 0.0
        %840 = vmatprep.subr.mxu0 0.0
        %841 = vmatpush2.msra.mxu0 0.0
        %842 = vmatprep.subr.mxu0 0.0
        %843 = vmatpush2.msra.mxu0 0.0
        %844 = vmatprep.subr.mxu0 0.0
        %845 = vmatpush2.msra.mxu0 0.0
        %846 = vmatprep.subr.mxu0 0.0
        %847 = vmatpush2.msra.mxu0 0.0
        %848 = vmatprep.mubr.f32.mxu0 0.0
        %849 = vmatmul.mubr.f32.gmra.mxu0 %v782
        %v850 = vpop.f32.mrf.mxu0
        %v851 = vadd.f32 0.0, %v850
        %v852 = vpop.f32.mrf.mxu0
        %853 = vdwg.mxu0
        %v855 = vsel %vm762, %v774, 0
        %857 = vmatprep.subr.mxu0 0.0
        %858 = vmatpush1.msra.mxu0 0.0
        %859 = vmatprep.subr.mxu0 0.0
        %860 = vmatpush1.msra.mxu0 0.0
        %861 = vmatprep.subr.mxu0 0.0
        %862 = vmatpush1.msra.mxu0 0.0
        %863 = vmatprep.subr.mxu0 0.0
        %864 = vmatpush1.msra.mxu0 0.0
        %865 = vmatprep.subr.mxu0 0.0
        %866 = vmatpush1.msra.mxu0 0.0
        %867 = vmatprep.subr.mxu0 0.0
        %868 = vmatpush1.msra.mxu0 0.0
        %869 = vmatprep.subr.mxu0 0.0
        %870 = vmatpush1.msra.mxu0 0.0
        %871 = vmatprep.subr.mxu0 0.0
        %872 = vmatpush1.msra.mxu0 0.0
        %873 = vmatprep.subr.mxu0 0.0
        %874 = vmatpush1.msra.mxu0 0.0
        %875 = vmatprep.subr.mxu0 0.0
        %876 = vmatpush1.msra.mxu0 0.0
        %877 = vmatprep.subr.mxu0 0.0
        %878 = vmatpush1.msra.mxu0 0.0
        %879 = vmatprep.subr.mxu0 0.0
        %880 = vmatpush1.msra.mxu0 0.0
        %881 = vmatprep.subr.mxu0 0.0
        %882 = vmatpush1.msra.mxu0 0.0
        %883 = vmatprep.subr.mxu0 0.0
        %884 = vmatpush1.msra.mxu0 0.0
        %885 = vmatprep.subr.mxu0 0.0
        %886 = vmatpush1.msra.mxu0 0.0
        %887 = vmatprep.subr.mxu0 0.0
        %888 = vmatpush1.msra.mxu0 %v595
        %889 = vmatprep.subr.mxu0 0.0
        %890 = vmatpush2.msra.mxu0 0.0
        %891 = vmatprep.subr.mxu0 0.0
        %892 = vmatpush2.msra.mxu0 0.0
        %893 = vmatprep.subr.mxu0 0.0
        %894 = vmatpush2.msra.mxu0 0.0
        %895 = vmatprep.subr.mxu0 0.0
        %896 = vmatpush2.msra.mxu0 0.0
        %897 = vmatprep.subr.mxu0 0.0
        %898 = vmatpush2.msra.mxu0 0.0
        %899 = vmatprep.subr.mxu0 0.0
        %900 = vmatpush2.msra.mxu0 0.0
        %901 = vmatprep.subr.mxu0 0.0
        %902 = vmatpush2.msra.mxu0 0.0
        %903 = vmatprep.subr.mxu0 0.0
        %904 = vmatpush2.msra.mxu0 0.0
        %905 = vmatprep.subr.mxu0 0.0
        %906 = vmatpush2.msra.mxu0 0.0
        %907 = vmatprep.subr.mxu0 0.0
        %908 = vmatpush2.msra.mxu0 0.0
        %909 = vmatprep.subr.mxu0 0.0
        %910 = vmatpush2.msra.mxu0 0.0
        %911 = vmatprep.subr.mxu0 0.0
        %912 = vmatpush2.msra.mxu0 0.0
        %913 = vmatprep.subr.mxu0 0.0
        %914 = vmatpush2.msra.mxu0 0.0
        %915 = vmatprep.subr.mxu0 0.0
        %916 = vmatpush2.msra.mxu0 0.0
        %917 = vmatprep.subr.mxu0 0.0
        %918 = vmatpush2.msra.mxu0 0.0
        %919 = vmatprep.subr.mxu0 0.0
        %920 = vmatpush2.msra.mxu0 0.0
        %921 = vmatprep.mubr.f32.mxu0 0.0
        %922 = vmatmul.mubr.f32.gmra.mxu0 %v855
        %v923 = vpop.f32.mrf.mxu0
        %v924 = vadd.f32 0.0, %v923
        %v925 = vpop.f32.mrf.mxu0
        %926 = vdwg.mxu0
        %v927 = vrcp.pop %v777
        %v928 = vrcp.pop %v780
        %v929 = vmul.f32 %v851, %v927
        %v930 = vmul.f32 %v924, %v928
        %931 = vrot.lane.b32.xlu0 %v597, 112
        %v932 = vpop.permute.xlu0 %931
        %933 = vrot.lane.b32.xlu0 %v587, 48
        %v934 = vpop.permute.xlu0 %933
        %v935 = vsel %vm608, %v932, 0
        %v937 = vsel %vm608, %v934, 0
        %939 = vmatprep.subr.mxu0 0.0
        %940 = vmatpush1.xpose.msra.mxu0 0.0
        %941 = vmatprep.subr.mxu0 0.0
        %942 = vmatpush1.xpose.msra.mxu0 0.0
        %943 = vmatprep.subr.mxu0 0.0
        %944 = vmatpush1.xpose.msra.mxu0 0.0
        %945 = vmatprep.subr.mxu0 0.0
        %946 = vmatpush1.xpose.msra.mxu0 0.0
        %947 = vmatprep.subr.mxu0 0.0
        %948 = vmatpush1.xpose.msra.mxu0 0.0
        %949 = vmatprep.subr.mxu0 0.0
        %950 = vmatpush1.xpose.msra.mxu0 0.0
        %951 = vmatprep.subr.mxu0 0.0
        %952 = vmatpush1.xpose.msra.mxu0 0.0
        %953 = vmatprep.subr.mxu0 0.0
        %954 = vmatpush1.xpose.msra.mxu0 0.0
        %955 = vmatprep.subr.mxu0 0.0
        %956 = vmatpush1.xpose.msra.mxu0 0.0
        %957 = vmatprep.subr.mxu0 0.0
        %958 = vmatpush1.xpose.msra.mxu0 0.0
        %959 = vmatprep.subr.mxu0 0.0
        %960 = vmatpush1.xpose.msra.mxu0 0.0
        %961 = vmatprep.subr.mxu0 0.0
        %962 = vmatpush1.xpose.msra.mxu0 0.0
        %963 = vmatprep.subr.mxu0 0.0
        %964 = vmatpush1.xpose.msra.mxu0 0.0
        %965 = vmatprep.subr.mxu0 0.0
        %966 = vmatpush1.xpose.msra.mxu0 0.0
        %967 = vmatprep.subr.mxu0 0.0
        %968 = vmatpush1.xpose.msra.mxu0 0.0
        %969 = vmatprep.subr.mxu0 0.0
        %970 = vmatpush1.xpose.msra.mxu0 %v937
        %971 = vmatprep.subr.mxu0 0.0
        %972 = vmatpush2.xpose.msra.mxu0 0.0
        %973 = vmatprep.subr.mxu0 0.0
        %974 = vmatpush2.xpose.msra.mxu0 0.0
        %975 = vmatprep.subr.mxu0 0.0
        %976 = vmatpush2.xpose.msra.mxu0 0.0
        %977 = vmatprep.subr.mxu0 0.0
        %978 = vmatpush2.xpose.msra.mxu0 0.0
        %979 = vmatprep.subr.mxu0 0.0
        %980 = vmatpush2.xpose.msra.mxu0 0.0
        %981 = vmatprep.subr.mxu0 0.0
        %982 = vmatpush2.xpose.msra.mxu0 0.0
        %983 = vmatprep.subr.mxu0 0.0
        %984 = vmatpush2.xpose.msra.mxu0 0.0
        %985 = vmatprep.subr.mxu0 0.0
        %986 = vmatpush2.xpose.msra.mxu0 0.0
        %987 = vmatprep.subr.mxu0 0.0
        %988 = vmatpush2.xpose.msra.mxu0 0.0
        %989 = vmatprep.subr.mxu0 0.0
        %990 = vmatpush2.xpose.msra.mxu0 0.0
        %991 = vmatprep.subr.mxu0 0.0
        %992 = vmatpush2.xpose.msra.mxu0 0.0
        %993 = vmatprep.subr.mxu0 0.0
        %994 = vmatpush2.xpose.msra.mxu0 0.0
        %995 = vmatprep.subr.mxu0 0.0
        %996 = vmatpush2.xpose.msra.mxu0 0.0
        %997 = vmatprep.subr.mxu0 0.0
        %998 = vmatpush2.xpose.msra.mxu0 0.0
        %999 = vmatprep.subr.mxu0 0.0
        %1000 = vmatpush2.xpose.msra.mxu0 0.0
        %1001 = vmatprep.subr.mxu0 0.0
        %1002 = vmatpush2.xpose.msra.mxu0 0.0
        %1003 = vmatprep.mubr.f32.mxu0 0.0
        %1004 = vmatmul.mubr.f32.gmra.mxu0 %v935
        %v1005 = vpop.f32.mrf.mxu0
        %v1006 = vadd.f32 %v603, %v1005
        %v1007 = vpop.f32.mrf.mxu0
        %1008 = vdwg.mxu0
        %1009 = vrot.lane.b32.xlu0 %v598, 112
        %v1010 = vpop.permute.xlu0 %1009
        %1011 = vrot.lane.b32.xlu0 %v593, 48
        %v1012 = vpop.permute.xlu0 %1011
        %v1013 = vsel %vm608, %v1010, 0
        %v1015 = vsel %vm608, %v1012, 0
        %1017 = vmatprep.subr.mxu0 0.0
        %1018 = vmatpush1.xpose.msra.mxu0 0.0
        %1019 = vmatprep.subr.mxu0 0.0
        %1020 = vmatpush1.xpose.msra.mxu0 0.0
        %1021 = vmatprep.subr.mxu0 0.0
        %1022 = vmatpush1.xpose.msra.mxu0 0.0
        %1023 = vmatprep.subr.mxu0 0.0
        %1024 = vmatpush1.xpose.msra.mxu0 0.0
        %1025 = vmatprep.subr.mxu0 0.0
        %1026 = vmatpush1.xpose.msra.mxu0 0.0
        %1027 = vmatprep.subr.mxu0 0.0
        %1028 = vmatpush1.xpose.msra.mxu0 0.0
        %1029 = vmatprep.subr.mxu0 0.0
        %1030 = vmatpush1.xpose.msra.mxu0 0.0
        %1031 = vmatprep.subr.mxu0 0.0
        %1032 = vmatpush1.xpose.msra.mxu0 0.0
        %1033 = vmatprep.subr.mxu0 0.0
        %1034 = vmatpush1.xpose.msra.mxu0 0.0
        %1035 = vmatprep.subr.mxu0 0.0
        %1036 = vmatpush1.xpose.msra.mxu0 0.0
        %1037 = vmatprep.subr.mxu0 0.0
        %1038 = vmatpush1.xpose.msra.mxu0 0.0
        %1039 = vmatprep.subr.mxu0 0.0
        %1040 = vmatpush1.xpose.msra.mxu0 0.0
        %1041 = vmatprep.subr.mxu0 0.0
        %1042 = vmatpush1.xpose.msra.mxu0 0.0
        %1043 = vmatprep.subr.mxu0 0.0
        %1044 = vmatpush1.xpose.msra.mxu0 0.0
        %1045 = vmatprep.subr.mxu0 0.0
        %1046 = vmatpush1.xpose.msra.mxu0 0.0
        %1047 = vmatprep.subr.mxu0 0.0
        %1048 = vmatpush1.xpose.msra.mxu0 %v1015
        %1049 = vmatprep.subr.mxu0 0.0
        %1050 = vmatpush2.xpose.msra.mxu0 0.0
        %1051 = vmatprep.subr.mxu0 0.0
        %1052 = vmatpush2.xpose.msra.mxu0 0.0
        %1053 = vmatprep.subr.mxu0 0.0
        %1054 = vmatpush2.xpose.msra.mxu0 0.0
        %1055 = vmatprep.subr.mxu0 0.0
        %1056 = vmatpush2.xpose.msra.mxu0 0.0
        %1057 = vmatprep.subr.mxu0 0.0
        %1058 = vmatpush2.xpose.msra.mxu0 0.0
        %1059 = vmatprep.subr.mxu0 0.0
        %1060 = vmatpush2.xpose.msra.mxu0 0.0
        %1061 = vmatprep.subr.mxu0 0.0
        %1062 = vmatpush2.xpose.msra.mxu0 0.0
        %1063 = vmatprep.subr.mxu0 0.0
        %1064 = vmatpush2.xpose.msra.mxu0 0.0
        %1065 = vmatprep.subr.mxu0 0.0
        %1066 = vmatpush2.xpose.msra.mxu0 0.0
        %1067 = vmatprep.subr.mxu0 0.0
        %1068 = vmatpush2.xpose.msra.mxu0 0.0
        %1069 = vmatprep.subr.mxu0 0.0
        %1070 = vmatpush2.xpose.msra.mxu0 0.0
        %1071 = vmatprep.subr.mxu0 0.0
        %1072 = vmatpush2.xpose.msra.mxu0 0.0
        %1073 = vmatprep.subr.mxu0 0.0
        %1074 = vmatpush2.xpose.msra.mxu0 0.0
        %1075 = vmatprep.subr.mxu0 0.0
        %1076 = vmatpush2.xpose.msra.mxu0 0.0
        %1077 = vmatprep.subr.mxu0 0.0
        %1078 = vmatpush2.xpose.msra.mxu0 0.0
        %1079 = vmatprep.subr.mxu0 0.0
        %1080 = vmatpush2.xpose.msra.mxu0 0.0
        %1081 = vmatprep.mubr.f32.mxu0 0.0
        %1082 = vmatmul.mubr.f32.gmra.mxu0 %v1013
        %v1083 = vpop.f32.mrf.mxu0
        %v1084 = vadd.f32 %v603, %v1083
        %v1085 = vpop.f32.mrf.mxu0
        %1086 = vdwg.mxu0
        %v1087 = vsel %vm762, %v1006, -inf
        %1088 = vmax.xlane.f32.xlu0 %v1087
        %v1089 = vpop.xlane.xlu0 %1088
        %v1090 = vsel %vm762, %v1084, -inf
        %1091 = vmax.xlane.f32.xlu0 %v1090
        %v1092 = vpop.xlane.xlu0 %1091
        %v1093 = vsub.f32 %v1006, %v1089
        %v1094 = vsub.f32 %v1084, %v1092
        %v1095 = vmul.f32 %v1093, 1.442695
        %v1096 = vpow.pop %v1095
        %v1097 = vmul.f32 %v1094, 1.442695
        %v1098 = vpow.pop %v1097
        %v1099 = vsel %vm762, %v1096, 0.0
        %1100 = vadd.xlane.f32.xlu0 %v1099
        %v1101 = vpop.xlane.xlu0 %1100
        %v1102 = vsel %vm762, %v1098, 0.0
        %1103 = vadd.xlane.f32.xlu0 %v1102
        %v1104 = vpop.xlane.xlu0 %1103
        %1106 = vrot.lane.b32.xlu0 %v589, 112
        %v1107 = vpop.permute.xlu0 %1106
        %v1110 = vsel %vm762, %v1096, 0
        %1112 = vmatprep.subr.mxu0 0.0
        %1113 = vmatpush1.msra.mxu0 0.0
        %1114 = vmatprep.subr.mxu0 0.0
        %1115 = vmatpush1.msra.mxu0 0.0
        %1116 = vmatprep.subr.mxu0 0.0
        %1117 = vmatpush1.msra.mxu0 0.0
        %1118 = vmatprep.subr.mxu0 0.0
        %1119 = vmatpush1.msra.mxu0 0.0
        %1120 = vmatprep.subr.mxu0 0.0
        %1121 = vmatpush1.msra.mxu0 0.0
        %1122 = vmatprep.subr.mxu0 0.0
        %1123 = vmatpush1.msra.mxu0 0.0
        %1124 = vmatprep.subr.mxu0 0.0
        %1125 = vmatpush1.msra.mxu0 0.0
        %1126 = vmatprep.subr.mxu0 0.0
        %1127 = vmatpush1.msra.mxu0 0.0
        %1128 = vmatprep.subr.mxu0 0.0
        %1129 = vmatpush1.msra.mxu0 0.0
        %1130 = vmatprep.subr.mxu0 0.0
        %1131 = vmatpush1.msra.mxu0 0.0
        %1132 = vmatprep.subr.mxu0 0.0
        %1133 = vmatpush1.msra.mxu0 0.0
        %1134 = vmatprep.subr.mxu0 0.0
        %1135 = vmatpush1.msra.mxu0 0.0
        %1136 = vmatprep.subr.mxu0 0.0
        %1137 = vmatpush1.msra.mxu0 0.0
        %1138 = vmatprep.subr.mxu0 0.0
        %1139 = vmatpush1.msra.mxu0 0.0
        %1140 = vmatprep.subr.mxu0 0.0
        %1141 = vmatpush1.msra.mxu0 0.0
        %1142 = vmatprep.subr.mxu0 0.0
        %1143 = vmatpush1.msra.mxu0 %v1107
        %1144 = vmatprep.subr.mxu0 0.0
        %1145 = vmatpush2.msra.mxu0 0.0
        %1146 = vmatprep.subr.mxu0 0.0
        %1147 = vmatpush2.msra.mxu0 0.0
        %1148 = vmatprep.subr.mxu0 0.0
        %1149 = vmatpush2.msra.mxu0 0.0
        %1150 = vmatprep.subr.mxu0 0.0
        %1151 = vmatpush2.msra.mxu0 0.0
        %1152 = vmatprep.subr.mxu0 0.0
        %1153 = vmatpush2.msra.mxu0 0.0
        %1154 = vmatprep.subr.mxu0 0.0
        %1155 = vmatpush2.msra.mxu0 0.0
        %1156 = vmatprep.subr.mxu0 0.0
        %1157 = vmatpush2.msra.mxu0 0.0
        %1158 = vmatprep.subr.mxu0 0.0
        %1159 = vmatpush2.msra.mxu0 0.0
        %1160 = vmatprep.subr.mxu0 0.0
        %1161 = vmatpush2.msra.mxu0 0.0
        %1162 = vmatprep.subr.mxu0 0.0
        %1163 = vmatpush2.msra.mxu0 0.0
        %1164 = vmatprep.subr.mxu0 0.0
        %1165 = vmatpush2.msra.mxu0 0.0
        %1166 = vmatprep.subr.mxu0 0.0
        %1167 = vmatpush2.msra.mxu0 0.0
        %1168 = vmatprep.subr.mxu0 0.0
        %1169 = vmatpush2.msra.mxu0 0.0
        %1170 = vmatprep.subr.mxu0 0.0
        %1171 = vmatpush2.msra.mxu0 0.0
        %1172 = vmatprep.subr.mxu0 0.0
        %1173 = vmatpush2.msra.mxu0 0.0
        %1174 = vmatprep.subr.mxu0 0.0
        %1175 = vmatpush2.msra.mxu0 0.0
        %1176 = vmatprep.mubr.f32.mxu0 0.0
        %1177 = vmatmul.mubr.f32.gmra.mxu0 %v1110
        %v1178 = vpop.f32.mrf.mxu0
        %v1179 = vadd.f32 0.0, %v1178
        %v1180 = vpop.f32.mrf.mxu0
        %1181 = vdwg.mxu0
        %1183 = vrot.lane.b32.xlu0 %v595, 112
        %v1184 = vpop.permute.xlu0 %1183
        %v1187 = vsel %vm762, %v1098, 0
        %1189 = vmatprep.subr.mxu0 0.0
        %1190 = vmatpush1.msra.mxu0 0.0
        %1191 = vmatprep.subr.mxu0 0.0
        %1192 = vmatpush1.msra.mxu0 0.0
        %1193 = vmatprep.subr.mxu0 0.0
        %1194 = vmatpush1.msra.mxu0 0.0
        %1195 = vmatprep.subr.mxu0 0.0
        %1196 = vmatpush1.msra.mxu0 0.0
        %1197 = vmatprep.subr.mxu0 0.0
        %1198 = vmatpush1.msra.mxu0 0.0
        %1199 = vmatprep.subr.mxu0 0.0
        %1200 = vmatpush1.msra.mxu0 0.0
        %1201 = vmatprep.subr.mxu0 0.0
        %1202 = vmatpush1.msra.mxu0 0.0
        %1203 = vmatprep.subr.mxu0 0.0
        %1204 = vmatpush1.msra.mxu0 0.0
        %1205 = vmatprep.subr.mxu0 0.0
        %1206 = vmatpush1.msra.mxu0 0.0
        %1207 = vmatprep.subr.mxu0 0.0
        %1208 = vmatpush1.msra.mxu0 0.0
        %1209 = vmatprep.subr.mxu0 0.0
        %1210 = vmatpush1.msra.mxu0 0.0
        %1211 = vmatprep.subr.mxu0 0.0
        %1212 = vmatpush1.msra.mxu0 0.0
        %1213 = vmatprep.subr.mxu0 0.0
        %1214 = vmatpush1.msra.mxu0 0.0
        %1215 = vmatprep.subr.mxu0 0.0
        %1216 = vmatpush1.msra.mxu0 0.0
        %1217 = vmatprep.subr.mxu0 0.0
        %1218 = vmatpush1.msra.mxu0 0.0
        %1219 = vmatprep.subr.mxu0 0.0
        %1220 = vmatpush1.msra.mxu0 %v1184
        %1221 = vmatprep.subr.mxu0 0.0
        %1222 = vmatpush2.msra.mxu0 0.0
        %1223 = vmatprep.subr.mxu0 0.0
        %1224 = vmatpush2.msra.mxu0 0.0
        %1225 = vmatprep.subr.mxu0 0.0
        %1226 = vmatpush2.msra.mxu0 0.0
        %1227 = vmatprep.subr.mxu0 0.0
        %1228 = vmatpush2.msra.mxu0 0.0
        %1229 = vmatprep.subr.mxu0 0.0
        %1230 = vmatpush2.msra.mxu0 0.0
        %1231 = vmatprep.subr.mxu0 0.0
        %1232 = vmatpush2.msra.mxu0 0.0
        %1233 = vmatprep.subr.mxu0 0.0
        %1234 = vmatpush2.msra.mxu0 0.0
        %1235 = vmatprep.subr.mxu0 0.0
        %1236 = vmatpush2.msra.mxu0 0.0
        %1237 = vmatprep.subr.mxu0 0.0
        %1238 = vmatpush2.msra.mxu0 0.0
        %1239 = vmatprep.subr.mxu0 0.0
        %1240 = vmatpush2.msra.mxu0 0.0
        %1241 = vmatprep.subr.mxu0 0.0
        %1242 = vmatpush2.msra.mxu0 0.0
        %1243 = vmatprep.subr.mxu0 0.0
        %1244 = vmatpush2.msra.mxu0 0.0
        %1245 = vmatprep.subr.mxu0 0.0
        %1246 = vmatpush2.msra.mxu0 0.0
        %1247 = vmatprep.subr.mxu0 0.0
        %1248 = vmatpush2.msra.mxu0 0.0
        %1249 = vmatprep.subr.mxu0 0.0
        %1250 = vmatpush2.msra.mxu0 0.0
        %1251 = vmatprep.subr.mxu0 0.0
        %1252 = vmatpush2.msra.mxu0 0.0
        %1253 = vmatprep.mubr.f32.mxu0 0.0
        %1254 = vmatmul.mubr.f32.gmra.mxu0 %v1187
        %v1255 = vpop.f32.mrf.mxu0
        %v1256 = vadd.f32 0.0, %v1255
        %v1257 = vpop.f32.mrf.mxu0
        %1258 = vdwg.mxu0
        %v1259 = vrcp.pop %v1101
        %v1260 = vrcp.pop %v1104
        %v1261 = vmul.f32 %v1179, %v1259
        %v1262 = vmul.f32 %v1256, %v1260
        %1263 = vrot.lane.b32.xlu0 %v597, 96
        %v1264 = vpop.permute.xlu0 %1263
        %1265 = vrot.lane.b32.xlu0 %v587, 32
        %v1266 = vpop.permute.xlu0 %1265
        %v1267 = vsel %vm608, %v1264, 0
        %v1269 = vsel %vm608, %v1266, 0
        %1271 = vmatprep.subr.mxu0 0.0
        %1272 = vmatpush1.xpose.msra.mxu0 0.0
        %1273 = vmatprep.subr.mxu0 0.0
        %1274 = vmatpush1.xpose.msra.mxu0 0.0
        %1275 = vmatprep.subr.mxu0 0.0
        %1276 = vmatpush1.xpose.msra.mxu0 0.0
        %1277 = vmatprep.subr.mxu0 0.0
        %1278 = vmatpush1.xpose.msra.mxu0 0.0
        %1279 = vmatprep.subr.mxu0 0.0
        %1280 = vmatpush1.xpose.msra.mxu0 0.0
        %1281 = vmatprep.subr.mxu0 0.0
        %1282 = vmatpush1.xpose.msra.mxu0 0.0
        %1283 = vmatprep.subr.mxu0 0.0
        %1284 = vmatpush1.xpose.msra.mxu0 0.0
        %1285 = vmatprep.subr.mxu0 0.0
        %1286 = vmatpush1.xpose.msra.mxu0 0.0
        %1287 = vmatprep.subr.mxu0 0.0
        %1288 = vmatpush1.xpose.msra.mxu0 0.0
        %1289 = vmatprep.subr.mxu0 0.0
        %1290 = vmatpush1.xpose.msra.mxu0 0.0
        %1291 = vmatprep.subr.mxu0 0.0
        %1292 = vmatpush1.xpose.msra.mxu0 0.0
        %1293 = vmatprep.subr.mxu0 0.0
        %1294 = vmatpush1.xpose.msra.mxu0 0.0
        %1295 = vmatprep.subr.mxu0 0.0
        %1296 = vmatpush1.xpose.msra.mxu0 0.0
        %1297 = vmatprep.subr.mxu0 0.0
        %1298 = vmatpush1.xpose.msra.mxu0 0.0
        %1299 = vmatprep.subr.mxu0 0.0
        %1300 = vmatpush1.xpose.msra.mxu0 0.0
        %1301 = vmatprep.subr.mxu0 0.0
        %1302 = vmatpush1.xpose.msra.mxu0 %v1269
        %1303 = vmatprep.subr.mxu0 0.0
        %1304 = vmatpush2.xpose.msra.mxu0 0.0
        %1305 = vmatprep.subr.mxu0 0.0
        %1306 = vmatpush2.xpose.msra.mxu0 0.0
        %1307 = vmatprep.subr.mxu0 0.0
        %1308 = vmatpush2.xpose.msra.mxu0 0.0
        %1309 = vmatprep.subr.mxu0 0.0
        %1310 = vmatpush2.xpose.msra.mxu0 0.0
        %1311 = vmatprep.subr.mxu0 0.0
        %1312 = vmatpush2.xpose.msra.mxu0 0.0
        %1313 = vmatprep.subr.mxu0 0.0
        %1314 = vmatpush2.xpose.msra.mxu0 0.0
        %1315 = vmatprep.subr.mxu0 0.0
        %1316 = vmatpush2.xpose.msra.mxu0 0.0
        %1317 = vmatprep.subr.mxu0 0.0
        %1318 = vmatpush2.xpose.msra.mxu0 0.0
        %1319 = vmatprep.subr.mxu0 0.0
        %1320 = vmatpush2.xpose.msra.mxu0 0.0
        %1321 = vmatprep.subr.mxu0 0.0
        %1322 = vmatpush2.xpose.msra.mxu0 0.0
        %1323 = vmatprep.subr.mxu0 0.0
        %1324 = vmatpush2.xpose.msra.mxu0 0.0
        %1325 = vmatprep.subr.mxu0 0.0
        %1326 = vmatpush2.xpose.msra.mxu0 0.0
        %1327 = vmatprep.subr.mxu0 0.0
        %1328 = vmatpush2.xpose.msra.mxu0 0.0
        %1329 = vmatprep.subr.mxu0 0.0
        %1330 = vmatpush2.xpose.msra.mxu0 0.0
        %1331 = vmatprep.subr.mxu0 0.0
        %1332 = vmatpush2.xpose.msra.mxu0 0.0
        %1333 = vmatprep.subr.mxu0 0.0
        %1334 = vmatpush2.xpose.msra.mxu0 0.0
        %1335 = vmatprep.mubr.f32.mxu0 0.0
        %1336 = vmatmul.mubr.f32.gmra.mxu0 %v1267
        %v1337 = vpop.f32.mrf.mxu0
        %v1338 = vadd.f32 %v603, %v1337
        %v1339 = vpop.f32.mrf.mxu0
        %1340 = vdwg.mxu0
        %1341 = vrot.lane.b32.xlu0 %v598, 96
        %v1342 = vpop.permute.xlu0 %1341
        %1343 = vrot.lane.b32.xlu0 %v593, 32
        %v1344 = vpop.permute.xlu0 %1343
        %v1345 = vsel %vm608, %v1342, 0
        %v1347 = vsel %vm608, %v1344, 0
        %1349 = vmatprep.subr.mxu0 0.0
        %1350 = vmatpush1.xpose.msra.mxu0 0.0
        %1351 = vmatprep.subr.mxu0 0.0
        %1352 = vmatpush1.xpose.msra.mxu0 0.0
        %1353 = vmatprep.subr.mxu0 0.0
        %1354 = vmatpush1.xpose.msra.mxu0 0.0
        %1355 = vmatprep.subr.mxu0 0.0
        %1356 = vmatpush1.xpose.msra.mxu0 0.0
        %1357 = vmatprep.subr.mxu0 0.0
        %1358 = vmatpush1.xpose.msra.mxu0 0.0
        %1359 = vmatprep.subr.mxu0 0.0
        %1360 = vmatpush1.xpose.msra.mxu0 0.0
        %1361 = vmatprep.subr.mxu0 0.0
        %1362 = vmatpush1.xpose.msra.mxu0 0.0
        %1363 = vmatprep.subr.mxu0 0.0
        %1364 = vmatpush1.xpose.msra.mxu0 0.0
        %1365 = vmatprep.subr.mxu0 0.0
        %1366 = vmatpush1.xpose.msra.mxu0 0.0
        %1367 = vmatprep.subr.mxu0 0.0
        %1368 = vmatpush1.xpose.msra.mxu0 0.0
        %1369 = vmatprep.subr.mxu0 0.0
        %1370 = vmatpush1.xpose.msra.mxu0 0.0
        %1371 = vmatprep.subr.mxu0 0.0
        %1372 = vmatpush1.xpose.msra.mxu0 0.0
        %1373 = vmatprep.subr.mxu0 0.0
        %1374 = vmatpush1.xpose.msra.mxu0 0.0
        %1375 = vmatprep.subr.mxu0 0.0
        %1376 = vmatpush1.xpose.msra.mxu0 0.0
        %1377 = vmatprep.subr.mxu0 0.0
        %1378 = vmatpush1.xpose.msra.mxu0 0.0
        %1379 = vmatprep.subr.mxu0 0.0
        %1380 = vmatpush1.xpose.msra.mxu0 %v1347
        %1381 = vmatprep.subr.mxu0 0.0
        %1382 = vmatpush2.xpose.msra.mxu0 0.0
        %1383 = vmatprep.subr.mxu0 0.0
        %1384 = vmatpush2.xpose.msra.mxu0 0.0
        %1385 = vmatprep.subr.mxu0 0.0
        %1386 = vmatpush2.xpose.msra.mxu0 0.0
        %1387 = vmatprep.subr.mxu0 0.0
        %1388 = vmatpush2.xpose.msra.mxu0 0.0
        %1389 = vmatprep.subr.mxu0 0.0
        %1390 = vmatpush2.xpose.msra.mxu0 0.0
        %1391 = vmatprep.subr.mxu0 0.0
        %1392 = vmatpush2.xpose.msra.mxu0 0.0
        %1393 = vmatprep.subr.mxu0 0.0
        %1394 = vmatpush2.xpose.msra.mxu0 0.0
        %1395 = vmatprep.subr.mxu0 0.0
        %1396 = vmatpush2.xpose.msra.mxu0 0.0
        %1397 = vmatprep.subr.mxu0 0.0
        %1398 = vmatpush2.xpose.msra.mxu0 0.0
        %1399 = vmatprep.subr.mxu0 0.0
        %1400 = vmatpush2.xpose.msra.mxu0 0.0
        %1401 = vmatprep.subr.mxu0 0.0
        %1402 = vmatpush2.xpose.msra.mxu0 0.0
        %1403 = vmatprep.subr.mxu0 0.0
        %1404 = vmatpush2.xpose.msra.mxu0 0.0
        %1405 = vmatprep.subr.mxu0 0.0
        %1406 = vmatpush2.xpose.msra.mxu0 0.0
        %1407 = vmatprep.subr.mxu0 0.0
        %1408 = vmatpush2.xpose.msra.mxu0 0.0
        %1409 = vmatprep.subr.mxu0 0.0
        %1410 = vmatpush2.xpose.msra.mxu0 0.0
        %1411 = vmatprep.subr.mxu0 0.0
        %1412 = vmatpush2.xpose.msra.mxu0 0.0
        %1413 = vmatprep.mubr.f32.mxu0 0.0
        %1414 = vmatmul.mubr.f32.gmra.mxu0 %v1345
        %v1415 = vpop.f32.mrf.mxu0
        %v1416 = vadd.f32 %v603, %v1415
        %v1417 = vpop.f32.mrf.mxu0
        %1418 = vdwg.mxu0
        %v1419 = vsel %vm762, %v1338, -inf
        %1420 = vmax.xlane.f32.xlu0 %v1419
        %v1421 = vpop.xlane.xlu0 %1420
        %v1422 = vsel %vm762, %v1416, -inf
        %1423 = vmax.xlane.f32.xlu0 %v1422
        %v1424 = vpop.xlane.xlu0 %1423
        %v1425 = vsub.f32 %v1338, %v1421
        %v1426 = vsub.f32 %v1416, %v1424
        %v1427 = vmul.f32 %v1425, 1.442695
        %v1428 = vpow.pop %v1427
        %v1429 = vmul.f32 %v1426, 1.442695
        %v1430 = vpow.pop %v1429
        %v1431 = vsel %vm762, %v1428, 0.0
        %1432 = vadd.xlane.f32.xlu0 %v1431
        %v1433 = vpop.xlane.xlu0 %1432
        %v1434 = vsel %vm762, %v1430, 0.0
        %1435 = vadd.xlane.f32.xlu0 %v1434
        %v1436 = vpop.xlane.xlu0 %1435
        %1437 = vrot.lane.b32.xlu0 %v589, 96
        %v1438 = vpop.permute.xlu0 %1437
        %v1441 = vsel %vm762, %v1428, 0
        %1443 = vmatprep.subr.mxu0 0.0
        %1444 = vmatpush1.msra.mxu0 0.0
        %1445 = vmatprep.subr.mxu0 0.0
        %1446 = vmatpush1.msra.mxu0 0.0
        %1447 = vmatprep.subr.mxu0 0.0
        %1448 = vmatpush1.msra.mxu0 0.0
        %1449 = vmatprep.subr.mxu0 0.0
        %1450 = vmatpush1.msra.mxu0 0.0
        %1451 = vmatprep.subr.mxu0 0.0
        %1452 = vmatpush1.msra.mxu0 0.0
        %1453 = vmatprep.subr.mxu0 0.0
        %1454 = vmatpush1.msra.mxu0 0.0
        %1455 = vmatprep.subr.mxu0 0.0
        %1456 = vmatpush1.msra.mxu0 0.0
        %1457 = vmatprep.subr.mxu0 0.0
        %1458 = vmatpush1.msra.mxu0 0.0
        %1459 = vmatprep.subr.mxu0 0.0
        %1460 = vmatpush1.msra.mxu0 0.0
        %1461 = vmatprep.subr.mxu0 0.0
        %1462 = vmatpush1.msra.mxu0 0.0
        %1463 = vmatprep.subr.mxu0 0.0
        %1464 = vmatpush1.msra.mxu0 0.0
        %1465 = vmatprep.subr.mxu0 0.0
        %1466 = vmatpush1.msra.mxu0 0.0
        %1467 = vmatprep.subr.mxu0 0.0
        %1468 = vmatpush1.msra.mxu0 0.0
        %1469 = vmatprep.subr.mxu0 0.0
        %1470 = vmatpush1.msra.mxu0 0.0
        %1471 = vmatprep.subr.mxu0 0.0
        %1472 = vmatpush1.msra.mxu0 0.0
        %1473 = vmatprep.subr.mxu0 0.0
        %1474 = vmatpush1.msra.mxu0 %v1438
        %1475 = vmatprep.subr.mxu0 0.0
        %1476 = vmatpush2.msra.mxu0 0.0
        %1477 = vmatprep.subr.mxu0 0.0
        %1478 = vmatpush2.msra.mxu0 0.0
        %1479 = vmatprep.subr.mxu0 0.0
        %1480 = vmatpush2.msra.mxu0 0.0
        %1481 = vmatprep.subr.mxu0 0.0
        %1482 = vmatpush2.msra.mxu0 0.0
        %1483 = vmatprep.subr.mxu0 0.0
        %1484 = vmatpush2.msra.mxu0 0.0
        %1485 = vmatprep.subr.mxu0 0.0
        %1486 = vmatpush2.msra.mxu0 0.0
        %1487 = vmatprep.subr.mxu0 0.0
        %1488 = vmatpush2.msra.mxu0 0.0
        %1489 = vmatprep.subr.mxu0 0.0
        %1490 = vmatpush2.msra.mxu0 0.0
        %1491 = vmatprep.subr.mxu0 0.0
        %1492 = vmatpush2.msra.mxu0 0.0
        %1493 = vmatprep.subr.mxu0 0.0
        %1494 = vmatpush2.msra.mxu0 0.0
        %1495 = vmatprep.subr.mxu0 0.0
        %1496 = vmatpush2.msra.mxu0 0.0
        %1497 = vmatprep.subr.mxu0 0.0
        %1498 = vmatpush2.msra.mxu0 0.0
        %1499 = vmatprep.subr.mxu0 0.0
        %1500 = vmatpush2.msra.mxu0 0.0
        %1501 = vmatprep.subr.mxu0 0.0
        %1502 = vmatpush2.msra.mxu0 0.0
        %1503 = vmatprep.subr.mxu0 0.0
        %1504 = vmatpush2.msra.mxu0 0.0
        %1505 = vmatprep.subr.mxu0 0.0
        %1506 = vmatpush2.msra.mxu0 0.0
        %1507 = vmatprep.mubr.f32.mxu0 0.0
        %1508 = vmatmul.mubr.f32.gmra.mxu0 %v1441
        %v1509 = vpop.f32.mrf.mxu0
        %v1510 = vadd.f32 0.0, %v1509
        %v1511 = vpop.f32.mrf.mxu0
        %1512 = vdwg.mxu0
        %1513 = vrot.lane.b32.xlu0 %v595, 96
        %v1514 = vpop.permute.xlu0 %1513
        %v1517 = vsel %vm762, %v1430, 0
        %1519 = vmatprep.subr.mxu0 0.0
        %1520 = vmatpush1.msra.mxu0 0.0
        %1521 = vmatprep.subr.mxu0 0.0
        %1522 = vmatpush1.msra.mxu0 0.0
        %1523 = vmatprep.subr.mxu0 0.0
        %1524 = vmatpush1.msra.mxu0 0.0
        %1525 = vmatprep.subr.mxu0 0.0
        %1526 = vmatpush1.msra.mxu0 0.0
        %1527 = vmatprep.subr.mxu0 0.0
        %1528 = vmatpush1.msra.mxu0 0.0
        %1529 = vmatprep.subr.mxu0 0.0
        %1530 = vmatpush1.msra.mxu0 0.0
        %1531 = vmatprep.subr.mxu0 0.0
        %1532 = vmatpush1.msra.mxu0 0.0
        %1533 = vmatprep.subr.mxu0 0.0
        %1534 = vmatpush1.msra.mxu0 0.0
        %1535 = vmatprep.subr.mxu0 0.0
        %1536 = vmatpush1.msra.mxu0 0.0
        %1537 = vmatprep.subr.mxu0 0.0
        %1538 = vmatpush1.msra.mxu0 0.0
        %1539 = vmatprep.subr.mxu0 0.0
        %1540 = vmatpush1.msra.mxu0 0.0
        %1541 = vmatprep.subr.mxu0 0.0
        %1542 = vmatpush1.msra.mxu0 0.0
        %1543 = vmatprep.subr.mxu0 0.0
        %1544 = vmatpush1.msra.mxu0 0.0
        %1545 = vmatprep.subr.mxu0 0.0
        %1546 = vmatpush1.msra.mxu0 0.0
        %1547 = vmatprep.subr.mxu0 0.0
        %1548 = vmatpush1.msra.mxu0 0.0
        %1549 = vmatprep.subr.mxu0 0.0
        %1550 = vmatpush1.msra.mxu0 %v1514
        %1551 = vmatprep.subr.mxu0 0.0
        %1552 = vmatpush2.msra.mxu0 0.0
        %1553 = vmatprep.subr.mxu0 0.0
        %1554 = vmatpush2.msra.mxu0 0.0
        %1555 = vmatprep.subr.mxu0 0.0
        %1556 = vmatpush2.msra.mxu0 0.0
        %1557 = vmatprep.subr.mxu0 0.0
        %1558 = vmatpush2.msra.mxu0 0.0
        %1559 = vmatprep.subr.mxu0 0.0
        %1560 = vmatpush2.msra.mxu0 0.0
        %1561 = vmatprep.subr.mxu0 0.0
        %1562 = vmatpush2.msra.mxu0 0.0
        %1563 = vmatprep.subr.mxu0 0.0
        %1564 = vmatpush2.msra.mxu0 0.0
        %1565 = vmatprep.subr.mxu0 0.0
        %1566 = vmatpush2.msra.mxu0 0.0
        %1567 = vmatprep.subr.mxu0 0.0
        %1568 = vmatpush2.msra.mxu0 0.0
        %1569 = vmatprep.subr.mxu0 0.0
        %1570 = vmatpush2.msra.mxu0 0.0
        %1571 = vmatprep.subr.mxu0 0.0
        %1572 = vmatpush2.msra.mxu0 0.0
        %1573 = vmatprep.subr.mxu0 0.0
        %1574 = vmatpush2.msra.mxu0 0.0
        %1575 = vmatprep.subr.mxu0 0.0
        %1576 = vmatpush2.msra.mxu0 0.0
        %1577 = vmatprep.subr.mxu0 0.0
        %1578 = vmatpush2.msra.mxu0 0.0
        %1579 = vmatprep.subr.mxu0 0.0
        %1580 = vmatpush2.msra.mxu0 0.0
        %1581 = vmatprep.subr.mxu0 0.0
        %1582 = vmatpush2.msra.mxu0 0.0
        %1583 = vmatprep.mubr.f32.mxu0 0.0
        %1584 = vmatmul.mubr.f32.gmra.mxu0 %v1517
        %v1585 = vpop.f32.mrf.mxu0
        %v1586 = vadd.f32 0.0, %v1585
        %v1587 = vpop.f32.mrf.mxu0
        %1588 = vdwg.mxu0
        %v1589 = vrcp.pop %v1433
        %v1590 = vrcp.pop %v1436
        %v1591 = vmul.f32 %v1510, %v1589
        %v1592 = vmul.f32 %v1586, %v1590
        %1593 = vrot.lane.b32.xlu0 %v597, 80
        %v1594 = vpop.permute.xlu0 %1593
        %1595 = vrot.lane.b32.xlu0 %v587, 16
        %v1596 = vpop.permute.xlu0 %1595
        %v1597 = vsel %vm608, %v1594, 0
        %v1599 = vsel %vm608, %v1596, 0
        %1601 = vmatprep.subr.mxu0 0.0
        %1602 = vmatpush1.xpose.msra.mxu0 0.0
        %1603 = vmatprep.subr.mxu0 0.0
        %1604 = vmatpush1.xpose.msra.mxu0 0.0
        %1605 = vmatprep.subr.mxu0 0.0
        %1606 = vmatpush1.xpose.msra.mxu0 0.0
        %1607 = vmatprep.subr.mxu0 0.0
        %1608 = vmatpush1.xpose.msra.mxu0 0.0
        %1609 = vmatprep.subr.mxu0 0.0
        %1610 = vmatpush1.xpose.msra.mxu0 0.0
        %1611 = vmatprep.subr.mxu0 0.0
        %1612 = vmatpush1.xpose.msra.mxu0 0.0
        %1613 = vmatprep.subr.mxu0 0.0
        %1614 = vmatpush1.xpose.msra.mxu0 0.0
        %1615 = vmatprep.subr.mxu0 0.0
        %1616 = vmatpush1.xpose.msra.mxu0 0.0
        %1617 = vmatprep.subr.mxu0 0.0
        %1618 = vmatpush1.xpose.msra.mxu0 0.0
        %1619 = vmatprep.subr.mxu0 0.0
        %1620 = vmatpush1.xpose.msra.mxu0 0.0
        %1621 = vmatprep.subr.mxu0 0.0
        %1622 = vmatpush1.xpose.msra.mxu0 0.0
        %1623 = vmatprep.subr.mxu0 0.0
        %1624 = vmatpush1.xpose.msra.mxu0 0.0
        %1625 = vmatprep.subr.mxu0 0.0
        %1626 = vmatpush1.xpose.msra.mxu0 0.0
        %1627 = vmatprep.subr.mxu0 0.0
        %1628 = vmatpush1.xpose.msra.mxu0 0.0
        %1629 = vmatprep.subr.mxu0 0.0
        %1630 = vmatpush1.xpose.msra.mxu0 0.0
        %1631 = vmatprep.subr.mxu0 0.0
        %1632 = vmatpush1.xpose.msra.mxu0 %v1599
        %1633 = vmatprep.subr.mxu0 0.0
        %1634 = vmatpush2.xpose.msra.mxu0 0.0
        %1635 = vmatprep.subr.mxu0 0.0
        %1636 = vmatpush2.xpose.msra.mxu0 0.0
        %1637 = vmatprep.subr.mxu0 0.0
        %1638 = vmatpush2.xpose.msra.mxu0 0.0
        %1639 = vmatprep.subr.mxu0 0.0
        %1640 = vmatpush2.xpose.msra.mxu0 0.0
        %1641 = vmatprep.subr.mxu0 0.0
        %1642 = vmatpush2.xpose.msra.mxu0 0.0
        %1643 = vmatprep.subr.mxu0 0.0
        %1644 = vmatpush2.xpose.msra.mxu0 0.0
        %1645 = vmatprep.subr.mxu0 0.0
        %1646 = vmatpush2.xpose.msra.mxu0 0.0
        %1647 = vmatprep.subr.mxu0 0.0
        %1648 = vmatpush2.xpose.msra.mxu0 0.0
        %1649 = vmatprep.subr.mxu0 0.0
        %1650 = vmatpush2.xpose.msra.mxu0 0.0
        %1651 = vmatprep.subr.mxu0 0.0
        %1652 = vmatpush2.xpose.msra.mxu0 0.0
        %1653 = vmatprep.subr.mxu0 0.0
        %1654 = vmatpush2.xpose.msra.mxu0 0.0
        %1655 = vmatprep.subr.mxu0 0.0
        %1656 = vmatpush2.xpose.msra.mxu0 0.0
        %1657 = vmatprep.subr.mxu0 0.0
        %1658 = vmatpush2.xpose.msra.mxu0 0.0
        %1659 = vmatprep.subr.mxu0 0.0
        %1660 = vmatpush2.xpose.msra.mxu0 0.0
        %1661 = vmatprep.subr.mxu0 0.0
        %1662 = vmatpush2.xpose.msra.mxu0 0.0
        %1663 = vmatprep.subr.mxu0 0.0
        %1664 = vmatpush2.xpose.msra.mxu0 0.0
        %1665 = vmatprep.mubr.f32.mxu0 0.0
        %1666 = vmatmul.mubr.f32.gmra.mxu0 %v1597
        %v1667 = vpop.f32.mrf.mxu0
        %v1668 = vadd.f32 %v603, %v1667
        %v1669 = vpop.f32.mrf.mxu0
        %1670 = vdwg.mxu0
        %1671 = vrot.lane.b32.xlu0 %v598, 80
        %v1672 = vpop.permute.xlu0 %1671
        %1673 = vrot.lane.b32.xlu0 %v593, 16
        %v1674 = vpop.permute.xlu0 %1673
        %v1675 = vsel %vm608, %v1672, 0
        %v1677 = vsel %vm608, %v1674, 0
        %1679 = vmatprep.subr.mxu0 0.0
        %1680 = vmatpush1.xpose.msra.mxu0 0.0
        %1681 = vmatprep.subr.mxu0 0.0
        %1682 = vmatpush1.xpose.msra.mxu0 0.0
        %1683 = vmatprep.subr.mxu0 0.0
        %1684 = vmatpush1.xpose.msra.mxu0 0.0
        %1685 = vmatprep.subr.mxu0 0.0
        %1686 = vmatpush1.xpose.msra.mxu0 0.0
        %1687 = vmatprep.subr.mxu0 0.0
        %1688 = vmatpush1.xpose.msra.mxu0 0.0
        %1689 = vmatprep.subr.mxu0 0.0
        %1690 = vmatpush1.xpose.msra.mxu0 0.0
        %1691 = vmatprep.subr.mxu0 0.0
        %1692 = vmatpush1.xpose.msra.mxu0 0.0
        %1693 = vmatprep.subr.mxu0 0.0
        %1694 = vmatpush1.xpose.msra.mxu0 0.0
        %1695 = vmatprep.subr.mxu0 0.0
        %1696 = vmatpush1.xpose.msra.mxu0 0.0
        %1697 = vmatprep.subr.mxu0 0.0
        %1698 = vmatpush1.xpose.msra.mxu0 0.0
        %1699 = vmatprep.subr.mxu0 0.0
        %1700 = vmatpush1.xpose.msra.mxu0 0.0
        %1701 = vmatprep.subr.mxu0 0.0
        %1702 = vmatpush1.xpose.msra.mxu0 0.0
        %1703 = vmatprep.subr.mxu0 0.0
        %1704 = vmatpush1.xpose.msra.mxu0 0.0
        %1705 = vmatprep.subr.mxu0 0.0
        %1706 = vmatpush1.xpose.msra.mxu0 0.0
        %1707 = vmatprep.subr.mxu0 0.0
        %1708 = vmatpush1.xpose.msra.mxu0 0.0
        %1709 = vmatprep.subr.mxu0 0.0
        %1710 = vmatpush1.xpose.msra.mxu0 %v1677
        %1711 = vmatprep.subr.mxu0 0.0
        %1712 = vmatpush2.xpose.msra.mxu0 0.0
        %1713 = vmatprep.subr.mxu0 0.0
        %1714 = vmatpush2.xpose.msra.mxu0 0.0
        %1715 = vmatprep.subr.mxu0 0.0
        %1716 = vmatpush2.xpose.msra.mxu0 0.0
        %1717 = vmatprep.subr.mxu0 0.0
        %1718 = vmatpush2.xpose.msra.mxu0 0.0
        %1719 = vmatprep.subr.mxu0 0.0
        %1720 = vmatpush2.xpose.msra.mxu0 0.0
        %1721 = vmatprep.subr.mxu0 0.0
        %1722 = vmatpush2.xpose.msra.mxu0 0.0
        %1723 = vmatprep.subr.mxu0 0.0
        %1724 = vmatpush2.xpose.msra.mxu0 0.0
        %1725 = vmatprep.subr.mxu0 0.0
        %1726 = vmatpush2.xpose.msra.mxu0 0.0
        %1727 = vmatprep.subr.mxu0 0.0
        %1728 = vmatpush2.xpose.msra.mxu0 0.0
        %1729 = vmatprep.subr.mxu0 0.0
        %1730 = vmatpush2.xpose.msra.mxu0 0.0
        %1731 = vmatprep.subr.mxu0 0.0
        %1732 = vmatpush2.xpose.msra.mxu0 0.0
        %1733 = vmatprep.subr.mxu0 0.0
        %1734 = vmatpush2.xpose.msra.mxu0 0.0
        %1735 = vmatprep.subr.mxu0 0.0
        %1736 = vmatpush2.xpose.msra.mxu0 0.0
        %1737 = vmatprep.subr.mxu0 0.0
        %1738 = vmatpush2.xpose.msra.mxu0 0.0
        %1739 = vmatprep.subr.mxu0 0.0
        %1740 = vmatpush2.xpose.msra.mxu0 0.0
        %1741 = vmatprep.subr.mxu0 0.0
        %1742 = vmatpush2.xpose.msra.mxu0 0.0
        %1743 = vmatprep.mubr.f32.mxu0 0.0
        %1744 = vmatmul.mubr.f32.gmra.mxu0 %v1675
        %v1745 = vpop.f32.mrf.mxu0
        %v1746 = vadd.f32 %v603, %v1745
        %v1747 = vpop.f32.mrf.mxu0
        %1748 = vdwg.mxu0
        %v1749 = vsel %vm762, %v1668, -inf
        %1750 = vmax.xlane.f32.xlu0 %v1749
        %v1751 = vpop.xlane.xlu0 %1750
        %v1752 = vsel %vm762, %v1746, -inf
        %1753 = vmax.xlane.f32.xlu0 %v1752
        %v1754 = vpop.xlane.xlu0 %1753
        %v1755 = vsub.f32 %v1668, %v1751
        %v1756 = vsub.f32 %v1746, %v1754
        %v1757 = vmul.f32 %v1755, 1.442695
        %v1758 = vpow.pop %v1757
        %v1759 = vmul.f32 %v1756, 1.442695
        %v1760 = vpow.pop %v1759
        %v1761 = vsel %vm762, %v1758, 0.0
        %1762 = vadd.xlane.f32.xlu0 %v1761
        %v1763 = vpop.xlane.xlu0 %1762
        %v1764 = vsel %vm762, %v1760, 0.0
        %1765 = vadd.xlane.f32.xlu0 %v1764
        %v1766 = vpop.xlane.xlu0 %1765
        %1767 = vrot.lane.b32.xlu0 %v589, 80
        %v1768 = vpop.permute.xlu0 %1767
        %v1771 = vsel %vm762, %v1758, 0
        %1773 = vmatprep.subr.mxu0 0.0
        %1774 = vmatpush1.msra.mxu0 0.0
        %1775 = vmatprep.subr.mxu0 0.0
        %1776 = vmatpush1.msra.mxu0 0.0
        %1777 = vmatprep.subr.mxu0 0.0
        %1778 = vmatpush1.msra.mxu0 0.0
        %1779 = vmatprep.subr.mxu0 0.0
        %1780 = vmatpush1.msra.mxu0 0.0
        %1781 = vmatprep.subr.mxu0 0.0
        %1782 = vmatpush1.msra.mxu0 0.0
        %1783 = vmatprep.subr.mxu0 0.0
        %1784 = vmatpush1.msra.mxu0 0.0
        %1785 = vmatprep.subr.mxu0 0.0
        %1786 = vmatpush1.msra.mxu0 0.0
        %1787 = vmatprep.subr.mxu0 0.0
        %1788 = vmatpush1.msra.mxu0 0.0
        %1789 = vmatprep.subr.mxu0 0.0
        %1790 = vmatpush1.msra.mxu0 0.0
        %1791 = vmatprep.subr.mxu0 0.0
        %1792 = vmatpush1.msra.mxu0 0.0
        %1793 = vmatprep.subr.mxu0 0.0
        %1794 = vmatpush1.msra.mxu0 0.0
        %1795 = vmatprep.subr.mxu0 0.0
        %1796 = vmatpush1.msra.mxu0 0.0
        %1797 = vmatprep.subr.mxu0 0.0
        %1798 = vmatpush1.msra.mxu0 0.0
        %1799 = vmatprep.subr.mxu0 0.0
        %1800 = vmatpush1.msra.mxu0 0.0
        %1801 = vmatprep.subr.mxu0 0.0
        %1802 = vmatpush1.msra.mxu0 0.0
        %1803 = vmatprep.subr.mxu0 0.0
        %1804 = vmatpush1.msra.mxu0 %v1768
        %1805 = vmatprep.subr.mxu0 0.0
        %1806 = vmatpush2.msra.mxu0 0.0
        %1807 = vmatprep.subr.mxu0 0.0
        %1808 = vmatpush2.msra.mxu0 0.0
        %1809 = vmatprep.subr.mxu0 0.0
        %1810 = vmatpush2.msra.mxu0 0.0
        %1811 = vmatprep.subr.mxu0 0.0
        %1812 = vmatpush2.msra.mxu0 0.0
        %1813 = vmatprep.subr.mxu0 0.0
        %1814 = vmatpush2.msra.mxu0 0.0
        %1815 = vmatprep.subr.mxu0 0.0
        %1816 = vmatpush2.msra.mxu0 0.0
        %1817 = vmatprep.subr.mxu0 0.0
        %1818 = vmatpush2.msra.mxu0 0.0
        %1819 = vmatprep.subr.mxu0 0.0
        %1820 = vmatpush2.msra.mxu0 0.0
        %1821 = vmatprep.subr.mxu0 0.0
        %1822 = vmatpush2.msra.mxu0 0.0
        %1823 = vmatprep.subr.mxu0 0.0
        %1824 = vmatpush2.msra.mxu0 0.0
        %1825 = vmatprep.subr.mxu0 0.0
        %1826 = vmatpush2.msra.mxu0 0.0
        %1827 = vmatprep.subr.mxu0 0.0
        %1828 = vmatpush2.msra.mxu0 0.0
        %1829 = vmatprep.subr.mxu0 0.0
        %1830 = vmatpush2.msra.mxu0 0.0
        %1831 = vmatprep.subr.mxu0 0.0
        %1832 = vmatpush2.msra.mxu0 0.0
        %1833 = vmatprep.subr.mxu0 0.0
        %1834 = vmatpush2.msra.mxu0 0.0
        %1835 = vmatprep.subr.mxu0 0.0
        %1836 = vmatpush2.msra.mxu0 0.0
        %1837 = vmatprep.mubr.f32.mxu0 0.0
        %1838 = vmatmul.mubr.f32.gmra.mxu0 %v1771
        %v1839 = vpop.f32.mrf.mxu0
        %v1840 = vadd.f32 0.0, %v1839
        %v1841 = vpop.f32.mrf.mxu0
        %1842 = vdwg.mxu0
        %1843 = vrot.lane.b32.xlu0 %v595, 80
        %v1844 = vpop.permute.xlu0 %1843
        %v1847 = vsel %vm762, %v1760, 0
        %1849 = vmatprep.subr.mxu0 0.0
        %1850 = vmatpush1.msra.mxu0 0.0
        %1851 = vmatprep.subr.mxu0 0.0
        %1852 = vmatpush1.msra.mxu0 0.0
        %1853 = vmatprep.subr.mxu0 0.0
        %1854 = vmatpush1.msra.mxu0 0.0
        %1855 = vmatprep.subr.mxu0 0.0
        %1856 = vmatpush1.msra.mxu0 0.0
        %1857 = vmatprep.subr.mxu0 0.0
        %1858 = vmatpush1.msra.mxu0 0.0
        %1859 = vmatprep.subr.mxu0 0.0
        %1860 = vmatpush1.msra.mxu0 0.0
        %1861 = vmatprep.subr.mxu0 0.0
        %1862 = vmatpush1.msra.mxu0 0.0
        %1863 = vmatprep.subr.mxu0 0.0
        %1864 = vmatpush1.msra.mxu0 0.0
        %1865 = vmatprep.subr.mxu0 0.0
        %1866 = vmatpush1.msra.mxu0 0.0
        %1867 = vmatprep.subr.mxu0 0.0
        %1868 = vmatpush1.msra.mxu0 0.0
        %1869 = vmatprep.subr.mxu0 0.0
        %1870 = vmatpush1.msra.mxu0 0.0
        %1871 = vmatprep.subr.mxu0 0.0
        %1872 = vmatpush1.msra.mxu0 0.0
        %1873 = vmatprep.subr.mxu0 0.0
        %1874 = vmatpush1.msra.mxu0 0.0
        %1875 = vmatprep.subr.mxu0 0.0
        %1876 = vmatpush1.msra.mxu0 0.0
        %1877 = vmatprep.subr.mxu0 0.0
        %1878 = vmatpush1.msra.mxu0 0.0
        %1879 = vmatprep.subr.mxu0 0.0
        %1880 = vmatpush1.msra.mxu0 %v1844
        %1881 = vmatprep.subr.mxu0 0.0
        %1882 = vmatpush2.msra.mxu0 0.0
        %1883 = vmatprep.subr.mxu0 0.0
        %1884 = vmatpush2.msra.mxu0 0.0
        %1885 = vmatprep.subr.mxu0 0.0
        %1886 = vmatpush2.msra.mxu0 0.0
        %1887 = vmatprep.subr.mxu0 0.0
        %1888 = vmatpush2.msra.mxu0 0.0
        %1889 = vmatprep.subr.mxu0 0.0
        %1890 = vmatpush2.msra.mxu0 0.0
        %1891 = vmatprep.subr.mxu0 0.0
        %1892 = vmatpush2.msra.mxu0 0.0
        %1893 = vmatprep.subr.mxu0 0.0
        %1894 = vmatpush2.msra.mxu0 0.0
        %1895 = vmatprep.subr.mxu0 0.0
        %1896 = vmatpush2.msra.mxu0 0.0
        %1897 = vmatprep.subr.mxu0 0.0
        %1898 = vmatpush2.msra.mxu0 0.0
        %1899 = vmatprep.subr.mxu0 0.0
        %1900 = vmatpush2.msra.mxu0 0.0
        %1901 = vmatprep.subr.mxu0 0.0
        %1902 = vmatpush2.msra.mxu0 0.0
        %1903 = vmatprep.subr.mxu0 0.0
        %1904 = vmatpush2.msra.mxu0 0.0
        %1905 = vmatprep.subr.mxu0 0.0
        %1906 = vmatpush2.msra.mxu0 0.0
        %1907 = vmatprep.subr.mxu0 0.0
        %1908 = vmatpush2.msra.mxu0 0.0
        %1909 = vmatprep.subr.mxu0 0.0
        %1910 = vmatpush2.msra.mxu0 0.0
        %1911 = vmatprep.subr.mxu0 0.0
        %1912 = vmatpush2.msra.mxu0 0.0
        %1913 = vmatprep.mubr.f32.mxu0 0.0
        %1914 = vmatmul.mubr.f32.gmra.mxu0 %v1847
        %v1915 = vpop.f32.mrf.mxu0
        %v1916 = vadd.f32 0.0, %v1915
        %v1917 = vpop.f32.mrf.mxu0
        %1918 = vdwg.mxu0
        %v1919 = vrcp.pop %v1763
        %v1920 = vrcp.pop %v1766
        %v1921 = vmul.f32 %v1840, %v1919
        %v1922 = vmul.f32 %v1916, %v1920
        %1925 = vrot.lane.b32.xlu0 %v1261, 16
        %v1926 = vpop.permute.xlu0 %1925
        %1927 = vrot.lane.b32.xlu0 %v1262, 16
        %v1928 = vpop.permute.xlu0 %1927
        %1933 = vrot.lane.b32.xlu0 %v1591, 32
        %v1934 = vpop.permute.xlu0 %1933
        %1935 = vrot.lane.b32.xlu0 %v1592, 32
        %v1936 = vpop.permute.xlu0 %1935
        %1941 = vrot.lane.b32.xlu0 %v1921, 48
        %v1942 = vpop.permute.xlu0 %1941
        %1943 = vrot.lane.b32.xlu0 %v1922, 48
        %v1944 = vpop.permute.xlu0 %1943
        %v1947 = vsel %vm608, %v929, %v1926
        %v1948 = vsel %vm608, %v930, %v1928
        %vm1949 = vcmask 261120
        %v1950 = vsel %vm1949, %v1947, %v1934
        %v1951 = vsel %vm1949, %v1948, %v1936
        %vm1952 = vcmask 392192
        %v1953 = vsel %vm1952, %v1950, %v1942
        %v1954 = vsel %vm1952, %v1951, %v1944
        %v1955 = vld [vmem:[%s6] sm:$0xff]
        %v1956 = vld [vmem:[%s6 + $0x8] sm:$0xff]
        %v1957 = vld [vmem:[%s6 + $0x10] sm:$0xff]
        %v1958 = vld [vmem:[%s6 + $0x18] sm:$0xff]
        %v1959 = vld [vmem:[%s6 + $0x20] sm:$0xff]
        %v1960 = vld [vmem:[%s6 + $0x28] sm:$0xff]
        %v1961 = vld [vmem:[%s6 + $0x30] sm:$0xff]
        %v1962 = vld [vmem:[%s6 + $0x38] sm:$0xff]
        %v1963 = vlaneseq
        %v1964 = vshrl.u32 %v1963, 7
        %v1965 = vsub.s32 1, %v1964
        %v1966 = vrot.slane %v487, %v1965
        %v1968 = vsel %vm513, %v1953, 0
        %v1971 = vsel %vm513, %v1954, 0
        %1973 = vmatprep.subr.mxu0 0.0
        %1974 = vmatpush1.msra.mxu0 0.0
        %1975 = vmatprep.subr.mxu0 0.0
        %1976 = vmatpush1.msra.mxu0 0.0
        %1977 = vmatprep.subr.mxu0 0.0
        %1978 = vmatpush1.msra.mxu0 0.0
        %1979 = vmatprep.subr.mxu0 0.0
        %1980 = vmatpush1.msra.mxu0 0.0
        %1981 = vmatprep.subr.mxu0 0.0
        %1982 = vmatpush1.msra.mxu0 0.0
        %1983 = vmatprep.subr.mxu0 0.0
        %1984 = vmatpush1.msra.mxu0 0.0
        %1985 = vmatprep.subr.mxu0 0.0
        %1986 = vmatpush1.msra.mxu0 0.0
        %1987 = vmatprep.subr.mxu0 0.0
        %1988 = vmatpush1.msra.mxu0 0.0
        %1989 = vmatprep.subr.mxu0 0.0
        %1990 = vmatpush1.msra.mxu0 %v1962
        %1991 = vmatprep.subr.mxu0 0.0
        %1992 = vmatpush1.msra.mxu0 %v1961
        %1993 = vmatprep.subr.mxu0 0.0
        %1994 = vmatpush1.msra.mxu0 %v1960
        %1995 = vmatprep.subr.mxu0 0.0
        %1996 = vmatpush1.msra.mxu0 %v1959
        %1997 = vmatprep.subr.mxu0 0.0
        %1998 = vmatpush1.msra.mxu0 %v1958
        %1999 = vmatprep.subr.mxu0 0.0
        %2000 = vmatpush1.msra.mxu0 %v1957
        %2001 = vmatprep.subr.mxu0 0.0
        %2002 = vmatpush1.msra.mxu0 %v1956
        %2003 = vmatprep.subr.mxu0 0.0
        %2004 = vmatpush1.msra.mxu0 %v1955
        %2005 = vmatprep.subr.mxu0 0.0
        %2006 = vmatpush2.msra.mxu0 0.0
        %2007 = vmatprep.subr.mxu0 0.0
        %2008 = vmatpush2.msra.mxu0 0.0
        %2009 = vmatprep.subr.mxu0 0.0
        %2010 = vmatpush2.msra.mxu0 0.0
        %2011 = vmatprep.subr.mxu0 0.0
        %2012 = vmatpush2.msra.mxu0 0.0
        %2013 = vmatprep.subr.mxu0 0.0
        %2014 = vmatpush2.msra.mxu0 0.0
        %2015 = vmatprep.subr.mxu0 0.0
        %2016 = vmatpush2.msra.mxu0 0.0
        %2017 = vmatprep.subr.mxu0 0.0
        %2018 = vmatpush2.msra.mxu0 0.0
        %2019 = vmatprep.subr.mxu0 0.0
        %2020 = vmatpush2.msra.mxu0 0.0
        %2021 = vmatprep.subr.mxu0 0.0
        %2022 = vmatpush2.msra.mxu0 0.0
        %2023 = vmatprep.subr.mxu0 0.0
        %2024 = vmatpush2.msra.mxu0 0.0
        %2025 = vmatprep.subr.mxu0 0.0
        %2026 = vmatpush2.msra.mxu0 0.0
        %2027 = vmatprep.subr.mxu0 0.0
        %2028 = vmatpush2.msra.mxu0 0.0
        %2029 = vmatprep.subr.mxu0 0.0
        %2030 = vmatpush2.msra.mxu0 0.0
        %2031 = vmatprep.subr.mxu0 0.0
        %2032 = vmatpush2.msra.mxu0 0.0
        %2033 = vmatprep.subr.mxu0 0.0
        %2034 = vmatpush2.msra.mxu0 0.0
        %2035 = vmatprep.subr.mxu0 0.0
        %2036 = vmatpush2.msra.mxu0 0.0
        %2037 = vmatprep.mubr.f32.mxu0 0.0
        %2038 = vmatmul.mubr.f32.gmra.mxu0 %v1968
        %v2039 = vpop.f32.mrf.mxu0
        %v2040 = vadd.f32 %v1966, %v2039
        %v2041 = vpop.f32.mrf.mxu0
        %2042 = vmatprep.mubr.f32.mxu0 0.0
        %2043 = vmatmul.mubr.f32.gmra.mxu0 %v1971
        %v2044 = vpop.f32.mrf.mxu0
        %v2045 = vadd.f32 %v1966, %v2044
        %v2046 = vpop.f32.mrf.mxu0
        %2047 = vdwg.mxu0
        %v2048 = vadd.f32 %v479, %v2040
        %v2049 = vadd.f32 %v484, %v2045
        %v2050 = vsel %vm513, %v2048, 0.0
        %2051 = vadd.xlane.f32.xlu0 %v2050
        %v2052 = vpop.xlane.xlu0 %2051
        %v2053 = vsel %vm513, %v2049, 0.0
        %2054 = vadd.xlane.f32.xlu0 %v2053
        %v2055 = vpop.xlane.xlu0 %2054
        %v2056 = vrcp.pop 64.0
        %v2057 = vmul.f32 %v2052, %v2056
        %v2058 = vmul.f32 %v2055, %v2056
        %v2059 = vsub.f32 %v2048, %v2057
        %v2060 = vsub.f32 %v2049, %v2058
        %v2061 = vmul.f32 %v2059, %v2059
        %v2062 = vmul.f32 %v2060, %v2060
        %v2063 = vsel %vm513, %v2061, 0.0
        %2064 = vadd.xlane.f32.xlu0 %v2063
        %v2065 = vpop.xlane.xlu0 %2064
        %v2066 = vsel %vm513, %v2062, 0.0
        %2067 = vadd.xlane.f32.xlu0 %v2066
        %v2068 = vpop.xlane.xlu0 %2067
        %v2069 = vmul.f32 %v2065, %v2056
        %v2070 = vmul.f32 %v2068, %v2056
        %v2071 = vadd.f32 %v2069, 1e-05
        %v2072 = vadd.f32 %v2070, 1e-05
        %v2073 = vrsqrt.pop %v2071
        %v2074 = vrsqrt.pop %v2072
        %v2075 = vmul.f32 %v2059, %v2073
        %v2076 = vmul.f32 %v2060, %v2074
        %v2077 = vlaneseq
        %v2078 = vshrl.u32 %v2077, 7
        %v2079 = vsub.s32 4, %v2078
        %v2080 = vrot.slane %v487, %v2079
        %v2081 = vmul.f32 %v2075, %v2080
        %v2082 = vmul.f32 %v2076, %v2080
        %v2083 = vlaneseq
        %v2084 = vshrl.u32 %v2083, 7
        %v2085 = vsub.s32 5, %v2084
        %v2086 = vrot.slane %v487, %v2085
        %v2087 = vadd.f32 %v2081, %v2086
        %v2088 = vadd.f32 %v2082, %v2086
        %v2089 = vld [vmem:[%s7] sm:$0xff]
        %v2090 = vld [vmem:[%s7 + $0x8] sm:$0xff]
        %v2091 = vld [vmem:[%s7 + $0x10] sm:$0xff]
        %v2092 = vld [vmem:[%s7 + $0x18] sm:$0xff]
        %v2093 = vld [vmem:[%s7 + $0x20] sm:$0xff]
        %v2094 = vld [vmem:[%s7 + $0x28] sm:$0xff]
        %v2095 = vld [vmem:[%s7 + $0x30] sm:$0xff]
        %v2096 = vld [vmem:[%s7 + $0x38] sm:$0xff]
        %v2097 = vlaneseq
        %v2098 = vshrl.u32 %v2097, 7
        %v2099 = vsub.s32 2, %v2098
        %v2100 = vrot.slane %v487, %v2099
        %v2102 = vsel %vm513, %v2087, 0
        %v2105 = vsel %vm513, %v2088, 0
        %2107 = vmatprep.subr.mxu0 0.0
        %2108 = vmatpush1.msra.mxu0 0.0
        %2109 = vmatprep.subr.mxu0 0.0
        %2110 = vmatpush1.msra.mxu0 0.0
        %2111 = vmatprep.subr.mxu0 0.0
        %2112 = vmatpush1.msra.mxu0 0.0
        %2113 = vmatprep.subr.mxu0 0.0
        %2114 = vmatpush1.msra.mxu0 0.0
        %2115 = vmatprep.subr.mxu0 0.0
        %2116 = vmatpush1.msra.mxu0 0.0
        %2117 = vmatprep.subr.mxu0 0.0
        %2118 = vmatpush1.msra.mxu0 0.0
        %2119 = vmatprep.subr.mxu0 0.0
        %2120 = vmatpush1.msra.mxu0 0.0
        %2121 = vmatprep.subr.mxu0 0.0
        %2122 = vmatpush1.msra.mxu0 0.0
        %2123 = vmatprep.subr.mxu0 0.0
        %2124 = vmatpush1.msra.mxu0 %v2096
        %2125 = vmatprep.subr.mxu0 0.0
        %2126 = vmatpush1.msra.mxu0 %v2095
        %2127 = vmatprep.subr.mxu0 0.0
        %2128 = vmatpush1.msra.mxu0 %v2094
        %2129 = vmatprep.subr.mxu0 0.0
        %2130 = vmatpush1.msra.mxu0 %v2093
        %2131 = vmatprep.subr.mxu0 0.0
        %2132 = vmatpush1.msra.mxu0 %v2092
        %2133 = vmatprep.subr.mxu0 0.0
        %2134 = vmatpush1.msra.mxu0 %v2091
        %2135 = vmatprep.subr.mxu0 0.0
        %2136 = vmatpush1.msra.mxu0 %v2090
        %2137 = vmatprep.subr.mxu0 0.0
        %2138 = vmatpush1.msra.mxu0 %v2089
        %2139 = vmatprep.subr.mxu0 0.0
        %2140 = vmatpush2.msra.mxu0 0.0
        %2141 = vmatprep.subr.mxu0 0.0
        %2142 = vmatpush2.msra.mxu0 0.0
        %2143 = vmatprep.subr.mxu0 0.0
        %2144 = vmatpush2.msra.mxu0 0.0
        %2145 = vmatprep.subr.mxu0 0.0
        %2146 = vmatpush2.msra.mxu0 0.0
        %2147 = vmatprep.subr.mxu0 0.0
        %2148 = vmatpush2.msra.mxu0 0.0
        %2149 = vmatprep.subr.mxu0 0.0
        %2150 = vmatpush2.msra.mxu0 0.0
        %2151 = vmatprep.subr.mxu0 0.0
        %2152 = vmatpush2.msra.mxu0 0.0
        %2153 = vmatprep.subr.mxu0 0.0
        %2154 = vmatpush2.msra.mxu0 0.0
        %2155 = vmatprep.subr.mxu0 0.0
        %2156 = vmatpush2.msra.mxu0 0.0
        %2157 = vmatprep.subr.mxu0 0.0
        %2158 = vmatpush2.msra.mxu0 0.0
        %2159 = vmatprep.subr.mxu0 0.0
        %2160 = vmatpush2.msra.mxu0 0.0
        %2161 = vmatprep.subr.mxu0 0.0
        %2162 = vmatpush2.msra.mxu0 0.0
        %2163 = vmatprep.subr.mxu0 0.0
        %2164 = vmatpush2.msra.mxu0 0.0
        %2165 = vmatprep.subr.mxu0 0.0
        %2166 = vmatpush2.msra.mxu0 0.0
        %2167 = vmatprep.subr.mxu0 0.0
        %2168 = vmatpush2.msra.mxu0 0.0
        %2169 = vmatprep.subr.mxu0 0.0
        %2170 = vmatpush2.msra.mxu0 0.0
        %2171 = vmatprep.mubr.f32.mxu0 0.0
        %2172 = vmatmul.mubr.f32.gmra.mxu0 %v2102
        %v2173 = vpop.f32.mrf.mxu0
        %v2174 = vadd.f32 %v2100, %v2173
        %v2175 = vpop.f32.mrf.mxu0
        %2176 = vmatprep.mubr.f32.mxu0 0.0
        %2177 = vmatmul.mubr.f32.gmra.mxu0 %v2105
        %v2178 = vpop.f32.mrf.mxu0
        %v2179 = vadd.f32 %v2100, %v2178
        %v2180 = vpop.f32.mrf.mxu0
        %2181 = vdwg.mxu0
        %v2182 = vmax.f32 %v2174, 0.0
        %v2183 = vmax.f32 %v2179, 0.0
        %v2184 = vld [vmem:[%s8] sm:$0xff]
        %v2185 = vld [vmem:[%s8 + $0x8] sm:$0xff]
        %v2186 = vld [vmem:[%s8 + $0x10] sm:$0xff]
        %v2187 = vld [vmem:[%s8 + $0x18] sm:$0xff]
        %v2188 = vld [vmem:[%s8 + $0x20] sm:$0xff]
        %v2189 = vld [vmem:[%s8 + $0x28] sm:$0xff]
        %v2190 = vld [vmem:[%s8 + $0x30] sm:$0xff]
        %v2191 = vld [vmem:[%s8 + $0x38] sm:$0xff]
        %v2192 = vld [vmem:[%s8 + $0x40] sm:$0xff]
        %v2193 = vld [vmem:[%s8 + $0x48] sm:$0xff]
        %v2194 = vld [vmem:[%s8 + $0x50] sm:$0xff]
        %v2195 = vld [vmem:[%s8 + $0x58] sm:$0xff]
        %v2196 = vld [vmem:[%s8 + $0x60] sm:$0xff]
        %v2197 = vld [vmem:[%s8 + $0x68] sm:$0xff]
        %v2198 = vld [vmem:[%s8 + $0x70] sm:$0xff]
        %v2199 = vld [vmem:[%s8 + $0x78] sm:$0xff]
        %v2200 = vlaneseq
        %v2201 = vshrl.u32 %v2200, 7
        %v2202 = vsub.s32 3, %v2201
        %v2203 = vrot.slane %v487, %v2202
        %2204 = vmatprep.subr.mxu0 0.0
        %2205 = vmatpush1.msra.mxu0 %v2199
        %2206 = vmatprep.subr.mxu0 0.0
        %2207 = vmatpush1.msra.mxu0 %v2198
        %2208 = vmatprep.subr.mxu0 0.0
        %2209 = vmatpush1.msra.mxu0 %v2197
        %2210 = vmatprep.subr.mxu0 0.0
        %2211 = vmatpush1.msra.mxu0 %v2196
        %2212 = vmatprep.subr.mxu0 0.0
        %2213 = vmatpush1.msra.mxu0 %v2195
        %2214 = vmatprep.subr.mxu0 0.0
        %2215 = vmatpush1.msra.mxu0 %v2194
        %2216 = vmatprep.subr.mxu0 0.0
        %2217 = vmatpush1.msra.mxu0 %v2193
        %2218 = vmatprep.subr.mxu0 0.0
        %2219 = vmatpush1.msra.mxu0 %v2192
        %2220 = vmatprep.subr.mxu0 0.0
        %2221 = vmatpush1.msra.mxu0 %v2191
        %2222 = vmatprep.subr.mxu0 0.0
        %2223 = vmatpush1.msra.mxu0 %v2190
        %2224 = vmatprep.subr.mxu0 0.0
        %2225 = vmatpush1.msra.mxu0 %v2189
        %2226 = vmatprep.subr.mxu0 0.0
        %2227 = vmatpush1.msra.mxu0 %v2188
        %2228 = vmatprep.subr.mxu0 0.0
        %2229 = vmatpush1.msra.mxu0 %v2187
        %2230 = vmatprep.subr.mxu0 0.0
        %2231 = vmatpush1.msra.mxu0 %v2186
        %2232 = vmatprep.subr.mxu0 0.0
        %2233 = vmatpush1.msra.mxu0 %v2185
        %2234 = vmatprep.subr.mxu0 0.0
        %2235 = vmatpush1.msra.mxu0 %v2184
        %2236 = vmatprep.subr.mxu0 0.0
        %2237 = vmatpush2.msra.mxu0 0.0
        %2238 = vmatprep.subr.mxu0 0.0
        %2239 = vmatpush2.msra.mxu0 0.0
        %2240 = vmatprep.subr.mxu0 0.0
        %2241 = vmatpush2.msra.mxu0 0.0
        %2242 = vmatprep.subr.mxu0 0.0
        %2243 = vmatpush2.msra.mxu0 0.0
        %2244 = vmatprep.subr.mxu0 0.0
        %2245 = vmatpush2.msra.mxu0 0.0
        %2246 = vmatprep.subr.mxu0 0.0
        %2247 = vmatpush2.msra.mxu0 0.0
        %2248 = vmatprep.subr.mxu0 0.0
        %2249 = vmatpush2.msra.mxu0 0.0
        %2250 = vmatprep.subr.mxu0 0.0
        %2251 = vmatpush2.msra.mxu0 0.0
        %2252 = vmatprep.subr.mxu0 0.0
        %2253 = vmatpush2.msra.mxu0 0.0
        %2254 = vmatprep.subr.mxu0 0.0
        %2255 = vmatpush2.msra.mxu0 0.0
        %2256 = vmatprep.subr.mxu0 0.0
        %2257 = vmatpush2.msra.mxu0 0.0
        %2258 = vmatprep.subr.mxu0 0.0
        %2259 = vmatpush2.msra.mxu0 0.0
        %2260 = vmatprep.subr.mxu0 0.0
        %2261 = vmatpush2.msra.mxu0 0.0
        %2262 = vmatprep.subr.mxu0 0.0
        %2263 = vmatpush2.msra.mxu0 0.0
        %2264 = vmatprep.subr.mxu0 0.0
        %2265 = vmatpush2.msra.mxu0 0.0
        %2266 = vmatprep.subr.mxu0 0.0
        %2267 = vmatpush2.msra.mxu0 0.0
        %2268 = vmatprep.mubr.f32.mxu0 0.0
        %2269 = vmatmul.mubr.f32.gmra.mxu0 %v2182
        %v2270 = vpop.f32.mrf.mxu0
        %v2271 = vadd.f32 %v2203, %v2270
        %v2272 = vpop.f32.mrf.mxu0
        %2273 = vmatprep.mubr.f32.mxu0 0.0
        %2274 = vmatmul.mubr.f32.gmra.mxu0 %v2183
        %v2275 = vpop.f32.mrf.mxu0
        %v2276 = vadd.f32 %v2203, %v2275
        %v2277 = vpop.f32.mrf.mxu0
        %2278 = vdwg.mxu0
        %v2279 = vadd.f32 %v2087, %v2271
        %v2280 = vadd.f32 %v2088, %v2276
        %v2281 = vsel %vm513, %v2279, 0.0
        %2282 = vadd.xlane.f32.xlu0 %v2281
        %v2283 = vpop.xlane.xlu0 %2282
        %v2284 = vsel %vm513, %v2280, 0.0
        %2285 = vadd.xlane.f32.xlu0 %v2284
        %v2286 = vpop.xlane.xlu0 %2285
        %v2287 = vmul.f32 %v2283, %v2056
        %v2288 = vmul.f32 %v2286, %v2056
        %v2289 = vsub.f32 %v2279, %v2287
        %v2290 = vsub.f32 %v2280, %v2288
        %v2291 = vmul.f32 %v2289, %v2289
        %v2292 = vmul.f32 %v2290, %v2290
        %v2293 = vsel %vm513, %v2291, 0.0
        %2294 = vadd.xlane.f32.xlu0 %v2293
        %v2295 = vpop.xlane.xlu0 %2294
        %v2296 = vsel %vm513, %v2292, 0.0
        %2297 = vadd.xlane.f32.xlu0 %v2296
        %v2298 = vpop.xlane.xlu0 %2297
        %v2299 = vmul.f32 %v2295, %v2056
        %v2300 = vmul.f32 %v2298, %v2056
        %v2301 = vadd.f32 %v2299, 1e-05
        %v2302 = vadd.f32 %v2300, 1e-05
        %v2303 = vrsqrt.pop %v2301
        %v2304 = vrsqrt.pop %v2302
        %v2305 = vmul.f32 %v2289, %v2303
        %v2306 = vmul.f32 %v2290, %v2304
        %v2307 = vlaneseq
        %v2308 = vshrl.u32 %v2307, 7
        %v2309 = vsub.s32 6, %v2308
        %v2310 = vrot.slane %v487, %v2309
        %v2311 = vmul.f32 %v2305, %v2310
        %v2312 = vmul.f32 %v2306, %v2310
        %v2313 = vlaneseq
        %v2314 = vshrl.u32 %v2313, 7
        %v2315 = vsub.s32 7, %v2314
        %v2316 = vrot.slane %v487, %v2315
        %v2317 = vadd.f32 %v2311, %v2316
        %v2318 = vadd.f32 %v2312, %v2316
        %s2319 = scalar_lea.vmem %s9, 16
        %v2320 = vld [vmem:[%s2319] sm:$0xff]
        %v2321 = vld [vmem:[%s2319 + $0x8] sm:$0xff]
        %s2322 = scalar_lea.vmem %s5, 128
        %v2323 = vld [vmem:[%s2322] sm:$0xff]
        %v2324 = vld [vmem:[%s2322 + $0x8] sm:$0xff]
        %v2325 = vld [vmem:[%s2322 + $0x10] sm:$0xff]
        %v2326 = vld [vmem:[%s2322 + $0x18] sm:$0xff]
        %v2327 = vld [vmem:[%s2322 + $0x20] sm:$0xff]
        %v2328 = vld [vmem:[%s2322 + $0x28] sm:$0xff]
        %v2329 = vld [vmem:[%s2322 + $0x30] sm:$0xff]
        %v2330 = vld [vmem:[%s2322 + $0x38] sm:$0xff]
        %v2331 = vld [vmem:[%s2322 + $0x40] sm:$0xff]
        %v2332 = vld [vmem:[%s2322 + $0x48] sm:$0xff]
        %v2333 = vld [vmem:[%s2322 + $0x50] sm:$0xff]
        %v2334 = vld [vmem:[%s2322 + $0x58] sm:$0xff]
        %v2335 = vld [vmem:[%s2322 + $0x60] sm:$0xff]
        %v2336 = vld [vmem:[%s2322 + $0x68] sm:$0xff]
        %v2337 = vld [vmem:[%s2322 + $0x70] sm:$0xff]
        %v2338 = vld [vmem:[%s2322 + $0x78] sm:$0xff]
        %v2339 = vlaneseq
        %v2340 = vshrl.u32 %v2339, 7
        %v2341 = vsub.s32 0, %v2340
        %v2342 = vrot.slane %v2320, %v2341
        %v2343 = vlaneseq
        %v2344 = vshrl.u32 %v2343, 7
        %v2345 = vsub.s32 0, %v2344
        %v2346 = vrot.slane %v2321, %v2345
        %v2348 = vsel %vm513, %v2317, 0
        %v2351 = vsel %vm513, %v2318, 0
        %2353 = vmatprep.subr.mxu0 0.0
        %2354 = vmatpush1.msra.mxu0 0.0
        %2355 = vmatprep.subr.mxu0 0.0
        %2356 = vmatpush1.msra.mxu0 0.0
        %2357 = vmatprep.subr.mxu0 0.0
        %2358 = vmatpush1.msra.mxu0 0.0
        %2359 = vmatprep.subr.mxu0 0.0
        %2360 = vmatpush1.msra.mxu0 0.0
        %2361 = vmatprep.subr.mxu0 0.0
        %2362 = vmatpush1.msra.mxu0 0.0
        %2363 = vmatprep.subr.mxu0 0.0
        %2364 = vmatpush1.msra.mxu0 0.0
        %2365 = vmatprep.subr.mxu0 0.0
        %2366 = vmatpush1.msra.mxu0 0.0
        %2367 = vmatprep.subr.mxu0 0.0
        %2368 = vmatpush1.msra.mxu0 0.0
        %2369 = vmatprep.subr.mxu0 %v2338
        %2370 = vmatpush1.msra.mxu0 %v2337
        %2371 = vmatprep.subr.mxu0 %v2336
        %2372 = vmatpush1.msra.mxu0 %v2335
        %2373 = vmatprep.subr.mxu0 %v2334
        %2374 = vmatpush1.msra.mxu0 %v2333
        %2375 = vmatprep.subr.mxu0 %v2332
        %2376 = vmatpush1.msra.mxu0 %v2331
        %2377 = vmatprep.subr.mxu0 %v2330
        %2378 = vmatpush1.msra.mxu0 %v2329
        %2379 = vmatprep.subr.mxu0 %v2328
        %2380 = vmatpush1.msra.mxu0 %v2327
        %2381 = vmatprep.subr.mxu0 %v2326
        %2382 = vmatpush1.msra.mxu0 %v2325
        %2383 = vmatprep.subr.mxu0 %v2324
        %2384 = vmatpush1.msra.mxu0 %v2323
        %2385 = vmatprep.subr.mxu0 0.0
        %2386 = vmatpush2.msra.mxu0 0.0
        %2387 = vmatprep.subr.mxu0 0.0
        %2388 = vmatpush2.msra.mxu0 0.0
        %2389 = vmatprep.subr.mxu0 0.0
        %2390 = vmatpush2.msra.mxu0 0.0
        %2391 = vmatprep.subr.mxu0 0.0
        %2392 = vmatpush2.msra.mxu0 0.0
        %2393 = vmatprep.subr.mxu0 0.0
        %2394 = vmatpush2.msra.mxu0 0.0
        %2395 = vmatprep.subr.mxu0 0.0
        %2396 = vmatpush2.msra.mxu0 0.0
        %2397 = vmatprep.subr.mxu0 0.0
        %2398 = vmatpush2.msra.mxu0 0.0
        %2399 = vmatprep.subr.mxu0 0.0
        %2400 = vmatpush2.msra.mxu0 0.0
        %2401 = vmatprep.subr.mxu0 0.0
        %2402 = vmatpush2.msra.mxu0 0.0
        %2403 = vmatprep.subr.mxu0 0.0
        %2404 = vmatpush2.msra.mxu0 0.0
        %2405 = vmatprep.subr.mxu0 0.0
        %2406 = vmatpush2.msra.mxu0 0.0
        %2407 = vmatprep.subr.mxu0 0.0
        %2408 = vmatpush2.msra.mxu0 0.0
        %2409 = vmatprep.subr.mxu0 0.0
        %2410 = vmatpush2.msra.mxu0 0.0
        %2411 = vmatprep.subr.mxu0 0.0
        %2412 = vmatpush2.msra.mxu0 0.0
        %2413 = vmatprep.subr.mxu0 0.0
        %2414 = vmatpush2.msra.mxu0 0.0
        %2415 = vmatprep.subr.mxu0 0.0
        %2416 = vmatpush2.msra.mxu0 0.0
        %2417 = vmatprep.mubr.f32.mxu0 0.0
        %2418 = vmatmul.mubr.f32.gmra.mxu0 %v2348
        %v2419 = vpop.f32.mrf.mxu0
        %v2420 = vadd.f32 %v2342, %v2419
        %v2421 = vpop.f32.mrf.mxu0
        %v2422 = vadd.f32 %v2346, %v2421
        %2423 = vmatprep.mubr.f32.mxu0 0.0
        %2424 = vmatmul.mubr.f32.gmra.mxu0 %v2351
        %v2425 = vpop.f32.mrf.mxu0
        %v2426 = vadd.f32 %v2342, %v2425
        %v2427 = vpop.f32.mrf.mxu0
        %v2428 = vadd.f32 %v2346, %v2427
        %2429 = vdwg.mxu0
        %v2430 = vmul.f32 %v2420, 0.25
        %v2431 = vmul.f32 %v2426, 0.25
        %2433 = vrot.lane.b32.xlu0 %v2420, 64
        %v2434 = vpop.permute.xlu0 %2433
        %v2436 = vsel %vm608, %v2430, 0
        %v2438 = vsel %vm608, %v2434, 0
        %2440 = vmatprep.subr.mxu0 0.0
        %2441 = vmatpush1.xpose.msra.mxu0 0.0
        %2442 = vmatprep.subr.mxu0 0.0
        %2443 = vmatpush1.xpose.msra.mxu0 0.0
        %2444 = vmatprep.subr.mxu0 0.0
        %2445 = vmatpush1.xpose.msra.mxu0 0.0
        %2446 = vmatprep.subr.mxu0 0.0
        %2447 = vmatpush1.xpose.msra.mxu0 0.0
        %2448 = vmatprep.subr.mxu0 0.0
        %2449 = vmatpush1.xpose.msra.mxu0 0.0
        %2450 = vmatprep.subr.mxu0 0.0
        %2451 = vmatpush1.xpose.msra.mxu0 0.0
        %2452 = vmatprep.subr.mxu0 0.0
        %2453 = vmatpush1.xpose.msra.mxu0 0.0
        %2454 = vmatprep.subr.mxu0 0.0
        %2455 = vmatpush1.xpose.msra.mxu0 0.0
        %2456 = vmatprep.subr.mxu0 0.0
        %2457 = vmatpush1.xpose.msra.mxu0 0.0
        %2458 = vmatprep.subr.mxu0 0.0
        %2459 = vmatpush1.xpose.msra.mxu0 0.0
        %2460 = vmatprep.subr.mxu0 0.0
        %2461 = vmatpush1.xpose.msra.mxu0 0.0
        %2462 = vmatprep.subr.mxu0 0.0
        %2463 = vmatpush1.xpose.msra.mxu0 0.0
        %2464 = vmatprep.subr.mxu0 0.0
        %2465 = vmatpush1.xpose.msra.mxu0 0.0
        %2466 = vmatprep.subr.mxu0 0.0
        %2467 = vmatpush1.xpose.msra.mxu0 0.0
        %2468 = vmatprep.subr.mxu0 0.0
        %2469 = vmatpush1.xpose.msra.mxu0 0.0
        %2470 = vmatprep.subr.mxu0 0.0
        %2471 = vmatpush1.xpose.msra.mxu0 %v2438
        %2472 = vmatprep.subr.mxu0 0.0
        %2473 = vmatpush2.xpose.msra.mxu0 0.0
        %2474 = vmatprep.subr.mxu0 0.0
        %2475 = vmatpush2.xpose.msra.mxu0 0.0
        %2476 = vmatprep.subr.mxu0 0.0
        %2477 = vmatpush2.xpose.msra.mxu0 0.0
        %2478 = vmatprep.subr.mxu0 0.0
        %2479 = vmatpush2.xpose.msra.mxu0 0.0
        %2480 = vmatprep.subr.mxu0 0.0
        %2481 = vmatpush2.xpose.msra.mxu0 0.0
        %2482 = vmatprep.subr.mxu0 0.0
        %2483 = vmatpush2.xpose.msra.mxu0 0.0
        %2484 = vmatprep.subr.mxu0 0.0
        %2485 = vmatpush2.xpose.msra.mxu0 0.0
        %2486 = vmatprep.subr.mxu0 0.0
        %2487 = vmatpush2.xpose.msra.mxu0 0.0
        %2488 = vmatprep.subr.mxu0 0.0
        %2489 = vmatpush2.xpose.msra.mxu0 0.0
        %2490 = vmatprep.subr.mxu0 0.0
        %2491 = vmatpush2.xpose.msra.mxu0 0.0
        %2492 = vmatprep.subr.mxu0 0.0
        %2493 = vmatpush2.xpose.msra.mxu0 0.0
        %2494 = vmatprep.subr.mxu0 0.0
        %2495 = vmatpush2.xpose.msra.mxu0 0.0
        %2496 = vmatprep.subr.mxu0 0.0
        %2497 = vmatpush2.xpose.msra.mxu0 0.0
        %2498 = vmatprep.subr.mxu0 0.0
        %2499 = vmatpush2.xpose.msra.mxu0 0.0
        %2500 = vmatprep.subr.mxu0 0.0
        %2501 = vmatpush2.xpose.msra.mxu0 0.0
        %2502 = vmatprep.subr.mxu0 0.0
        %2503 = vmatpush2.xpose.msra.mxu0 0.0
        %2504 = vmatprep.mubr.f32.mxu0 0.0
        %2505 = vmatmul.mubr.f32.gmra.mxu0 %v2436
        %v2506 = vpop.f32.mrf.mxu0
        %v2507 = vadd.f32 %v603, %v2506
        %v2508 = vpop.f32.mrf.mxu0
        %2509 = vdwg.mxu0
        %2511 = vrot.lane.b32.xlu0 %v2426, 64
        %v2512 = vpop.permute.xlu0 %2511
        %v2514 = vsel %vm608, %v2431, 0
        %v2516 = vsel %vm608, %v2512, 0
        %2518 = vmatprep.subr.mxu0 0.0
        %2519 = vmatpush1.xpose.msra.mxu0 0.0
        %2520 = vmatprep.subr.mxu0 0.0
        %2521 = vmatpush1.xpose.msra.mxu0 0.0
        %2522 = vmatprep.subr.mxu0 0.0
        %2523 = vmatpush1.xpose.msra.mxu0 0.0
        %2524 = vmatprep.subr.mxu0 0.0
        %2525 = vmatpush1.xpose.msra.mxu0 0.0
        %2526 = vmatprep.subr.mxu0 0.0
        %2527 = vmatpush1.xpose.msra.mxu0 0.0
        %2528 = vmatprep.subr.mxu0 0.0
        %2529 = vmatpush1.xpose.msra.mxu0 0.0
        %2530 = vmatprep.subr.mxu0 0.0
        %2531 = vmatpush1.xpose.msra.mxu0 0.0
        %2532 = vmatprep.subr.mxu0 0.0
        %2533 = vmatpush1.xpose.msra.mxu0 0.0
        %2534 = vmatprep.subr.mxu0 0.0
        %2535 = vmatpush1.xpose.msra.mxu0 0.0
        %2536 = vmatprep.subr.mxu0 0.0
        %2537 = vmatpush1.xpose.msra.mxu0 0.0
        %2538 = vmatprep.subr.mxu0 0.0
        %2539 = vmatpush1.xpose.msra.mxu0 0.0
        %2540 = vmatprep.subr.mxu0 0.0
        %2541 = vmatpush1.xpose.msra.mxu0 0.0
        %2542 = vmatprep.subr.mxu0 0.0
        %2543 = vmatpush1.xpose.msra.mxu0 0.0
        %2544 = vmatprep.subr.mxu0 0.0
        %2545 = vmatpush1.xpose.msra.mxu0 0.0
        %2546 = vmatprep.subr.mxu0 0.0
        %2547 = vmatpush1.xpose.msra.mxu0 0.0
        %2548 = vmatprep.subr.mxu0 0.0
        %2549 = vmatpush1.xpose.msra.mxu0 %v2516
        %2550 = vmatprep.subr.mxu0 0.0
        %2551 = vmatpush2.xpose.msra.mxu0 0.0
        %2552 = vmatprep.subr.mxu0 0.0
        %2553 = vmatpush2.xpose.msra.mxu0 0.0
        %2554 = vmatprep.subr.mxu0 0.0
        %2555 = vmatpush2.xpose.msra.mxu0 0.0
        %2556 = vmatprep.subr.mxu0 0.0
        %2557 = vmatpush2.xpose.msra.mxu0 0.0
        %2558 = vmatprep.subr.mxu0 0.0
        %2559 = vmatpush2.xpose.msra.mxu0 0.0
        %2560 = vmatprep.subr.mxu0 0.0
        %2561 = vmatpush2.xpose.msra.mxu0 0.0
        %2562 = vmatprep.subr.mxu0 0.0
        %2563 = vmatpush2.xpose.msra.mxu0 0.0
        %2564 = vmatprep.subr.mxu0 0.0
        %2565 = vmatpush2.xpose.msra.mxu0 0.0
        %2566 = vmatprep.subr.mxu0 0.0
        %2567 = vmatpush2.xpose.msra.mxu0 0.0
        %2568 = vmatprep.subr.mxu0 0.0
        %2569 = vmatpush2.xpose.msra.mxu0 0.0
        %2570 = vmatprep.subr.mxu0 0.0
        %2571 = vmatpush2.xpose.msra.mxu0 0.0
        %2572 = vmatprep.subr.mxu0 0.0
        %2573 = vmatpush2.xpose.msra.mxu0 0.0
        %2574 = vmatprep.subr.mxu0 0.0
        %2575 = vmatpush2.xpose.msra.mxu0 0.0
        %2576 = vmatprep.subr.mxu0 0.0
        %2577 = vmatpush2.xpose.msra.mxu0 0.0
        %2578 = vmatprep.subr.mxu0 0.0
        %2579 = vmatpush2.xpose.msra.mxu0 0.0
        %2580 = vmatprep.subr.mxu0 0.0
        %2581 = vmatpush2.xpose.msra.mxu0 0.0
        %2582 = vmatprep.mubr.f32.mxu0 0.0
        %2583 = vmatmul.mubr.f32.gmra.mxu0 %v2514
        %v2584 = vpop.f32.mrf.mxu0
        %v2585 = vadd.f32 %v603, %v2584
        %v2586 = vpop.f32.mrf.mxu0
        %2587 = vdwg.mxu0
        %v2588 = vsel %vm762, %v2507, -inf
        %2589 = vmax.xlane.f32.xlu0 %v2588
        %v2590 = vpop.xlane.xlu0 %2589
        %v2591 = vsel %vm762, %v2585, -inf
        %2592 = vmax.xlane.f32.xlu0 %v2591
        %v2593 = vpop.xlane.xlu0 %2592
        %v2594 = vsub.f32 %v2507, %v2590
        %v2595 = vsub.f32 %v2585, %v2593
        %v2596 = vmul.f32 %v2594, 1.442695
        %v2597 = vpow.pop %v2596
        %v2598 = vmul.f32 %v2595, 1.442695
        %v2599 = vpow.pop %v2598
        %v2600 = vsel %vm762, %v2597, 0.0
        %2601 = vadd.xlane.f32.xlu0 %v2600
        %v2602 = vpop.xlane.xlu0 %2601
        %v2603 = vsel %vm762, %v2599, 0.0
        %2604 = vadd.xlane.f32.xlu0 %v2603
        %v2605 = vpop.xlane.xlu0 %2604
        %v2607 = vsel %vm762, %v2597, 0
        %2609 = vmatprep.subr.mxu0 0.0
        %2610 = vmatpush1.msra.mxu0 0.0
        %2611 = vmatprep.subr.mxu0 0.0
        %2612 = vmatpush1.msra.mxu0 0.0
        %2613 = vmatprep.subr.mxu0 0.0
        %2614 = vmatpush1.msra.mxu0 0.0
        %2615 = vmatprep.subr.mxu0 0.0
        %2616 = vmatpush1.msra.mxu0 0.0
        %2617 = vmatprep.subr.mxu0 0.0
        %2618 = vmatpush1.msra.mxu0 0.0
        %2619 = vmatprep.subr.mxu0 0.0
        %2620 = vmatpush1.msra.mxu0 0.0
        %2621 = vmatprep.subr.mxu0 0.0
        %2622 = vmatpush1.msra.mxu0 0.0
        %2623 = vmatprep.subr.mxu0 0.0
        %2624 = vmatpush1.msra.mxu0 0.0
        %2625 = vmatprep.subr.mxu0 0.0
        %2626 = vmatpush1.msra.mxu0 0.0
        %2627 = vmatprep.subr.mxu0 0.0
        %2628 = vmatpush1.msra.mxu0 0.0
        %2629 = vmatprep.subr.mxu0 0.0
        %2630 = vmatpush1.msra.mxu0 0.0
        %2631 = vmatprep.subr.mxu0 0.0
        %2632 = vmatpush1.msra.mxu0 0.0
        %2633 = vmatprep.subr.mxu0 0.0
        %2634 = vmatpush1.msra.mxu0 0.0
        %2635 = vmatprep.subr.mxu0 0.0
        %2636 = vmatpush1.msra.mxu0 0.0
        %2637 = vmatprep.subr.mxu0 0.0
        %2638 = vmatpush1.msra.mxu0 0.0
        %2639 = vmatprep.subr.mxu0 0.0
        %2640 = vmatpush1.msra.mxu0 %v2422
        %2641 = vmatprep.subr.mxu0 0.0
        %2642 = vmatpush2.msra.mxu0 0.0
        %2643 = vmatprep.subr.mxu0 0.0
        %2644 = vmatpush2.msra.mxu0 0.0
        %2645 = vmatprep.subr.mxu0 0.0
        %2646 = vmatpush2.msra.mxu0 0.0
        %2647 = vmatprep.subr.mxu0 0.0
        %2648 = vmatpush2.msra.mxu0 0.0
        %2649 = vmatprep.subr.mxu0 0.0
        %2650 = vmatpush2.msra.mxu0 0.0
        %2651 = vmatprep.subr.mxu0 0.0
        %2652 = vmatpush2.msra.mxu0 0.0
        %2653 = vmatprep.subr.mxu0 0.0
        %2654 = vmatpush2.msra.mxu0 0.0
        %2655 = vmatprep.subr.mxu0 0.0
        %2656 = vmatpush2.msra.mxu0 0.0
        %2657 = vmatprep.subr.mxu0 0.0
        %2658 = vmatpush2.msra.mxu0 0.0
        %2659 = vmatprep.subr.mxu0 0.0
        %2660 = vmatpush2.msra.mxu0 0.0
        %2661 = vmatprep.subr.mxu0 0.0
        %2662 = vmatpush2.msra.mxu0 0.0
        %2663 = vmatprep.subr.mxu0 0.0
        %2664 = vmatpush2.msra.mxu0 0.0
        %2665 = vmatprep.subr.mxu0 0.0
        %2666 = vmatpush2.msra.mxu0 0.0
        %2667 = vmatprep.subr.mxu0 0.0
        %2668 = vmatpush2.msra.mxu0 0.0
        %2669 = vmatprep.subr.mxu0 0.0
        %2670 = vmatpush2.msra.mxu0 0.0
        %2671 = vmatprep.subr.mxu0 0.0
        %2672 = vmatpush2.msra.mxu0 0.0
        %2673 = vmatprep.mubr.f32.mxu0 0.0
        %2674 = vmatmul.mubr.f32.gmra.mxu0 %v2607
        %v2675 = vpop.f32.mrf.mxu0
        %v2676 = vadd.f32 0.0, %v2675
        %v2677 = vpop.f32.mrf.mxu0
        %2678 = vdwg.mxu0
        %v2680 = vsel %vm762, %v2599, 0
        %2682 = vmatprep.subr.mxu0 0.0
        %2683 = vmatpush1.msra.mxu0 0.0
        %2684 = vmatprep.subr.mxu0 0.0
        %2685 = vmatpush1.msra.mxu0 0.0
        %2686 = vmatprep.subr.mxu0 0.0
        %2687 = vmatpush1.msra.mxu0 0.0
        %2688 = vmatprep.subr.mxu0 0.0
        %2689 = vmatpush1.msra.mxu0 0.0
        %2690 = vmatprep.subr.mxu0 0.0
        %2691 = vmatpush1.msra.mxu0 0.0
        %2692 = vmatprep.subr.mxu0 0.0
        %2693 = vmatpush1.msra.mxu0 0.0
        %2694 = vmatprep.subr.mxu0 0.0
        %2695 = vmatpush1.msra.mxu0 0.0
        %2696 = vmatprep.subr.mxu0 0.0
        %2697 = vmatpush1.msra.mxu0 0.0
        %2698 = vmatprep.subr.mxu0 0.0
        %2699 = vmatpush1.msra.mxu0 0.0
        %2700 = vmatprep.subr.mxu0 0.0
        %2701 = vmatpush1.msra.mxu0 0.0
        %2702 = vmatprep.subr.mxu0 0.0
        %2703 = vmatpush1.msra.mxu0 0.0
        %2704 = vmatprep.subr.mxu0 0.0
        %2705 = vmatpush1.msra.mxu0 0.0
        %2706 = vmatprep.subr.mxu0 0.0
        %2707 = vmatpush1.msra.mxu0 0.0
        %2708 = vmatprep.subr.mxu0 0.0
        %2709 = vmatpush1.msra.mxu0 0.0
        %2710 = vmatprep.subr.mxu0 0.0
        %2711 = vmatpush1.msra.mxu0 0.0
        %2712 = vmatprep.subr.mxu0 0.0
        %2713 = vmatpush1.msra.mxu0 %v2428
        %2714 = vmatprep.subr.mxu0 0.0
        %2715 = vmatpush2.msra.mxu0 0.0
        %2716 = vmatprep.subr.mxu0 0.0
        %2717 = vmatpush2.msra.mxu0 0.0
        %2718 = vmatprep.subr.mxu0 0.0
        %2719 = vmatpush2.msra.mxu0 0.0
        %2720 = vmatprep.subr.mxu0 0.0
        %2721 = vmatpush2.msra.mxu0 0.0
        %2722 = vmatprep.subr.mxu0 0.0
        %2723 = vmatpush2.msra.mxu0 0.0
        %2724 = vmatprep.subr.mxu0 0.0
        %2725 = vmatpush2.msra.mxu0 0.0
        %2726 = vmatprep.subr.mxu0 0.0
        %2727 = vmatpush2.msra.mxu0 0.0
        %2728 = vmatprep.subr.mxu0 0.0
        %2729 = vmatpush2.msra.mxu0 0.0
        %2730 = vmatprep.subr.mxu0 0.0
        %2731 = vmatpush2.msra.mxu0 0.0
        %2732 = vmatprep.subr.mxu0 0.0
        %2733 = vmatpush2.msra.mxu0 0.0
        %2734 = vmatprep.subr.mxu0 0.0
        %2735 = vmatpush2.msra.mxu0 0.0
        %2736 = vmatprep.subr.mxu0 0.0
        %2737 = vmatpush2.msra.mxu0 0.0
        %2738 = vmatprep.subr.mxu0 0.0
        %2739 = vmatpush2.msra.mxu0 0.0
        %2740 = vmatprep.subr.mxu0 0.0
        %2741 = vmatpush2.msra.mxu0 0.0
        %2742 = vmatprep.subr.mxu0 0.0
        %2743 = vmatpush2.msra.mxu0 0.0
        %2744 = vmatprep.subr.mxu0 0.0
        %2745 = vmatpush2.msra.mxu0 0.0
        %2746 = vmatprep.mubr.f32.mxu0 0.0
        %2747 = vmatmul.mubr.f32.gmra.mxu0 %v2680
        %v2748 = vpop.f32.mrf.mxu0
        %v2749 = vadd.f32 0.0, %v2748
        %v2750 = vpop.f32.mrf.mxu0
        %2751 = vdwg.mxu0
        %v2752 = vrcp.pop %v2602
        %v2753 = vrcp.pop %v2605
        %v2754 = vmul.f32 %v2676, %v2752
        %v2755 = vmul.f32 %v2749, %v2753
        %2756 = vrot.lane.b32.xlu0 %v2430, 112
        %v2757 = vpop.permute.xlu0 %2756
        %2758 = vrot.lane.b32.xlu0 %v2420, 48
        %v2759 = vpop.permute.xlu0 %2758
        %v2760 = vsel %vm608, %v2757, 0
        %v2762 = vsel %vm608, %v2759, 0
        %2764 = vmatprep.subr.mxu0 0.0
        %2765 = vmatpush1.xpose.msra.mxu0 0.0
        %2766 = vmatprep.subr.mxu0 0.0
        %2767 = vmatpush1.xpose.msra.mxu0 0.0
        %2768 = vmatprep.subr.mxu0 0.0
        %2769 = vmatpush1.xpose.msra.mxu0 0.0
        %2770 = vmatprep.subr.mxu0 0.0
        %2771 = vmatpush1.xpose.msra.mxu0 0.0
        %2772 = vmatprep.subr.mxu0 0.0
        %2773 = vmatpush1.xpose.msra.mxu0 0.0
        %2774 = vmatprep.subr.mxu0 0.0
        %2775 = vmatpush1.xpose.msra.mxu0 0.0
        %2776 = vmatprep.subr.mxu0 0.0
        %2777 = vmatpush1.xpose.msra.mxu0 0.0
        %2778 = vmatprep.subr.mxu0 0.0
        %2779 = vmatpush1.xpose.msra.mxu0 0.0
        %2780 = vmatprep.subr.mxu0 0.0
        %2781 = vmatpush1.xpose.msra.mxu0 0.0
        %2782 = vmatprep.subr.mxu0 0.0
        %2783 = vmatpush1.xpose.msra.mxu0 0.0
        %2784 = vmatprep.subr.mxu0 0.0
        %2785 = vmatpush1.xpose.msra.mxu0 0.0
        %2786 = vmatprep.subr.mxu0 0.0
        %2787 = vmatpush1.xpose.msra.mxu0 0.0
        %2788 = vmatprep.subr.mxu0 0.0
        %2789 = vmatpush1.xpose.msra.mxu0 0.0
        %2790 = vmatprep.subr.mxu0 0.0
        %2791 = vmatpush1.xpose.msra.mxu0 0.0
        %2792 = vmatprep.subr.mxu0 0.0
        %2793 = vmatpush1.xpose.msra.mxu0 0.0
        %2794 = vmatprep.subr.mxu0 0.0
        %2795 = vmatpush1.xpose.msra.mxu0 %v2762
        %2796 = vmatprep.subr.mxu0 0.0
        %2797 = vmatpush2.xpose.msra.mxu0 0.0
        %2798 = vmatprep.subr.mxu0 0.0
        %2799 = vmatpush2.xpose.msra.mxu0 0.0
        %2800 = vmatprep.subr.mxu0 0.0
        %2801 = vmatpush2.xpose.msra.mxu0 0.0
        %2802 = vmatprep.subr.mxu0 0.0
        %2803 = vmatpush2.xpose.msra.mxu0 0.0
        %2804 = vmatprep.subr.mxu0 0.0
        %2805 = vmatpush2.xpose.msra.mxu0 0.0
        %2806 = vmatprep.subr.mxu0 0.0
        %2807 = vmatpush2.xpose.msra.mxu0 0.0
        %2808 = vmatprep.subr.mxu0 0.0
        %2809 = vmatpush2.xpose.msra.mxu0 0.0
        %2810 = vmatprep.subr.mxu0 0.0
        %2811 = vmatpush2.xpose.msra.mxu0 0.0
        %2812 = vmatprep.subr.mxu0 0.0
        %2813 = vmatpush2.xpose.msra.mxu0 0.0
        %2814 = vmatprep.subr.mxu0 0.0
        %2815 = vmatpush2.xpose.msra.mxu0 0.0
        %2816 = vmatprep.subr.mxu0 0.0
        %2817 = vmatpush2.xpose.msra.mxu0 0.0
        %2818 = vmatprep.subr.mxu0 0.0
        %2819 = vmatpush2.xpose.msra.mxu0 0.0
        %2820 = vmatprep.subr.mxu0 0.0
        %2821 = vmatpush2.xpose.msra.mxu0 0.0
        %2822 = vmatprep.subr.mxu0 0.0
        %2823 = vmatpush2.xpose.msra.mxu0 0.0
        %2824 = vmatprep.subr.mxu0 0.0
        %2825 = vmatpush2.xpose.msra.mxu0 0.0
        %2826 = vmatprep.subr.mxu0 0.0
        %2827 = vmatpush2.xpose.msra.mxu0 0.0
        %2828 = vmatprep.mubr.f32.mxu0 0.0
        %2829 = vmatmul.mubr.f32.gmra.mxu0 %v2760
        %v2830 = vpop.f32.mrf.mxu0
        %v2831 = vadd.f32 %v603, %v2830
        %v2832 = vpop.f32.mrf.mxu0
        %2833 = vdwg.mxu0
        %2834 = vrot.lane.b32.xlu0 %v2431, 112
        %v2835 = vpop.permute.xlu0 %2834
        %2836 = vrot.lane.b32.xlu0 %v2426, 48
        %v2837 = vpop.permute.xlu0 %2836
        %v2838 = vsel %vm608, %v2835, 0
        %v2840 = vsel %vm608, %v2837, 0
        %2842 = vmatprep.subr.mxu0 0.0
        %2843 = vmatpush1.xpose.msra.mxu0 0.0
        %2844 = vmatprep.subr.mxu0 0.0
        %2845 = vmatpush1.xpose.msra.mxu0 0.0
        %2846 = vmatprep.subr.mxu0 0.0
        %2847 = vmatpush1.xpose.msra.mxu0 0.0
        %2848 = vmatprep.subr.mxu0 0.0
        %2849 = vmatpush1.xpose.msra.mxu0 0.0
        %2850 = vmatprep.subr.mxu0 0.0
        %2851 = vmatpush1.xpose.msra.mxu0 0.0
        %2852 = vmatprep.subr.mxu0 0.0
        %2853 = vmatpush1.xpose.msra.mxu0 0.0
        %2854 = vmatprep.subr.mxu0 0.0
        %2855 = vmatpush1.xpose.msra.mxu0 0.0
        %2856 = vmatprep.subr.mxu0 0.0
        %2857 = vmatpush1.xpose.msra.mxu0 0.0
        %2858 = vmatprep.subr.mxu0 0.0
        %2859 = vmatpush1.xpose.msra.mxu0 0.0
        %2860 = vmatprep.subr.mxu0 0.0
        %2861 = vmatpush1.xpose.msra.mxu0 0.0
        %2862 = vmatprep.subr.mxu0 0.0
        %2863 = vmatpush1.xpose.msra.mxu0 0.0
        %2864 = vmatprep.subr.mxu0 0.0
        %2865 = vmatpush1.xpose.msra.mxu0 0.0
        %2866 = vmatprep.subr.mxu0 0.0
        %2867 = vmatpush1.xpose.msra.mxu0 0.0
        %2868 = vmatprep.subr.mxu0 0.0
        %2869 = vmatpush1.xpose.msra.mxu0 0.0
        %2870 = vmatprep.subr.mxu0 0.0
        %2871 = vmatpush1.xpose.msra.mxu0 0.0
        %2872 = vmatprep.subr.mxu0 0.0
        %2873 = vmatpush1.xpose.msra.mxu0 %v2840
        %2874 = vmatprep.subr.mxu0 0.0
        %2875 = vmatpush2.xpose.msra.mxu0 0.0
        %2876 = vmatprep.subr.mxu0 0.0
        %2877 = vmatpush2.xpose.msra.mxu0 0.0
        %2878 = vmatprep.subr.mxu0 0.0
        %2879 = vmatpush2.xpose.msra.mxu0 0.0
        %2880 = vmatprep.subr.mxu0 0.0
        %2881 = vmatpush2.xpose.msra.mxu0 0.0
        %2882 = vmatprep.subr.mxu0 0.0
        %2883 = vmatpush2.xpose.msra.mxu0 0.0
        %2884 = vmatprep.subr.mxu0 0.0
        %2885 = vmatpush2.xpose.msra.mxu0 0.0
        %2886 = vmatprep.subr.mxu0 0.0
        %2887 = vmatpush2.xpose.msra.mxu0 0.0
        %2888 = vmatprep.subr.mxu0 0.0
        %2889 = vmatpush2.xpose.msra.mxu0 0.0
        %2890 = vmatprep.subr.mxu0 0.0
        %2891 = vmatpush2.xpose.msra.mxu0 0.0
        %2892 = vmatprep.subr.mxu0 0.0
        %2893 = vmatpush2.xpose.msra.mxu0 0.0
        %2894 = vmatprep.subr.mxu0 0.0
        %2895 = vmatpush2.xpose.msra.mxu0 0.0
        %2896 = vmatprep.subr.mxu0 0.0
        %2897 = vmatpush2.xpose.msra.mxu0 0.0
        %2898 = vmatprep.subr.mxu0 0.0
        %2899 = vmatpush2.xpose.msra.mxu0 0.0
        %2900 = vmatprep.subr.mxu0 0.0
        %2901 = vmatpush2.xpose.msra.mxu0 0.0
        %2902 = vmatprep.subr.mxu0 0.0
        %2903 = vmatpush2.xpose.msra.mxu0 0.0
        %2904 = vmatprep.subr.mxu0 0.0
        %2905 = vmatpush2.xpose.msra.mxu0 0.0
        %2906 = vmatprep.mubr.f32.mxu0 0.0
        %2907 = vmatmul.mubr.f32.gmra.mxu0 %v2838
        %v2908 = vpop.f32.mrf.mxu0
        %v2909 = vadd.f32 %v603, %v2908
        %v2910 = vpop.f32.mrf.mxu0
        %2911 = vdwg.mxu0
        %v2912 = vsel %vm762, %v2831, -inf
        %2913 = vmax.xlane.f32.xlu0 %v2912
        %v2914 = vpop.xlane.xlu0 %2913
        %v2915 = vsel %vm762, %v2909, -inf
        %2916 = vmax.xlane.f32.xlu0 %v2915
        %v2917 = vpop.xlane.xlu0 %2916
        %v2918 = vsub.f32 %v2831, %v2914
        %v2919 = vsub.f32 %v2909, %v2917
        %v2920 = vmul.f32 %v2918, 1.442695
        %v2921 = vpow.pop %v2920
        %v2922 = vmul.f32 %v2919, 1.442695
        %v2923 = vpow.pop %v2922
        %v2924 = vsel %vm762, %v2921, 0.0
        %2925 = vadd.xlane.f32.xlu0 %v2924
        %v2926 = vpop.xlane.xlu0 %2925
        %v2927 = vsel %vm762, %v2923, 0.0
        %2928 = vadd.xlane.f32.xlu0 %v2927
        %v2929 = vpop.xlane.xlu0 %2928
        %2931 = vrot.lane.b32.xlu0 %v2422, 112
        %v2932 = vpop.permute.xlu0 %2931
        %v2935 = vsel %vm762, %v2921, 0
        %2937 = vmatprep.subr.mxu0 0.0
        %2938 = vmatpush1.msra.mxu0 0.0
        %2939 = vmatprep.subr.mxu0 0.0
        %2940 = vmatpush1.msra.mxu0 0.0
        %2941 = vmatprep.subr.mxu0 0.0
        %2942 = vmatpush1.msra.mxu0 0.0
        %2943 = vmatprep.subr.mxu0 0.0
        %2944 = vmatpush1.msra.mxu0 0.0
        %2945 = vmatprep.subr.mxu0 0.0
        %2946 = vmatpush1.msra.mxu0 0.0
        %2947 = vmatprep.subr.mxu0 0.0
        %2948 = vmatpush1.msra.mxu0 0.0
        %2949 = vmatprep.subr.mxu0 0.0
        %2950 = vmatpush1.msra.mxu0 0.0
        %2951 = vmatprep.subr.mxu0 0.0
        %2952 = vmatpush1.msra.mxu0 0.0
        %2953 = vmatprep.subr.mxu0 0.0
        %2954 = vmatpush1.msra.mxu0 0.0
        %2955 = vmatprep.subr.mxu0 0.0
        %2956 = vmatpush1.msra.mxu0 0.0
        %2957 = vmatprep.subr.mxu0 0.0
        %2958 = vmatpush1.msra.mxu0 0.0
        %2959 = vmatprep.subr.mxu0 0.0
        %2960 = vmatpush1.msra.mxu0 0.0
        %2961 = vmatprep.subr.mxu0 0.0
        %2962 = vmatpush1.msra.mxu0 0.0
        %2963 = vmatprep.subr.mxu0 0.0
        %2964 = vmatpush1.msra.mxu0 0.0
        %2965 = vmatprep.subr.mxu0 0.0
        %2966 = vmatpush1.msra.mxu0 0.0
        %2967 = vmatprep.subr.mxu0 0.0
        %2968 = vmatpush1.msra.mxu0 %v2932
        %2969 = vmatprep.subr.mxu0 0.0
        %2970 = vmatpush2.msra.mxu0 0.0
        %2971 = vmatprep.subr.mxu0 0.0
        %2972 = vmatpush2.msra.mxu0 0.0
        %2973 = vmatprep.subr.mxu0 0.0
        %2974 = vmatpush2.msra.mxu0 0.0
        %2975 = vmatprep.subr.mxu0 0.0
        %2976 = vmatpush2.msra.mxu0 0.0
        %2977 = vmatprep.subr.mxu0 0.0
        %2978 = vmatpush2.msra.mxu0 0.0
        %2979 = vmatprep.subr.mxu0 0.0
        %2980 = vmatpush2.msra.mxu0 0.0
        %2981 = vmatprep.subr.mxu0 0.0
        %2982 = vmatpush2.msra.mxu0 0.0
        %2983 = vmatprep.subr.mxu0 0.0
        %2984 = vmatpush2.msra.mxu0 0.0
        %2985 = vmatprep.subr.mxu0 0.0
        %2986 = vmatpush2.msra.mxu0 0.0
        %2987 = vmatprep.subr.mxu0 0.0
        %2988 = vmatpush2.msra.mxu0 0.0
        %2989 = vmatprep.subr.mxu0 0.0
        %2990 = vmatpush2.msra.mxu0 0.0
        %2991 = vmatprep.subr.mxu0 0.0
        %2992 = vmatpush2.msra.mxu0 0.0
        %2993 = vmatprep.subr.mxu0 0.0
        %2994 = vmatpush2.msra.mxu0 0.0
        %2995 = vmatprep.subr.mxu0 0.0
        %2996 = vmatpush2.msra.mxu0 0.0
        %2997 = vmatprep.subr.mxu0 0.0
        %2998 = vmatpush2.msra.mxu0 0.0
        %2999 = vmatprep.subr.mxu0 0.0
        %3000 = vmatpush2.msra.mxu0 0.0
        %3001 = vmatprep.mubr.f32.mxu0 0.0
        %3002 = vmatmul.mubr.f32.gmra.mxu0 %v2935
        %v3003 = vpop.f32.mrf.mxu0
        %v3004 = vadd.f32 0.0, %v3003
        %v3005 = vpop.f32.mrf.mxu0
        %3006 = vdwg.mxu0
        %3008 = vrot.lane.b32.xlu0 %v2428, 112
        %v3009 = vpop.permute.xlu0 %3008
        %v3012 = vsel %vm762, %v2923, 0
        %3014 = vmatprep.subr.mxu0 0.0
        %3015 = vmatpush1.msra.mxu0 0.0
        %3016 = vmatprep.subr.mxu0 0.0
        %3017 = vmatpush1.msra.mxu0 0.0
        %3018 = vmatprep.subr.mxu0 0.0
        %3019 = vmatpush1.msra.mxu0 0.0
        %3020 = vmatprep.subr.mxu0 0.0
        %3021 = vmatpush1.msra.mxu0 0.0
        %3022 = vmatprep.subr.mxu0 0.0
        %3023 = vmatpush1.msra.mxu0 0.0
        %3024 = vmatprep.subr.mxu0 0.0
        %3025 = vmatpush1.msra.mxu0 0.0
        %3026 = vmatprep.subr.mxu0 0.0
        %3027 = vmatpush1.msra.mxu0 0.0
        %3028 = vmatprep.subr.mxu0 0.0
        %3029 = vmatpush1.msra.mxu0 0.0
        %3030 = vmatprep.subr.mxu0 0.0
        %3031 = vmatpush1.msra.mxu0 0.0
        %3032 = vmatprep.subr.mxu0 0.0
        %3033 = vmatpush1.msra.mxu0 0.0
        %3034 = vmatprep.subr.mxu0 0.0
        %3035 = vmatpush1.msra.mxu0 0.0
        %3036 = vmatprep.subr.mxu0 0.0
        %3037 = vmatpush1.msra.mxu0 0.0
        %3038 = vmatprep.subr.mxu0 0.0
        %3039 = vmatpush1.msra.mxu0 0.0
        %3040 = vmatprep.subr.mxu0 0.0
        %3041 = vmatpush1.msra.mxu0 0.0
        %3042 = vmatprep.subr.mxu0 0.0
        %3043 = vmatpush1.msra.mxu0 0.0
        %3044 = vmatprep.subr.mxu0 0.0
        %3045 = vmatpush1.msra.mxu0 %v3009
        %3046 = vmatprep.subr.mxu0 0.0
        %3047 = vmatpush2.msra.mxu0 0.0
        %3048 = vmatprep.subr.mxu0 0.0
        %3049 = vmatpush2.msra.mxu0 0.0
        %3050 = vmatprep.subr.mxu0 0.0
        %3051 = vmatpush2.msra.mxu0 0.0
        %3052 = vmatprep.subr.mxu0 0.0
        %3053 = vmatpush2.msra.mxu0 0.0
        %3054 = vmatprep.subr.mxu0 0.0
        %3055 = vmatpush2.msra.mxu0 0.0
        %3056 = vmatprep.subr.mxu0 0.0
        %3057 = vmatpush2.msra.mxu0 0.0
        %3058 = vmatprep.subr.mxu0 0.0
        %3059 = vmatpush2.msra.mxu0 0.0
        %3060 = vmatprep.subr.mxu0 0.0
        %3061 = vmatpush2.msra.mxu0 0.0
        %3062 = vmatprep.subr.mxu0 0.0
        %3063 = vmatpush2.msra.mxu0 0.0
        %3064 = vmatprep.subr.mxu0 0.0
        %3065 = vmatpush2.msra.mxu0 0.0
        %3066 = vmatprep.subr.mxu0 0.0
        %3067 = vmatpush2.msra.mxu0 0.0
        %3068 = vmatprep.subr.mxu0 0.0
        %3069 = vmatpush2.msra.mxu0 0.0
        %3070 = vmatprep.subr.mxu0 0.0
        %3071 = vmatpush2.msra.mxu0 0.0
        %3072 = vmatprep.subr.mxu0 0.0
        %3073 = vmatpush2.msra.mxu0 0.0
        %3074 = vmatprep.subr.mxu0 0.0
        %3075 = vmatpush2.msra.mxu0 0.0
        %3076 = vmatprep.subr.mxu0 0.0
        %3077 = vmatpush2.msra.mxu0 0.0
        %3078 = vmatprep.mubr.f32.mxu0 0.0
        %3079 = vmatmul.mubr.f32.gmra.mxu0 %v3012
        %v3080 = vpop.f32.mrf.mxu0
        %v3081 = vadd.f32 0.0, %v3080
        %v3082 = vpop.f32.mrf.mxu0
        %3083 = vdwg.mxu0
        %v3084 = vrcp.pop %v2926
        %v3085 = vrcp.pop %v2929
        %v3086 = vmul.f32 %v3004, %v3084
        %v3087 = vmul.f32 %v3081, %v3085
        %3088 = vrot.lane.b32.xlu0 %v2430, 96
        %v3089 = vpop.permute.xlu0 %3088
        %3090 = vrot.lane.b32.xlu0 %v2420, 32
        %v3091 = vpop.permute.xlu0 %3090
        %v3092 = vsel %vm608, %v3089, 0
        %v3094 = vsel %vm608, %v3091, 0
        %3096 = vmatprep.subr.mxu0 0.0
        %3097 = vmatpush1.xpose.msra.mxu0 0.0
        %3098 = vmatprep.subr.mxu0 0.0
        %3099 = vmatpush1.xpose.msra.mxu0 0.0
        %3100 = vmatprep.subr.mxu0 0.0
        %3101 = vmatpush1.xpose.msra.mxu0 0.0
        %3102 = vmatprep.subr.mxu0 0.0
        %3103 = vmatpush1.xpose.msra.mxu0 0.0
        %3104 = vmatprep.subr.mxu0 0.0
        %3105 = vmatpush1.xpose.msra.mxu0 0.0
        %3106 = vmatprep.subr.mxu0 0.0
        %3107 = vmatpush1.xpose.msra.mxu0 0.0
        %3108 = vmatprep.subr.mxu0 0.0
        %3109 = vmatpush1.xpose.msra.mxu0 0.0
        %3110 = vmatprep.subr.mxu0 0.0
        %3111 = vmatpush1.xpose.msra.mxu0 0.0
        %3112 = vmatprep.subr.mxu0 0.0
        %3113 = vmatpush1.xpose.msra.mxu0 0.0
        %3114 = vmatprep.subr.mxu0 0.0
        %3115 = vmatpush1.xpose.msra.mxu0 0.0
        %3116 = vmatprep.subr.mxu0 0.0
        %3117 = vmatpush1.xpose.msra.mxu0 0.0
        %3118 = vmatprep.subr.mxu0 0.0
        %3119 = vmatpush1.xpose.msra.mxu0 0.0
        %3120 = vmatprep.subr.mxu0 0.0
        %3121 = vmatpush1.xpose.msra.mxu0 0.0
        %3122 = vmatprep.subr.mxu0 0.0
        %3123 = vmatpush1.xpose.msra.mxu0 0.0
        %3124 = vmatprep.subr.mxu0 0.0
        %3125 = vmatpush1.xpose.msra.mxu0 0.0
        %3126 = vmatprep.subr.mxu0 0.0
        %3127 = vmatpush1.xpose.msra.mxu0 %v3094
        %3128 = vmatprep.subr.mxu0 0.0
        %3129 = vmatpush2.xpose.msra.mxu0 0.0
        %3130 = vmatprep.subr.mxu0 0.0
        %3131 = vmatpush2.xpose.msra.mxu0 0.0
        %3132 = vmatprep.subr.mxu0 0.0
        %3133 = vmatpush2.xpose.msra.mxu0 0.0
        %3134 = vmatprep.subr.mxu0 0.0
        %3135 = vmatpush2.xpose.msra.mxu0 0.0
        %3136 = vmatprep.subr.mxu0 0.0
        %3137 = vmatpush2.xpose.msra.mxu0 0.0
        %3138 = vmatprep.subr.mxu0 0.0
        %3139 = vmatpush2.xpose.msra.mxu0 0.0
        %3140 = vmatprep.subr.mxu0 0.0
        %3141 = vmatpush2.xpose.msra.mxu0 0.0
        %3142 = vmatprep.subr.mxu0 0.0
        %3143 = vmatpush2.xpose.msra.mxu0 0.0
        %3144 = vmatprep.subr.mxu0 0.0
        %3145 = vmatpush2.xpose.msra.mxu0 0.0
        %3146 = vmatprep.subr.mxu0 0.0
        %3147 = vmatpush2.xpose.msra.mxu0 0.0
        %3148 = vmatprep.subr.mxu0 0.0
        %3149 = vmatpush2.xpose.msra.mxu0 0.0
        %3150 = vmatprep.subr.mxu0 0.0
        %3151 = vmatpush2.xpose.msra.mxu0 0.0
        %3152 = vmatprep.subr.mxu0 0.0
        %3153 = vmatpush2.xpose.msra.mxu0 0.0
        %3154 = vmatprep.subr.mxu0 0.0
        %3155 = vmatpush2.xpose.msra.mxu0 0.0
        %3156 = vmatprep.subr.mxu0 0.0
        %3157 = vmatpush2.xpose.msra.mxu0 0.0
        %3158 = vmatprep.subr.mxu0 0.0
        %3159 = vmatpush2.xpose.msra.mxu0 0.0
        %3160 = vmatprep.mubr.f32.mxu0 0.0
        %3161 = vmatmul.mubr.f32.gmra.mxu0 %v3092
        %v3162 = vpop.f32.mrf.mxu0
        %v3163 = vadd.f32 %v603, %v3162
        %v3164 = vpop.f32.mrf.mxu0
        %3165 = vdwg.mxu0
        %3166 = vrot.lane.b32.xlu0 %v2431, 96
        %v3167 = vpop.permute.xlu0 %3166
        %3168 = vrot.lane.b32.xlu0 %v2426, 32
        %v3169 = vpop.permute.xlu0 %3168
        %v3170 = vsel %vm608, %v3167, 0
        %v3172 = vsel %vm608, %v3169, 0
        %3174 = vmatprep.subr.mxu0 0.0
        %3175 = vmatpush1.xpose.msra.mxu0 0.0
        %3176 = vmatprep.subr.mxu0 0.0
        %3177 = vmatpush1.xpose.msra.mxu0 0.0
        %3178 = vmatprep.subr.mxu0 0.0
        %3179 = vmatpush1.xpose.msra.mxu0 0.0
        %3180 = vmatprep.subr.mxu0 0.0
        %3181 = vmatpush1.xpose.msra.mxu0 0.0
        %3182 = vmatprep.subr.mxu0 0.0
        %3183 = vmatpush1.xpose.msra.mxu0 0.0
        %3184 = vmatprep.subr.mxu0 0.0
        %3185 = vmatpush1.xpose.msra.mxu0 0.0
        %3186 = vmatprep.subr.mxu0 0.0
        %3187 = vmatpush1.xpose.msra.mxu0 0.0
        %3188 = vmatprep.subr.mxu0 0.0
        %3189 = vmatpush1.xpose.msra.mxu0 0.0
        %3190 = vmatprep.subr.mxu0 0.0
        %3191 = vmatpush1.xpose.msra.mxu0 0.0
        %3192 = vmatprep.subr.mxu0 0.0
        %3193 = vmatpush1.xpose.msra.mxu0 0.0
        %3194 = vmatprep.subr.mxu0 0.0
        %3195 = vmatpush1.xpose.msra.mxu0 0.0
        %3196 = vmatprep.subr.mxu0 0.0
        %3197 = vmatpush1.xpose.msra.mxu0 0.0
        %3198 = vmatprep.subr.mxu0 0.0
        %3199 = vmatpush1.xpose.msra.mxu0 0.0
        %3200 = vmatprep.subr.mxu0 0.0
        %3201 = vmatpush1.xpose.msra.mxu0 0.0
        %3202 = vmatprep.subr.mxu0 0.0
        %3203 = vmatpush1.xpose.msra.mxu0 0.0
        %3204 = vmatprep.subr.mxu0 0.0
        %3205 = vmatpush1.xpose.msra.mxu0 %v3172
        %3206 = vmatprep.subr.mxu0 0.0
        %3207 = vmatpush2.xpose.msra.mxu0 0.0
        %3208 = vmatprep.subr.mxu0 0.0
        %3209 = vmatpush2.xpose.msra.mxu0 0.0
        %3210 = vmatprep.subr.mxu0 0.0
        %3211 = vmatpush2.xpose.msra.mxu0 0.0
        %3212 = vmatprep.subr.mxu0 0.0
        %3213 = vmatpush2.xpose.msra.mxu0 0.0
        %3214 = vmatprep.subr.mxu0 0.0
        %3215 = vmatpush2.xpose.msra.mxu0 0.0
        %3216 = vmatprep.subr.mxu0 0.0
        %3217 = vmatpush2.xpose.msra.mxu0 0.0
        %3218 = vmatprep.subr.mxu0 0.0
        %3219 = vmatpush2.xpose.msra.mxu0 0.0
        %3220 = vmatprep.subr.mxu0 0.0
        %3221 = vmatpush2.xpose.msra.mxu0 0.0
        %3222 = vmatprep.subr.mxu0 0.0
        %3223 = vmatpush2.xpose.msra.mxu0 0.0
        %3224 = vmatprep.subr.mxu0 0.0
        %3225 = vmatpush2.xpose.msra.mxu0 0.0
        %3226 = vmatprep.subr.mxu0 0.0
        %3227 = vmatpush2.xpose.msra.mxu0 0.0
        %3228 = vmatprep.subr.mxu0 0.0
        %3229 = vmatpush2.xpose.msra.mxu0 0.0
        %3230 = vmatprep.subr.mxu0 0.0
        %3231 = vmatpush2.xpose.msra.mxu0 0.0
        %3232 = vmatprep.subr.mxu0 0.0
        %3233 = vmatpush2.xpose.msra.mxu0 0.0
        %3234 = vmatprep.subr.mxu0 0.0
        %3235 = vmatpush2.xpose.msra.mxu0 0.0
        %3236 = vmatprep.subr.mxu0 0.0
        %3237 = vmatpush2.xpose.msra.mxu0 0.0
        %3238 = vmatprep.mubr.f32.mxu0 0.0
        %3239 = vmatmul.mubr.f32.gmra.mxu0 %v3170
        %v3240 = vpop.f32.mrf.mxu0
        %v3241 = vadd.f32 %v603, %v3240
        %v3242 = vpop.f32.mrf.mxu0
        %3243 = vdwg.mxu0
        %v3244 = vsel %vm762, %v3163, -inf
        %3245 = vmax.xlane.f32.xlu0 %v3244
        %v3246 = vpop.xlane.xlu0 %3245
        %v3247 = vsel %vm762, %v3241, -inf
        %3248 = vmax.xlane.f32.xlu0 %v3247
        %v3249 = vpop.xlane.xlu0 %3248
        %v3250 = vsub.f32 %v3163, %v3246
        %v3251 = vsub.f32 %v3241, %v3249
        %v3252 = vmul.f32 %v3250, 1.442695
        %v3253 = vpow.pop %v3252
        %v3254 = vmul.f32 %v3251, 1.442695
        %v3255 = vpow.pop %v3254
        %v3256 = vsel %vm762, %v3253, 0.0
        %3257 = vadd.xlane.f32.xlu0 %v3256
        %v3258 = vpop.xlane.xlu0 %3257
        %v3259 = vsel %vm762, %v3255, 0.0
        %3260 = vadd.xlane.f32.xlu0 %v3259
        %v3261 = vpop.xlane.xlu0 %3260
        %3262 = vrot.lane.b32.xlu0 %v2422, 96
        %v3263 = vpop.permute.xlu0 %3262
        %v3266 = vsel %vm762, %v3253, 0
        %3268 = vmatprep.subr.mxu0 0.0
        %3269 = vmatpush1.msra.mxu0 0.0
        %3270 = vmatprep.subr.mxu0 0.0
        %3271 = vmatpush1.msra.mxu0 0.0
        %3272 = vmatprep.subr.mxu0 0.0
        %3273 = vmatpush1.msra.mxu0 0.0
        %3274 = vmatprep.subr.mxu0 0.0
        %3275 = vmatpush1.msra.mxu0 0.0
        %3276 = vmatprep.subr.mxu0 0.0
        %3277 = vmatpush1.msra.mxu0 0.0
        %3278 = vmatprep.subr.mxu0 0.0
        %3279 = vmatpush1.msra.mxu0 0.0
        %3280 = vmatprep.subr.mxu0 0.0
        %3281 = vmatpush1.msra.mxu0 0.0
        %3282 = vmatprep.subr.mxu0 0.0
        %3283 = vmatpush1.msra.mxu0 0.0
        %3284 = vmatprep.subr.mxu0 0.0
        %3285 = vmatpush1.msra.mxu0 0.0
        %3286 = vmatprep.subr.mxu0 0.0
        %3287 = vmatpush1.msra.mxu0 0.0
        %3288 = vmatprep.subr.mxu0 0.0
        %3289 = vmatpush1.msra.mxu0 0.0
        %3290 = vmatprep.subr.mxu0 0.0
        %3291 = vmatpush1.msra.mxu0 0.0
        %3292 = vmatprep.subr.mxu0 0.0
        %3293 = vmatpush1.msra.mxu0 0.0
        %3294 = vmatprep.subr.mxu0 0.0
        %3295 = vmatpush1.msra.mxu0 0.0
        %3296 = vmatprep.subr.mxu0 0.0
        %3297 = vmatpush1.msra.mxu0 0.0
        %3298 = vmatprep.subr.mxu0 0.0
        %3299 = vmatpush1.msra.mxu0 %v3263
        %3300 = vmatprep.subr.mxu0 0.0
        %3301 = vmatpush2.msra.mxu0 0.0
        %3302 = vmatprep.subr.mxu0 0.0
        %3303 = vmatpush2.msra.mxu0 0.0
        %3304 = vmatprep.subr.mxu0 0.0
        %3305 = vmatpush2.msra.mxu0 0.0
        %3306 = vmatprep.subr.mxu0 0.0
        %3307 = vmatpush2.msra.mxu0 0.0
        %3308 = vmatprep.subr.mxu0 0.0
        %3309 = vmatpush2.msra.mxu0 0.0
        %3310 = vmatprep.subr.mxu0 0.0
        %3311 = vmatpush2.msra.mxu0 0.0
        %3312 = vmatprep.subr.mxu0 0.0
        %3313 = vmatpush2.msra.mxu0 0.0
        %3314 = vmatprep.subr.mxu0 0.0
        %3315 = vmatpush2.msra.mxu0 0.0
        %3316 = vmatprep.subr.mxu0 0.0
        %3317 = vmatpush2.msra.mxu0 0.0
        %3318 = vmatprep.subr.mxu0 0.0
        %3319 = vmatpush2.msra.mxu0 0.0
        %3320 = vmatprep.subr.mxu0 0.0
        %3321 = vmatpush2.msra.mxu0 0.0
        %3322 = vmatprep.subr.mxu0 0.0
        %3323 = vmatpush2.msra.mxu0 0.0
        %3324 = vmatprep.subr.mxu0 0.0
        %3325 = vmatpush2.msra.mxu0 0.0
        %3326 = vmatprep.subr.mxu0 0.0
        %3327 = vmatpush2.msra.mxu0 0.0
        %3328 = vmatprep.subr.mxu0 0.0
        %3329 = vmatpush2.msra.mxu0 0.0
        %3330 = vmatprep.subr.mxu0 0.0
        %3331 = vmatpush2.msra.mxu0 0.0
        %3332 = vmatprep.mubr.f32.mxu0 0.0
        %3333 = vmatmul.mubr.f32.gmra.mxu0 %v3266
        %v3334 = vpop.f32.mrf.mxu0
        %v3335 = vadd.f32 0.0, %v3334
        %v3336 = vpop.f32.mrf.mxu0
        %3337 = vdwg.mxu0
        %3338 = vrot.lane.b32.xlu0 %v2428, 96
        %v3339 = vpop.permute.xlu0 %3338
        %v3342 = vsel %vm762, %v3255, 0
        %3344 = vmatprep.subr.mxu0 0.0
        %3345 = vmatpush1.msra.mxu0 0.0
        %3346 = vmatprep.subr.mxu0 0.0
        %3347 = vmatpush1.msra.mxu0 0.0
        %3348 = vmatprep.subr.mxu0 0.0
        %3349 = vmatpush1.msra.mxu0 0.0
        %3350 = vmatprep.subr.mxu0 0.0
        %3351 = vmatpush1.msra.mxu0 0.0
        %3352 = vmatprep.subr.mxu0 0.0
        %3353 = vmatpush1.msra.mxu0 0.0
        %3354 = vmatprep.subr.mxu0 0.0
        %3355 = vmatpush1.msra.mxu0 0.0
        %3356 = vmatprep.subr.mxu0 0.0
        %3357 = vmatpush1.msra.mxu0 0.0
        %3358 = vmatprep.subr.mxu0 0.0
        %3359 = vmatpush1.msra.mxu0 0.0
        %3360 = vmatprep.subr.mxu0 0.0
        %3361 = vmatpush1.msra.mxu0 0.0
        %3362 = vmatprep.subr.mxu0 0.0
        %3363 = vmatpush1.msra.mxu0 0.0
        %3364 = vmatprep.subr.mxu0 0.0
        %3365 = vmatpush1.msra.mxu0 0.0
        %3366 = vmatprep.subr.mxu0 0.0
        %3367 = vmatpush1.msra.mxu0 0.0
        %3368 = vmatprep.subr.mxu0 0.0
        %3369 = vmatpush1.msra.mxu0 0.0
        %3370 = vmatprep.subr.mxu0 0.0
        %3371 = vmatpush1.msra.mxu0 0.0
        %3372 = vmatprep.subr.mxu0 0.0
        %3373 = vmatpush1.msra.mxu0 0.0
        %3374 = vmatprep.subr.mxu0 0.0
        %3375 = vmatpush1.msra.mxu0 %v3339
        %3376 = vmatprep.subr.mxu0 0.0
        %3377 = vmatpush2.msra.mxu0 0.0
        %3378 = vmatprep.subr.mxu0 0.0
        %3379 = vmatpush2.msra.mxu0 0.0
        %3380 = vmatprep.subr.mxu0 0.0
        %3381 = vmatpush2.msra.mxu0 0.0
        %3382 = vmatprep.subr.mxu0 0.0
        %3383 = vmatpush2.msra.mxu0 0.0
        %3384 = vmatprep.subr.mxu0 0.0
        %3385 = vmatpush2.msra.mxu0 0.0
        %3386 = vmatprep.subr.mxu0 0.0
        %3387 = vmatpush2.msra.mxu0 0.0
        %3388 = vmatprep.subr.mxu0 0.0
        %3389 = vmatpush2.msra.mxu0 0.0
        %3390 = vmatprep.subr.mxu0 0.0
        %3391 = vmatpush2.msra.mxu0 0.0
        %3392 = vmatprep.subr.mxu0 0.0
        %3393 = vmatpush2.msra.mxu0 0.0
        %3394 = vmatprep.subr.mxu0 0.0
        %3395 = vmatpush2.msra.mxu0 0.0
        %3396 = vmatprep.subr.mxu0 0.0
        %3397 = vmatpush2.msra.mxu0 0.0
        %3398 = vmatprep.subr.mxu0 0.0
        %3399 = vmatpush2.msra.mxu0 0.0
        %3400 = vmatprep.subr.mxu0 0.0
        %3401 = vmatpush2.msra.mxu0 0.0
        %3402 = vmatprep.subr.mxu0 0.0
        %3403 = vmatpush2.msra.mxu0 0.0
        %3404 = vmatprep.subr.mxu0 0.0
        %3405 = vmatpush2.msra.mxu0 0.0
        %3406 = vmatprep.subr.mxu0 0.0
        %3407 = vmatpush2.msra.mxu0 0.0
        %3408 = vmatprep.mubr.f32.mxu0 0.0
        %3409 = vmatmul.mubr.f32.gmra.mxu0 %v3342
        %v3410 = vpop.f32.mrf.mxu0
        %v3411 = vadd.f32 0.0, %v3410
        %v3412 = vpop.f32.mrf.mxu0
        %3413 = vdwg.mxu0
        %v3414 = vrcp.pop %v3258
        %v3415 = vrcp.pop %v3261
        %v3416 = vmul.f32 %v3335, %v3414
        %v3417 = vmul.f32 %v3411, %v3415
        %3418 = vrot.lane.b32.xlu0 %v2430, 80
        %v3419 = vpop.permute.xlu0 %3418
        %3420 = vrot.lane.b32.xlu0 %v2420, 16
        %v3421 = vpop.permute.xlu0 %3420
        %v3422 = vsel %vm608, %v3419, 0
        %v3424 = vsel %vm608, %v3421, 0
        %3426 = vmatprep.subr.mxu0 0.0
        %3427 = vmatpush1.xpose.msra.mxu0 0.0
        %3428 = vmatprep.subr.mxu0 0.0
        %3429 = vmatpush1.xpose.msra.mxu0 0.0
        %3430 = vmatprep.subr.mxu0 0.0
        %3431 = vmatpush1.xpose.msra.mxu0 0.0
        %3432 = vmatprep.subr.mxu0 0.0
        %3433 = vmatpush1.xpose.msra.mxu0 0.0
        %3434 = vmatprep.subr.mxu0 0.0
        %3435 = vmatpush1.xpose.msra.mxu0 0.0
        %3436 = vmatprep.subr.mxu0 0.0
        %3437 = vmatpush1.xpose.msra.mxu0 0.0
        %3438 = vmatprep.subr.mxu0 0.0
        %3439 = vmatpush1.xpose.msra.mxu0 0.0
        %3440 = vmatprep.subr.mxu0 0.0
        %3441 = vmatpush1.xpose.msra.mxu0 0.0
        %3442 = vmatprep.subr.mxu0 0.0
        %3443 = vmatpush1.xpose.msra.mxu0 0.0
        %3444 = vmatprep.subr.mxu0 0.0
        %3445 = vmatpush1.xpose.msra.mxu0 0.0
        %3446 = vmatprep.subr.mxu0 0.0
        %3447 = vmatpush1.xpose.msra.mxu0 0.0
        %3448 = vmatprep.subr.mxu0 0.0
        %3449 = vmatpush1.xpose.msra.mxu0 0.0
        %3450 = vmatprep.subr.mxu0 0.0
        %3451 = vmatpush1.xpose.msra.mxu0 0.0
        %3452 = vmatprep.subr.mxu0 0.0
        %3453 = vmatpush1.xpose.msra.mxu0 0.0
        %3454 = vmatprep.subr.mxu0 0.0
        %3455 = vmatpush1.xpose.msra.mxu0 0.0
        %3456 = vmatprep.subr.mxu0 0.0
        %3457 = vmatpush1.xpose.msra.mxu0 %v3424
        %3458 = vmatprep.subr.mxu0 0.0
        %3459 = vmatpush2.xpose.msra.mxu0 0.0
        %3460 = vmatprep.subr.mxu0 0.0
        %3461 = vmatpush2.xpose.msra.mxu0 0.0
        %3462 = vmatprep.subr.mxu0 0.0
        %3463 = vmatpush2.xpose.msra.mxu0 0.0
        %3464 = vmatprep.subr.mxu0 0.0
        %3465 = vmatpush2.xpose.msra.mxu0 0.0
        %3466 = vmatprep.subr.mxu0 0.0
        %3467 = vmatpush2.xpose.msra.mxu0 0.0
        %3468 = vmatprep.subr.mxu0 0.0
        %3469 = vmatpush2.xpose.msra.mxu0 0.0
        %3470 = vmatprep.subr.mxu0 0.0
        %3471 = vmatpush2.xpose.msra.mxu0 0.0
        %3472 = vmatprep.subr.mxu0 0.0
        %3473 = vmatpush2.xpose.msra.mxu0 0.0
        %3474 = vmatprep.subr.mxu0 0.0
        %3475 = vmatpush2.xpose.msra.mxu0 0.0
        %3476 = vmatprep.subr.mxu0 0.0
        %3477 = vmatpush2.xpose.msra.mxu0 0.0
        %3478 = vmatprep.subr.mxu0 0.0
        %3479 = vmatpush2.xpose.msra.mxu0 0.0
        %3480 = vmatprep.subr.mxu0 0.0
        %3481 = vmatpush2.xpose.msra.mxu0 0.0
        %3482 = vmatprep.subr.mxu0 0.0
        %3483 = vmatpush2.xpose.msra.mxu0 0.0
        %3484 = vmatprep.subr.mxu0 0.0
        %3485 = vmatpush2.xpose.msra.mxu0 0.0
        %3486 = vmatprep.subr.mxu0 0.0
        %3487 = vmatpush2.xpose.msra.mxu0 0.0
        %3488 = vmatprep.subr.mxu0 0.0
        %3489 = vmatpush2.xpose.msra.mxu0 0.0
        %3490 = vmatprep.mubr.f32.mxu0 0.0
        %3491 = vmatmul.mubr.f32.gmra.mxu0 %v3422
        %v3492 = vpop.f32.mrf.mxu0
        %v3493 = vadd.f32 %v603, %v3492
        %v3494 = vpop.f32.mrf.mxu0
        %3495 = vdwg.mxu0
        %3496 = vrot.lane.b32.xlu0 %v2431, 80
        %v3497 = vpop.permute.xlu0 %3496
        %3498 = vrot.lane.b32.xlu0 %v2426, 16
        %v3499 = vpop.permute.xlu0 %3498
        %v3500 = vsel %vm608, %v3497, 0
        %v3502 = vsel %vm608, %v3499, 0
        %3504 = vmatprep.subr.mxu0 0.0
        %3505 = vmatpush1.xpose.msra.mxu0 0.0
        %3506 = vmatprep.subr.mxu0 0.0
        %3507 = vmatpush1.xpose.msra.mxu0 0.0
        %3508 = vmatprep.subr.mxu0 0.0
        %3509 = vmatpush1.xpose.msra.mxu0 0.0
        %3510 = vmatprep.subr.mxu0 0.0
        %3511 = vmatpush1.xpose.msra.mxu0 0.0
        %3512 = vmatprep.subr.mxu0 0.0
        %3513 = vmatpush1.xpose.msra.mxu0 0.0
        %3514 = vmatprep.subr.mxu0 0.0
        %3515 = vmatpush1.xpose.msra.mxu0 0.0
        %3516 = vmatprep.subr.mxu0 0.0
        %3517 = vmatpush1.xpose.msra.mxu0 0.0
        %3518 = vmatprep.subr.mxu0 0.0
        %3519 = vmatpush1.xpose.msra.mxu0 0.0
        %3520 = vmatprep.subr.mxu0 0.0
        %3521 = vmatpush1.xpose.msra.mxu0 0.0
        %3522 = vmatprep.subr.mxu0 0.0
        %3523 = vmatpush1.xpose.msra.mxu0 0.0
        %3524 = vmatprep.subr.mxu0 0.0
        %3525 = vmatpush1.xpose.msra.mxu0 0.0
        %3526 = vmatprep.subr.mxu0 0.0
        %3527 = vmatpush1.xpose.msra.mxu0 0.0
        %3528 = vmatprep.subr.mxu0 0.0
        %3529 = vmatpush1.xpose.msra.mxu0 0.0
        %3530 = vmatprep.subr.mxu0 0.0
        %3531 = vmatpush1.xpose.msra.mxu0 0.0
        %3532 = vmatprep.subr.mxu0 0.0
        %3533 = vmatpush1.xpose.msra.mxu0 0.0
        %3534 = vmatprep.subr.mxu0 0.0
        %3535 = vmatpush1.xpose.msra.mxu0 %v3502
        %3536 = vmatprep.subr.mxu0 0.0
        %3537 = vmatpush2.xpose.msra.mxu0 0.0
        %3538 = vmatprep.subr.mxu0 0.0
        %3539 = vmatpush2.xpose.msra.mxu0 0.0
        %3540 = vmatprep.subr.mxu0 0.0
        %3541 = vmatpush2.xpose.msra.mxu0 0.0
        %3542 = vmatprep.subr.mxu0 0.0
        %3543 = vmatpush2.xpose.msra.mxu0 0.0
        %3544 = vmatprep.subr.mxu0 0.0
        %3545 = vmatpush2.xpose.msra.mxu0 0.0
        %3546 = vmatprep.subr.mxu0 0.0
        %3547 = vmatpush2.xpose.msra.mxu0 0.0
        %3548 = vmatprep.subr.mxu0 0.0
        %3549 = vmatpush2.xpose.msra.mxu0 0.0
        %3550 = vmatprep.subr.mxu0 0.0
        %3551 = vmatpush2.xpose.msra.mxu0 0.0
        %3552 = vmatprep.subr.mxu0 0.0
        %3553 = vmatpush2.xpose.msra.mxu0 0.0
        %3554 = vmatprep.subr.mxu0 0.0
        %3555 = vmatpush2.xpose.msra.mxu0 0.0
        %3556 = vmatprep.subr.mxu0 0.0
        %3557 = vmatpush2.xpose.msra.mxu0 0.0
        %3558 = vmatprep.subr.mxu0 0.0
        %3559 = vmatpush2.xpose.msra.mxu0 0.0
        %3560 = vmatprep.subr.mxu0 0.0
        %3561 = vmatpush2.xpose.msra.mxu0 0.0
        %3562 = vmatprep.subr.mxu0 0.0
        %3563 = vmatpush2.xpose.msra.mxu0 0.0
        %3564 = vmatprep.subr.mxu0 0.0
        %3565 = vmatpush2.xpose.msra.mxu0 0.0
        %3566 = vmatprep.subr.mxu0 0.0
        %3567 = vmatpush2.xpose.msra.mxu0 0.0
        %3568 = vmatprep.mubr.f32.mxu0 0.0
        %3569 = vmatmul.mubr.f32.gmra.mxu0 %v3500
        %v3570 = vpop.f32.mrf.mxu0
        %v3571 = vadd.f32 %v603, %v3570
        %v3572 = vpop.f32.mrf.mxu0
        %3573 = vdwg.mxu0
        %v3574 = vsel %vm762, %v3493, -inf
        %3575 = vmax.xlane.f32.xlu0 %v3574
        %v3576 = vpop.xlane.xlu0 %3575
        %v3577 = vsel %vm762, %v3571, -inf
        %3578 = vmax.xlane.f32.xlu0 %v3577
        %v3579 = vpop.xlane.xlu0 %3578
        %v3580 = vsub.f32 %v3493, %v3576
        %v3581 = vsub.f32 %v3571, %v3579
        %v3582 = vmul.f32 %v3580, 1.442695
        %v3583 = vpow.pop %v3582
        %v3584 = vmul.f32 %v3581, 1.442695
        %v3585 = vpow.pop %v3584
        %v3586 = vsel %vm762, %v3583, 0.0
        %3587 = vadd.xlane.f32.xlu0 %v3586
        %v3588 = vpop.xlane.xlu0 %3587
        %v3589 = vsel %vm762, %v3585, 0.0
        %3590 = vadd.xlane.f32.xlu0 %v3589
        %v3591 = vpop.xlane.xlu0 %3590
        %3592 = vrot.lane.b32.xlu0 %v2422, 80
        %v3593 = vpop.permute.xlu0 %3592
        %v3596 = vsel %vm762, %v3583, 0
        %3598 = vmatprep.subr.mxu0 0.0
        %3599 = vmatpush1.msra.mxu0 0.0
        %3600 = vmatprep.subr.mxu0 0.0
        %3601 = vmatpush1.msra.mxu0 0.0
        %3602 = vmatprep.subr.mxu0 0.0
        %3603 = vmatpush1.msra.mxu0 0.0
        %3604 = vmatprep.subr.mxu0 0.0
        %3605 = vmatpush1.msra.mxu0 0.0
        %3606 = vmatprep.subr.mxu0 0.0
        %3607 = vmatpush1.msra.mxu0 0.0
        %3608 = vmatprep.subr.mxu0 0.0
        %3609 = vmatpush1.msra.mxu0 0.0
        %3610 = vmatprep.subr.mxu0 0.0
        %3611 = vmatpush1.msra.mxu0 0.0
        %3612 = vmatprep.subr.mxu0 0.0
        %3613 = vmatpush1.msra.mxu0 0.0
        %3614 = vmatprep.subr.mxu0 0.0
        %3615 = vmatpush1.msra.mxu0 0.0
        %3616 = vmatprep.subr.mxu0 0.0
        %3617 = vmatpush1.msra.mxu0 0.0
        %3618 = vmatprep.subr.mxu0 0.0
        %3619 = vmatpush1.msra.mxu0 0.0
        %3620 = vmatprep.subr.mxu0 0.0
        %3621 = vmatpush1.msra.mxu0 0.0
        %3622 = vmatprep.subr.mxu0 0.0
        %3623 = vmatpush1.msra.mxu0 0.0
        %3624 = vmatprep.subr.mxu0 0.0
        %3625 = vmatpush1.msra.mxu0 0.0
        %3626 = vmatprep.subr.mxu0 0.0
        %3627 = vmatpush1.msra.mxu0 0.0
        %3628 = vmatprep.subr.mxu0 0.0
        %3629 = vmatpush1.msra.mxu0 %v3593
        %3630 = vmatprep.subr.mxu0 0.0
        %3631 = vmatpush2.msra.mxu0 0.0
        %3632 = vmatprep.subr.mxu0 0.0
        %3633 = vmatpush2.msra.mxu0 0.0
        %3634 = vmatprep.subr.mxu0 0.0
        %3635 = vmatpush2.msra.mxu0 0.0
        %3636 = vmatprep.subr.mxu0 0.0
        %3637 = vmatpush2.msra.mxu0 0.0
        %3638 = vmatprep.subr.mxu0 0.0
        %3639 = vmatpush2.msra.mxu0 0.0
        %3640 = vmatprep.subr.mxu0 0.0
        %3641 = vmatpush2.msra.mxu0 0.0
        %3642 = vmatprep.subr.mxu0 0.0
        %3643 = vmatpush2.msra.mxu0 0.0
        %3644 = vmatprep.subr.mxu0 0.0
        %3645 = vmatpush2.msra.mxu0 0.0
        %3646 = vmatprep.subr.mxu0 0.0
        %3647 = vmatpush2.msra.mxu0 0.0
        %3648 = vmatprep.subr.mxu0 0.0
        %3649 = vmatpush2.msra.mxu0 0.0
        %3650 = vmatprep.subr.mxu0 0.0
        %3651 = vmatpush2.msra.mxu0 0.0
        %3652 = vmatprep.subr.mxu0 0.0
        %3653 = vmatpush2.msra.mxu0 0.0
        %3654 = vmatprep.subr.mxu0 0.0
        %3655 = vmatpush2.msra.mxu0 0.0
        %3656 = vmatprep.subr.mxu0 0.0
        %3657 = vmatpush2.msra.mxu0 0.0
        %3658 = vmatprep.subr.mxu0 0.0
        %3659 = vmatpush2.msra.mxu0 0.0
        %3660 = vmatprep.subr.mxu0 0.0
        %3661 = vmatpush2.msra.mxu0 0.0
        %3662 = vmatprep.mubr.f32.mxu0 0.0
        %3663 = vmatmul.mubr.f32.gmra.mxu0 %v3596
        %v3664 = vpop.f32.mrf.mxu0
        %v3665 = vadd.f32 0.0, %v3664
        %v3666 = vpop.f32.mrf.mxu0
        %3667 = vdwg.mxu0
        %3668 = vrot.lane.b32.xlu0 %v2428, 80
        %v3669 = vpop.permute.xlu0 %3668
        %v3672 = vsel %vm762, %v3585, 0
        %3674 = vmatprep.subr.mxu0 0.0
        %3675 = vmatpush1.msra.mxu0 0.0
        %3676 = vmatprep.subr.mxu0 0.0
        %3677 = vmatpush1.msra.mxu0 0.0
        %3678 = vmatprep.subr.mxu0 0.0
        %3679 = vmatpush1.msra.mxu0 0.0
        %3680 = vmatprep.subr.mxu0 0.0
        %3681 = vmatpush1.msra.mxu0 0.0
        %3682 = vmatprep.subr.mxu0 0.0
        %3683 = vmatpush1.msra.mxu0 0.0
        %3684 = vmatprep.subr.mxu0 0.0
        %3685 = vmatpush1.msra.mxu0 0.0
        %3686 = vmatprep.subr.mxu0 0.0
        %3687 = vmatpush1.msra.mxu0 0.0
        %3688 = vmatprep.subr.mxu0 0.0
        %3689 = vmatpush1.msra.mxu0 0.0
        %3690 = vmatprep.subr.mxu0 0.0
        %3691 = vmatpush1.msra.mxu0 0.0
        %3692 = vmatprep.subr.mxu0 0.0
        %3693 = vmatpush1.msra.mxu0 0.0
        %3694 = vmatprep.subr.mxu0 0.0
        %3695 = vmatpush1.msra.mxu0 0.0
        %3696 = vmatprep.subr.mxu0 0.0
        %3697 = vmatpush1.msra.mxu0 0.0
        %3698 = vmatprep.subr.mxu0 0.0
        %3699 = vmatpush1.msra.mxu0 0.0
        %3700 = vmatprep.subr.mxu0 0.0
        %3701 = vmatpush1.msra.mxu0 0.0
        %3702 = vmatprep.subr.mxu0 0.0
        %3703 = vmatpush1.msra.mxu0 0.0
        %3704 = vmatprep.subr.mxu0 0.0
        %3705 = vmatpush1.msra.mxu0 %v3669
        %3706 = vmatprep.subr.mxu0 0.0
        %3707 = vmatpush2.msra.mxu0 0.0
        %3708 = vmatprep.subr.mxu0 0.0
        %3709 = vmatpush2.msra.mxu0 0.0
        %3710 = vmatprep.subr.mxu0 0.0
        %3711 = vmatpush2.msra.mxu0 0.0
        %3712 = vmatprep.subr.mxu0 0.0
        %3713 = vmatpush2.msra.mxu0 0.0
        %3714 = vmatprep.subr.mxu0 0.0
        %3715 = vmatpush2.msra.mxu0 0.0
        %3716 = vmatprep.subr.mxu0 0.0
        %3717 = vmatpush2.msra.mxu0 0.0
        %3718 = vmatprep.subr.mxu0 0.0
        %3719 = vmatpush2.msra.mxu0 0.0
        %3720 = vmatprep.subr.mxu0 0.0
        %3721 = vmatpush2.msra.mxu0 0.0
        %3722 = vmatprep.subr.mxu0 0.0
        %3723 = vmatpush2.msra.mxu0 0.0
        %3724 = vmatprep.subr.mxu0 0.0
        %3725 = vmatpush2.msra.mxu0 0.0
        %3726 = vmatprep.subr.mxu0 0.0
        %3727 = vmatpush2.msra.mxu0 0.0
        %3728 = vmatprep.subr.mxu0 0.0
        %3729 = vmatpush2.msra.mxu0 0.0
        %3730 = vmatprep.subr.mxu0 0.0
        %3731 = vmatpush2.msra.mxu0 0.0
        %3732 = vmatprep.subr.mxu0 0.0
        %3733 = vmatpush2.msra.mxu0 0.0
        %3734 = vmatprep.subr.mxu0 0.0
        %3735 = vmatpush2.msra.mxu0 0.0
        %3736 = vmatprep.subr.mxu0 0.0
        %3737 = vmatpush2.msra.mxu0 0.0
        %3738 = vmatprep.mubr.f32.mxu0 0.0
        %3739 = vmatmul.mubr.f32.gmra.mxu0 %v3672
        %v3740 = vpop.f32.mrf.mxu0
        %v3741 = vadd.f32 0.0, %v3740
        %v3742 = vpop.f32.mrf.mxu0
        %3743 = vdwg.mxu0
        %v3744 = vrcp.pop %v3588
        %v3745 = vrcp.pop %v3591
        %v3746 = vmul.f32 %v3665, %v3744
        %v3747 = vmul.f32 %v3741, %v3745
        %3750 = vrot.lane.b32.xlu0 %v3086, 16
        %v3751 = vpop.permute.xlu0 %3750
        %3752 = vrot.lane.b32.xlu0 %v3087, 16
        %v3753 = vpop.permute.xlu0 %3752
        %3758 = vrot.lane.b32.xlu0 %v3416, 32
        %v3759 = vpop.permute.xlu0 %3758
        %3760 = vrot.lane.b32.xlu0 %v3417, 32
        %v3761 = vpop.permute.xlu0 %3760
        %3766 = vrot.lane.b32.xlu0 %v3746, 48
        %v3767 = vpop.permute.xlu0 %3766
        %3768 = vrot.lane.b32.xlu0 %v3747, 48
        %v3769 = vpop.permute.xlu0 %3768
        %v3772 = vsel %vm608, %v2754, %v3751
        %v3773 = vsel %vm608, %v2755, %v3753
        %v3774 = vsel %vm1949, %v3772, %v3759
        %v3775 = vsel %vm1949, %v3773, %v3761
        %v3776 = vsel %vm1952, %v3774, %v3767
        %v3777 = vsel %vm1952, %v3775, %v3769
        %s3778 = scalar_lea.vmem %s6, 64
        %v3779 = vld [vmem:[%s3778] sm:$0xff]
        %v3780 = vld [vmem:[%s3778 + $0x8] sm:$0xff]
        %v3781 = vld [vmem:[%s3778 + $0x10] sm:$0xff]
        %v3782 = vld [vmem:[%s3778 + $0x18] sm:$0xff]
        %v3783 = vld [vmem:[%s3778 + $0x20] sm:$0xff]
        %v3784 = vld [vmem:[%s3778 + $0x28] sm:$0xff]
        %v3785 = vld [vmem:[%s3778 + $0x30] sm:$0xff]
        %v3786 = vld [vmem:[%s3778 + $0x38] sm:$0xff]
        %v3787 = vlaneseq
        %v3788 = vshrl.u32 %v3787, 7
        %v3789 = vsub.s32 1, %v3788
        %v3790 = vrot.slane %v2320, %v3789
        %v3792 = vsel %vm513, %v3776, 0
        %v3795 = vsel %vm513, %v3777, 0
        %3797 = vmatprep.subr.mxu0 0.0
        %3798 = vmatpush1.msra.mxu0 0.0
        %3799 = vmatprep.subr.mxu0 0.0
        %3800 = vmatpush1.msra.mxu0 0.0
        %3801 = vmatprep.subr.mxu0 0.0
        %3802 = vmatpush1.msra.mxu0 0.0
        %3803 = vmatprep.subr.mxu0 0.0
        %3804 = vmatpush1.msra.mxu0 0.0
        %3805 = vmatprep.subr.mxu0 0.0
        %3806 = vmatpush1.msra.mxu0 0.0
        %3807 = vmatprep.subr.mxu0 0.0
        %3808 = vmatpush1.msra.mxu0 0.0
        %3809 = vmatprep.subr.mxu0 0.0
        %3810 = vmatpush1.msra.mxu0 0.0
        %3811 = vmatprep.subr.mxu0 0.0
        %3812 = vmatpush1.msra.mxu0 0.0
        %3813 = vmatprep.subr.mxu0 0.0
        %3814 = vmatpush1.msra.mxu0 %v3786
        %3815 = vmatprep.subr.mxu0 0.0
        %3816 = vmatpush1.msra.mxu0 %v3785
        %3817 = vmatprep.subr.mxu0 0.0
        %3818 = vmatpush1.msra.mxu0 %v3784
        %3819 = vmatprep.subr.mxu0 0.0
        %3820 = vmatpush1.msra.mxu0 %v3783
        %3821 = vmatprep.subr.mxu0 0.0
        %3822 = vmatpush1.msra.mxu0 %v3782
        %3823 = vmatprep.subr.mxu0 0.0
        %3824 = vmatpush1.msra.mxu0 %v3781
        %3825 = vmatprep.subr.mxu0 0.0
        %3826 = vmatpush1.msra.mxu0 %v3780
        %3827 = vmatprep.subr.mxu0 0.0
        %3828 = vmatpush1.msra.mxu0 %v3779
        %3829 = vmatprep.subr.mxu0 0.0
        %3830 = vmatpush2.msra.mxu0 0.0
        %3831 = vmatprep.subr.mxu0 0.0
        %3832 = vmatpush2.msra.mxu0 0.0
        %3833 = vmatprep.subr.mxu0 0.0
        %3834 = vmatpush2.msra.mxu0 0.0
        %3835 = vmatprep.subr.mxu0 0.0
        %3836 = vmatpush2.msra.mxu0 0.0
        %3837 = vmatprep.subr.mxu0 0.0
        %3838 = vmatpush2.msra.mxu0 0.0
        %3839 = vmatprep.subr.mxu0 0.0
        %3840 = vmatpush2.msra.mxu0 0.0
        %3841 = vmatprep.subr.mxu0 0.0
        %3842 = vmatpush2.msra.mxu0 0.0
        %3843 = vmatprep.subr.mxu0 0.0
        %3844 = vmatpush2.msra.mxu0 0.0
        %3845 = vmatprep.subr.mxu0 0.0
        %3846 = vmatpush2.msra.mxu0 0.0
        %3847 = vmatprep.subr.mxu0 0.0
        %3848 = vmatpush2.msra.mxu0 0.0
        %3849 = vmatprep.subr.mxu0 0.0
        %3850 = vmatpush2.msra.mxu0 0.0
        %3851 = vmatprep.subr.mxu0 0.0
        %3852 = vmatpush2.msra.mxu0 0.0
        %3853 = vmatprep.subr.mxu0 0.0
        %3854 = vmatpush2.msra.mxu0 0.0
        %3855 = vmatprep.subr.mxu0 0.0
        %3856 = vmatpush2.msra.mxu0 0.0
        %3857 = vmatprep.subr.mxu0 0.0
        %3858 = vmatpush2.msra.mxu0 0.0
        %3859 = vmatprep.subr.mxu0 0.0
        %3860 = vmatpush2.msra.mxu0 0.0
        %3861 = vmatprep.mubr.f32.mxu0 0.0
        %3862 = vmatmul.mubr.f32.gmra.mxu0 %v3792
        %v3863 = vpop.f32.mrf.mxu0
        %v3864 = vadd.f32 %v3790, %v3863
        %v3865 = vpop.f32.mrf.mxu0
        %3866 = vmatprep.mubr.f32.mxu0 0.0
        %3867 = vmatmul.mubr.f32.gmra.mxu0 %v3795
        %v3868 = vpop.f32.mrf.mxu0
        %v3869 = vadd.f32 %v3790, %v3868
        %v3870 = vpop.f32.mrf.mxu0
        %3871 = vdwg.mxu0
        %v3872 = vadd.f32 %v2317, %v3864
        %v3873 = vadd.f32 %v2318, %v3869
        %v3874 = vsel %vm513, %v3872, 0.0
        %3875 = vadd.xlane.f32.xlu0 %v3874
        %v3876 = vpop.xlane.xlu0 %3875
        %v3877 = vsel %vm513, %v3873, 0.0
        %3878 = vadd.xlane.f32.xlu0 %v3877
        %v3879 = vpop.xlane.xlu0 %3878
        %v3880 = vmul.f32 %v3876, %v2056
        %v3881 = vmul.f32 %v3879, %v2056
        %v3882 = vsub.f32 %v3872, %v3880
        %v3883 = vsub.f32 %v3873, %v3881
        %v3884 = vmul.f32 %v3882, %v3882
        %v3885 = vmul.f32 %v3883, %v3883
        %v3886 = vsel %vm513, %v3884, 0.0
        %3887 = vadd.xlane.f32.xlu0 %v3886
        %v3888 = vpop.xlane.xlu0 %3887
        %v3889 = vsel %vm513, %v3885, 0.0
        %3890 = vadd.xlane.f32.xlu0 %v3889
        %v3891 = vpop.xlane.xlu0 %3890
        %v3892 = vmul.f32 %v3888, %v2056
        %v3893 = vmul.f32 %v3891, %v2056
        %v3894 = vadd.f32 %v3892, 1e-05
        %v3895 = vadd.f32 %v3893, 1e-05
        %v3896 = vrsqrt.pop %v3894
        %v3897 = vrsqrt.pop %v3895
        %v3898 = vmul.f32 %v3882, %v3896
        %v3899 = vmul.f32 %v3883, %v3897
        %v3900 = vlaneseq
        %v3901 = vshrl.u32 %v3900, 7
        %v3902 = vsub.s32 4, %v3901
        %v3903 = vrot.slane %v2320, %v3902
        %v3904 = vmul.f32 %v3898, %v3903
        %v3905 = vmul.f32 %v3899, %v3903
        %v3906 = vlaneseq
        %v3907 = vshrl.u32 %v3906, 7
        %v3908 = vsub.s32 5, %v3907
        %v3909 = vrot.slane %v2320, %v3908
        %v3910 = vadd.f32 %v3904, %v3909
        %v3911 = vadd.f32 %v3905, %v3909
        %s3912 = scalar_lea.vmem %s7, 64
        %v3913 = vld [vmem:[%s3912] sm:$0xff]
        %v3914 = vld [vmem:[%s3912 + $0x8] sm:$0xff]
        %v3915 = vld [vmem:[%s3912 + $0x10] sm:$0xff]
        %v3916 = vld [vmem:[%s3912 + $0x18] sm:$0xff]
        %v3917 = vld [vmem:[%s3912 + $0x20] sm:$0xff]
        %v3918 = vld [vmem:[%s3912 + $0x28] sm:$0xff]
        %v3919 = vld [vmem:[%s3912 + $0x30] sm:$0xff]
        %v3920 = vld [vmem:[%s3912 + $0x38] sm:$0xff]
        %v3921 = vlaneseq
        %v3922 = vshrl.u32 %v3921, 7
        %v3923 = vsub.s32 2, %v3922
        %v3924 = vrot.slane %v2320, %v3923
        %v3926 = vsel %vm513, %v3910, 0
        %v3929 = vsel %vm513, %v3911, 0
        %3931 = vmatprep.subr.mxu0 0.0
        %3932 = vmatpush1.msra.mxu0 0.0
        %3933 = vmatprep.subr.mxu0 0.0
        %3934 = vmatpush1.msra.mxu0 0.0
        %3935 = vmatprep.subr.mxu0 0.0
        %3936 = vmatpush1.msra.mxu0 0.0
        %3937 = vmatprep.subr.mxu0 0.0
        %3938 = vmatpush1.msra.mxu0 0.0
        %3939 = vmatprep.subr.mxu0 0.0
        %3940 = vmatpush1.msra.mxu0 0.0
        %3941 = vmatprep.subr.mxu0 0.0
        %3942 = vmatpush1.msra.mxu0 0.0
        %3943 = vmatprep.subr.mxu0 0.0
        %3944 = vmatpush1.msra.mxu0 0.0
        %3945 = vmatprep.subr.mxu0 0.0
        %3946 = vmatpush1.msra.mxu0 0.0
        %3947 = vmatprep.subr.mxu0 0.0
        %3948 = vmatpush1.msra.mxu0 %v3920
        %3949 = vmatprep.subr.mxu0 0.0
        %3950 = vmatpush1.msra.mxu0 %v3919
        %3951 = vmatprep.subr.mxu0 0.0
        %3952 = vmatpush1.msra.mxu0 %v3918
        %3953 = vmatprep.subr.mxu0 0.0
        %3954 = vmatpush1.msra.mxu0 %v3917
        %3955 = vmatprep.subr.mxu0 0.0
        %3956 = vmatpush1.msra.mxu0 %v3916
        %3957 = vmatprep.subr.mxu0 0.0
        %3958 = vmatpush1.msra.mxu0 %v3915
        %3959 = vmatprep.subr.mxu0 0.0
        %3960 = vmatpush1.msra.mxu0 %v3914
        %3961 = vmatprep.subr.mxu0 0.0
        %3962 = vmatpush1.msra.mxu0 %v3913
        %3963 = vmatprep.subr.mxu0 0.0
        %3964 = vmatpush2.msra.mxu0 0.0
        %3965 = vmatprep.subr.mxu0 0.0
        %3966 = vmatpush2.msra.mxu0 0.0
        %3967 = vmatprep.subr.mxu0 0.0
        %3968 = vmatpush2.msra.mxu0 0.0
        %3969 = vmatprep.subr.mxu0 0.0
        %3970 = vmatpush2.msra.mxu0 0.0
        %3971 = vmatprep.subr.mxu0 0.0
        %3972 = vmatpush2.msra.mxu0 0.0
        %3973 = vmatprep.subr.mxu0 0.0
        %3974 = vmatpush2.msra.mxu0 0.0
        %3975 = vmatprep.subr.mxu0 0.0
        %3976 = vmatpush2.msra.mxu0 0.0
        %3977 = vmatprep.subr.mxu0 0.0
        %3978 = vmatpush2.msra.mxu0 0.0
        %3979 = vmatprep.subr.mxu0 0.0
        %3980 = vmatpush2.msra.mxu0 0.0
        %3981 = vmatprep.subr.mxu0 0.0
        %3982 = vmatpush2.msra.mxu0 0.0
        %3983 = vmatprep.subr.mxu0 0.0
        %3984 = vmatpush2.msra.mxu0 0.0
        %3985 = vmatprep.subr.mxu0 0.0
        %3986 = vmatpush2.msra.mxu0 0.0
        %3987 = vmatprep.subr.mxu0 0.0
        %3988 = vmatpush2.msra.mxu0 0.0
        %3989 = vmatprep.subr.mxu0 0.0
        %3990 = vmatpush2.msra.mxu0 0.0
        %3991 = vmatprep.subr.mxu0 0.0
        %3992 = vmatpush2.msra.mxu0 0.0
        %3993 = vmatprep.subr.mxu0 0.0
        %3994 = vmatpush2.msra.mxu0 0.0
        %3995 = vmatprep.mubr.f32.mxu0 0.0
        %3996 = vmatmul.mubr.f32.gmra.mxu0 %v3926
        %v3997 = vpop.f32.mrf.mxu0
        %v3998 = vadd.f32 %v3924, %v3997
        %v3999 = vpop.f32.mrf.mxu0
        %4000 = vmatprep.mubr.f32.mxu0 0.0
        %4001 = vmatmul.mubr.f32.gmra.mxu0 %v3929
        %v4002 = vpop.f32.mrf.mxu0
        %v4003 = vadd.f32 %v3924, %v4002
        %v4004 = vpop.f32.mrf.mxu0
        %4005 = vdwg.mxu0
        %v4006 = vmax.f32 %v3998, 0.0
        %v4007 = vmax.f32 %v4003, 0.0
        %s4008 = scalar_lea.vmem %s8, 128
        %v4009 = vld [vmem:[%s4008] sm:$0xff]
        %v4010 = vld [vmem:[%s4008 + $0x8] sm:$0xff]
        %v4011 = vld [vmem:[%s4008 + $0x10] sm:$0xff]
        %v4012 = vld [vmem:[%s4008 + $0x18] sm:$0xff]
        %v4013 = vld [vmem:[%s4008 + $0x20] sm:$0xff]
        %v4014 = vld [vmem:[%s4008 + $0x28] sm:$0xff]
        %v4015 = vld [vmem:[%s4008 + $0x30] sm:$0xff]
        %v4016 = vld [vmem:[%s4008 + $0x38] sm:$0xff]
        %v4017 = vld [vmem:[%s4008 + $0x40] sm:$0xff]
        %v4018 = vld [vmem:[%s4008 + $0x48] sm:$0xff]
        %v4019 = vld [vmem:[%s4008 + $0x50] sm:$0xff]
        %v4020 = vld [vmem:[%s4008 + $0x58] sm:$0xff]
        %v4021 = vld [vmem:[%s4008 + $0x60] sm:$0xff]
        %v4022 = vld [vmem:[%s4008 + $0x68] sm:$0xff]
        %v4023 = vld [vmem:[%s4008 + $0x70] sm:$0xff]
        %v4024 = vld [vmem:[%s4008 + $0x78] sm:$0xff]
        %v4025 = vlaneseq
        %v4026 = vshrl.u32 %v4025, 7
        %v4027 = vsub.s32 3, %v4026
        %v4028 = vrot.slane %v2320, %v4027
        %4029 = vmatprep.subr.mxu0 0.0
        %4030 = vmatpush1.msra.mxu0 %v4024
        %4031 = vmatprep.subr.mxu0 0.0
        %4032 = vmatpush1.msra.mxu0 %v4023
        %4033 = vmatprep.subr.mxu0 0.0
        %4034 = vmatpush1.msra.mxu0 %v4022
        %4035 = vmatprep.subr.mxu0 0.0
        %4036 = vmatpush1.msra.mxu0 %v4021
        %4037 = vmatprep.subr.mxu0 0.0
        %4038 = vmatpush1.msra.mxu0 %v4020
        %4039 = vmatprep.subr.mxu0 0.0
        %4040 = vmatpush1.msra.mxu0 %v4019
        %4041 = vmatprep.subr.mxu0 0.0
        %4042 = vmatpush1.msra.mxu0 %v4018
        %4043 = vmatprep.subr.mxu0 0.0
        %4044 = vmatpush1.msra.mxu0 %v4017
        %4045 = vmatprep.subr.mxu0 0.0
        %4046 = vmatpush1.msra.mxu0 %v4016
        %4047 = vmatprep.subr.mxu0 0.0
        %4048 = vmatpush1.msra.mxu0 %v4015
        %4049 = vmatprep.subr.mxu0 0.0
        %4050 = vmatpush1.msra.mxu0 %v4014
        %4051 = vmatprep.subr.mxu0 0.0
        %4052 = vmatpush1.msra.mxu0 %v4013
        %4053 = vmatprep.subr.mxu0 0.0
        %4054 = vmatpush1.msra.mxu0 %v4012
        %4055 = vmatprep.subr.mxu0 0.0
        %4056 = vmatpush1.msra.mxu0 %v4011
        %4057 = vmatprep.subr.mxu0 0.0
        %4058 = vmatpush1.msra.mxu0 %v4010
        %4059 = vmatprep.subr.mxu0 0.0
        %4060 = vmatpush1.msra.mxu0 %v4009
        %4061 = vmatprep.subr.mxu0 0.0
        %4062 = vmatpush2.msra.mxu0 0.0
        %4063 = vmatprep.subr.mxu0 0.0
        %4064 = vmatpush2.msra.mxu0 0.0
        %4065 = vmatprep.subr.mxu0 0.0
        %4066 = vmatpush2.msra.mxu0 0.0
        %4067 = vmatprep.subr.mxu0 0.0
        %4068 = vmatpush2.msra.mxu0 0.0
        %4069 = vmatprep.subr.mxu0 0.0
        %4070 = vmatpush2.msra.mxu0 0.0
        %4071 = vmatprep.subr.mxu0 0.0
        %4072 = vmatpush2.msra.mxu0 0.0
        %4073 = vmatprep.subr.mxu0 0.0
        %4074 = vmatpush2.msra.mxu0 0.0
        %4075 = vmatprep.subr.mxu0 0.0
        %4076 = vmatpush2.msra.mxu0 0.0
        %4077 = vmatprep.subr.mxu0 0.0
        %4078 = vmatpush2.msra.mxu0 0.0
        %4079 = vmatprep.subr.mxu0 0.0
        %4080 = vmatpush2.msra.mxu0 0.0
        %4081 = vmatprep.subr.mxu0 0.0
        %4082 = vmatpush2.msra.mxu0 0.0
        %4083 = vmatprep.subr.mxu0 0.0
        %4084 = vmatpush2.msra.mxu0 0.0
        %4085 = vmatprep.subr.mxu0 0.0
        %4086 = vmatpush2.msra.mxu0 0.0
        %4087 = vmatprep.subr.mxu0 0.0
        %4088 = vmatpush2.msra.mxu0 0.0
        %4089 = vmatprep.subr.mxu0 0.0
        %4090 = vmatpush2.msra.mxu0 0.0
        %4091 = vmatprep.subr.mxu0 0.0
        %4092 = vmatpush2.msra.mxu0 0.0
        %4093 = vmatprep.mubr.f32.mxu0 0.0
        %4094 = vmatmul.mubr.f32.gmra.mxu0 %v4006
        %v4095 = vpop.f32.mrf.mxu0
        %v4096 = vadd.f32 %v4028, %v4095
        %v4097 = vpop.f32.mrf.mxu0
        %4098 = vmatprep.mubr.f32.mxu0 0.0
        %4099 = vmatmul.mubr.f32.gmra.mxu0 %v4007
        %v4100 = vpop.f32.mrf.mxu0
        %v4101 = vadd.f32 %v4028, %v4100
        %v4102 = vpop.f32.mrf.mxu0
        %4103 = vdwg.mxu0
        %v4104 = vadd.f32 %v3910, %v4096
        %v4105 = vadd.f32 %v3911, %v4101
        %v4106 = vsel %vm513, %v4104, 0.0
        %4107 = vadd.xlane.f32.xlu0 %v4106
        %v4108 = vpop.xlane.xlu0 %4107
        %v4109 = vsel %vm513, %v4105, 0.0
        %4110 = vadd.xlane.f32.xlu0 %v4109
        %v4111 = vpop.xlane.xlu0 %4110
        %v4112 = vmul.f32 %v4108, %v2056
        %v4113 = vmul.f32 %v4111, %v2056
        %v4114 = vsub.f32 %v4104, %v4112
        %v4115 = vsub.f32 %v4105, %v4113
        %v4116 = vmul.f32 %v4114, %v4114
        %v4117 = vmul.f32 %v4115, %v4115
        %v4118 = vsel %vm513, %v4116, 0.0
        %4119 = vadd.xlane.f32.xlu0 %v4118
        %v4120 = vpop.xlane.xlu0 %4119
        %v4121 = vsel %vm513, %v4117, 0.0
        %4122 = vadd.xlane.f32.xlu0 %v4121
        %v4123 = vpop.xlane.xlu0 %4122
        %v4124 = vmul.f32 %v4120, %v2056
        %v4125 = vmul.f32 %v4123, %v2056
        %v4126 = vadd.f32 %v4124, 1e-05
        %v4127 = vadd.f32 %v4125, 1e-05
        %v4128 = vrsqrt.pop %v4126
        %v4129 = vrsqrt.pop %v4127
        %v4130 = vmul.f32 %v4114, %v4128
        %v4131 = vmul.f32 %v4115, %v4129
        %v4132 = vlaneseq
        %v4133 = vshrl.u32 %v4132, 7
        %v4134 = vsub.s32 6, %v4133
        %v4135 = vrot.slane %v2320, %v4134
        %v4136 = vmul.f32 %v4130, %v4135
        %v4137 = vmul.f32 %v4131, %v4135
        %v4138 = vlaneseq
        %v4139 = vshrl.u32 %v4138, 7
        %v4140 = vsub.s32 7, %v4139
        %v4141 = vrot.slane %v2320, %v4140
        %v4142 = vadd.f32 %v4136, %v4141
        %v4143 = vadd.f32 %v4137, %v4141
        %v4144 = vld [vmem:[%s388] sm:$0xff]
        %4146 = vset.pattern.permute.xlu0 0
        %4147 = vperm.xlu0 %4146, %v4144
        %v4148 = vpop.permute.xlu0 %4147
        %v4150 = vmul.f32 %v4142, %v4148
        %v4151 = vmul.f32 %v4143, %v4148
        %v4152 = vmul.f32 %v4150, %v4150
        %v4153 = vsel %vm513, %v4152, 0.0
        %4154 = vadd.xlane.f32.xlu0 %v4153
        %v4155 = vpop.xlane.xlu0 %4154
        %v4156 = vrsqrt.pop %v4155
        %v4157 = vmul.f32 %v4155, %v4156
        %vm4158 = vcmp.eq.f32.partialorder %v4155, inf
        %v4159 = vsel %vm4158, %v4155, %v4157
        %vm4160 = vcmp.eq.f32.partialorder %v4155, 0.0
        %v4161 = vand.u32 %v4155, 2147483648
        %v4162 = vsel %vm4160, %v4161, %v4159
        %v4163 = vmul.f32 %v4151, %v4151
        %v4164 = vsel %vm513, %v4163, 0.0
        %4165 = vadd.xlane.f32.xlu0 %v4164
        %v4166 = vpop.xlane.xlu0 %4165
        %v4167 = vrsqrt.pop %v4166
        %v4168 = vmul.f32 %v4166, %v4167
        %vm4169 = vcmp.eq.f32.partialorder %v4166, inf
        %v4170 = vsel %vm4169, %v4166, %v4168
        %vm4171 = vcmp.eq.f32.partialorder %v4166, 0.0
        %v4172 = vand.u32 %v4166, 2147483648
        %v4173 = vsel %vm4171, %v4172, %v4170
        %v4175 = vsel %vm513, %v4150, 0
        %v4178 = vsel %vm513, %v4151, 0
        %4180 = vmatprep.subr.mxu0 0.0
        %4181 = vmatpush1.xpose.msra.mxu0 0.0
        %4182 = vmatprep.subr.mxu0 0.0
        %4183 = vmatpush1.xpose.msra.mxu0 0.0
        %4184 = vmatprep.subr.mxu0 0.0
        %4185 = vmatpush1.xpose.msra.mxu0 0.0
        %4186 = vmatprep.subr.mxu0 0.0
        %4187 = vmatpush1.xpose.msra.mxu0 0.0
        %4188 = vmatprep.subr.mxu0 0.0
        %4189 = vmatpush1.xpose.msra.mxu0 0.0
        %4190 = vmatprep.subr.mxu0 0.0
        %4191 = vmatpush1.xpose.msra.mxu0 0.0
        %4192 = vmatprep.subr.mxu0 0.0
        %4193 = vmatpush1.xpose.msra.mxu0 0.0
        %4194 = vmatprep.subr.mxu0 0.0
        %4195 = vmatpush1.xpose.msra.mxu0 0.0
        %4196 = vmatprep.subr.mxu0 0.0
        %4197 = vmatpush1.xpose.msra.mxu0 0.0
        %4198 = vmatprep.subr.mxu0 0.0
        %4199 = vmatpush1.xpose.msra.mxu0 0.0
        %4200 = vmatprep.subr.mxu0 0.0
        %4201 = vmatpush1.xpose.msra.mxu0 0.0
        %4202 = vmatprep.subr.mxu0 0.0
        %4203 = vmatpush1.xpose.msra.mxu0 0.0
        %4204 = vmatprep.subr.mxu0 0.0
        %4205 = vmatpush1.xpose.msra.mxu0 0.0
        %4206 = vmatprep.subr.mxu0 0.0
        %4207 = vmatpush1.xpose.msra.mxu0 0.0
        %4208 = vmatprep.subr.mxu0 0.0
        %4209 = vmatpush1.xpose.msra.mxu0 0.0
        %4210 = vmatprep.subr.mxu0 0.0
        %4211 = vmatpush1.xpose.msra.mxu0 %v4178
        %4212 = vmatprep.subr.mxu0 0.0
        %4213 = vmatpush2.xpose.msra.mxu0 0.0
        %4214 = vmatprep.subr.mxu0 0.0
        %4215 = vmatpush2.xpose.msra.mxu0 0.0
        %4216 = vmatprep.subr.mxu0 0.0
        %4217 = vmatpush2.xpose.msra.mxu0 0.0
        %4218 = vmatprep.subr.mxu0 0.0
        %4219 = vmatpush2.xpose.msra.mxu0 0.0
        %4220 = vmatprep.subr.mxu0 0.0
        %4221 = vmatpush2.xpose.msra.mxu0 0.0
        %4222 = vmatprep.subr.mxu0 0.0
        %4223 = vmatpush2.xpose.msra.mxu0 0.0
        %4224 = vmatprep.subr.mxu0 0.0
        %4225 = vmatpush2.xpose.msra.mxu0 0.0
        %4226 = vmatprep.subr.mxu0 0.0
        %4227 = vmatpush2.xpose.msra.mxu0 0.0
        %4228 = vmatprep.subr.mxu0 0.0
        %4229 = vmatpush2.xpose.msra.mxu0 0.0
        %4230 = vmatprep.subr.mxu0 0.0
        %4231 = vmatpush2.xpose.msra.mxu0 0.0
        %4232 = vmatprep.subr.mxu0 0.0
        %4233 = vmatpush2.xpose.msra.mxu0 0.0
        %4234 = vmatprep.subr.mxu0 0.0
        %4235 = vmatpush2.xpose.msra.mxu0 0.0
        %4236 = vmatprep.subr.mxu0 0.0
        %4237 = vmatpush2.xpose.msra.mxu0 0.0
        %4238 = vmatprep.subr.mxu0 0.0
        %4239 = vmatpush2.xpose.msra.mxu0 0.0
        %4240 = vmatprep.subr.mxu0 0.0
        %4241 = vmatpush2.xpose.msra.mxu0 0.0
        %4242 = vmatprep.subr.mxu0 0.0
        %4243 = vmatpush2.xpose.msra.mxu0 0.0
        %4244 = vmatprep.mubr.f32.mxu0 0.0
        %4245 = vmatmul.mubr.f32.gmra.mxu0 %v4175
        %v4246 = vpop.f32.mrf.mxu0
        %v4247 = vadd.f32 0.0, %v4246
        %v4248 = vpop.f32.mrf.mxu0
        %4249 = vdwg.mxu0
        %vm4250 = vcmask 7168
        %v4252 = vsel %vm4250, %v4162, 0
        %v4255 = vsel %vm4250, %v4173, 0
        %4257 = vmatprep.subr.mxu0 0.0
        %4258 = vmatpush1.xpose.msra.mxu0 0.0
        %4259 = vmatprep.subr.mxu0 0.0
        %4260 = vmatpush1.xpose.msra.mxu0 0.0
        %4261 = vmatprep.subr.mxu0 0.0
        %4262 = vmatpush1.xpose.msra.mxu0 0.0
        %4263 = vmatprep.subr.mxu0 0.0
        %4264 = vmatpush1.xpose.msra.mxu0 0.0
        %4265 = vmatprep.subr.mxu0 0.0
        %4266 = vmatpush1.xpose.msra.mxu0 0.0
        %4267 = vmatprep.subr.mxu0 0.0
        %4268 = vmatpush1.xpose.msra.mxu0 0.0
        %4269 = vmatprep.subr.mxu0 0.0
        %4270 = vmatpush1.xpose.msra.mxu0 0.0
        %4271 = vmatprep.subr.mxu0 0.0
        %4272 = vmatpush1.xpose.msra.mxu0 0.0
        %4273 = vmatprep.subr.mxu0 0.0
        %4274 = vmatpush1.xpose.msra.mxu0 0.0
        %4275 = vmatprep.subr.mxu0 0.0
        %4276 = vmatpush1.xpose.msra.mxu0 0.0
        %4277 = vmatprep.subr.mxu0 0.0
        %4278 = vmatpush1.xpose.msra.mxu0 0.0
        %4279 = vmatprep.subr.mxu0 0.0
        %4280 = vmatpush1.xpose.msra.mxu0 0.0
        %4281 = vmatprep.subr.mxu0 0.0
        %4282 = vmatpush1.xpose.msra.mxu0 0.0
        %4283 = vmatprep.subr.mxu0 0.0
        %4284 = vmatpush1.xpose.msra.mxu0 0.0
        %4285 = vmatprep.subr.mxu0 0.0
        %4286 = vmatpush1.xpose.msra.mxu0 0.0
        %4287 = vmatprep.subr.mxu0 0.0
        %4288 = vmatpush1.xpose.msra.mxu0 %v4255
        %4289 = vmatprep.subr.mxu0 0.0
        %4290 = vmatpush2.xpose.msra.mxu0 0.0
        %4291 = vmatprep.subr.mxu0 0.0
        %4292 = vmatpush2.xpose.msra.mxu0 0.0
        %4293 = vmatprep.subr.mxu0 0.0
        %4294 = vmatpush2.xpose.msra.mxu0 0.0
        %4295 = vmatprep.subr.mxu0 0.0
        %4296 = vmatpush2.xpose.msra.mxu0 0.0
        %4297 = vmatprep.subr.mxu0 0.0
        %4298 = vmatpush2.xpose.msra.mxu0 0.0
        %4299 = vmatprep.subr.mxu0 0.0
        %4300 = vmatpush2.xpose.msra.mxu0 0.0
        %4301 = vmatprep.subr.mxu0 0.0
        %4302 = vmatpush2.xpose.msra.mxu0 0.0
        %4303 = vmatprep.subr.mxu0 0.0
        %4304 = vmatpush2.xpose.msra.mxu0 0.0
        %4305 = vmatprep.subr.mxu0 0.0
        %4306 = vmatpush2.xpose.msra.mxu0 0.0
        %4307 = vmatprep.subr.mxu0 0.0
        %4308 = vmatpush2.xpose.msra.mxu0 0.0
        %4309 = vmatprep.subr.mxu0 0.0
        %4310 = vmatpush2.xpose.msra.mxu0 0.0
        %4311 = vmatprep.subr.mxu0 0.0
        %4312 = vmatpush2.xpose.msra.mxu0 0.0
        %4313 = vmatprep.subr.mxu0 0.0
        %4314 = vmatpush2.xpose.msra.mxu0 0.0
        %4315 = vmatprep.subr.mxu0 0.0
        %4316 = vmatpush2.xpose.msra.mxu0 0.0
        %4317 = vmatprep.subr.mxu0 0.0
        %4318 = vmatpush2.xpose.msra.mxu0 0.0
        %4319 = vmatprep.subr.mxu0 0.0
        %4320 = vmatpush2.xpose.msra.mxu0 0.0
        %4321 = vmatprep.mubr.f32.mxu0 0.0
        %4322 = vmatmul.mubr.f32.gmra.mxu0 %v4252
        %v4323 = vpop.f32.mrf.mxu0
        %v4324 = vadd.f32 0.0, %v4323
        %v4325 = vpop.f32.mrf.mxu0
        %4326 = vdwg.mxu0
        %v4327 = vmax.f32 %v4324, 1e-06
        %v4328 = vrcp.pop %v4327
        %v4329 = vmul.f32 %v4247, %v4328
        %4330 = vst.msk [vmem:[%s376] sm:$0xff] %vm762, %v4329
        %s4331 = sand.u32 %s257, 1
        %s4332 = scalar_lea.sflag [#allocation3], %s4331
        %s4333 = sand.u32 %s257, 1
        %s4334 = smul.addr %s4333, 8
        %s4335 = scalar_lea.vmem [#allocation2], %s4334
        // Predicated region
        $region61: #{linker_forward.1} parent=59 // pred_check
          %p4336 = pneg %p267
        $region62: #{linker_forward.1} parent=59 // pred_check_branch
          %4338 = sbr.rel (%p4336) target = $region64
        $region63: #{linker_forward.1} parent=59 // pred_region
          %s4340 = ssub.s32 128, 128
          %4341 = vsyncadd %s4332, %s4340
          %s4342 = smul.addr %s24, 128
          %s4343 = scalar_lea.hbm %s10, %s4342
          %s4345 = sshll.u32 %s4335, 4
          %s4346 = int_to_ptr.vmem [resolvable:$true] %s4345
          %4348 = dma.vmem_to_hbm [thread:$0]  %s4346, 128, %s4343, %s4332
        $region64: #{linker_forward.1} parent=59 // pred_fallthru
          _
      $region60: #{linker_forward.1} parent=5 // pred_fallthru
        _
      %p4349 = scmp.le.s32.totalorder 2, %s19
      // Predicated region
      $region65: #{linker_forward.1} parent=5 // pred_check
        %p4350 = pneg %p4349
      $region66: #{linker_forward.1} parent=5 // pred_check_branch
        %4352 = sbr.rel (%p4350) target = $region68
      $region67: #{linker_forward.1} parent=5 // pred_region
        %s4353 = ssub.s32 %s19, 2
        // Predicated region
        $region69: #{linker_forward.1} parent=67 // pred_check
          %p4354 = pneg %p273
        $region70: #{linker_forward.1} parent=67 // pred_check_branch
          %4356 = sbr.rel (%p4354) target = $region72
        $region71: #{linker_forward.1} parent=67 // pred_region
          %s4357 = sand.u32 %s258, 1
          %s4358 = scalar_lea.sflag [#allocation3], %s4357
          %s4359 = sand.u32 %s258, 1
          %s4360 = smul.addr %s4359, 8
          %s4361 = scalar_lea.vmem [#allocation2], %s4360
          %4362 = dma.done %s4358, 128
        $region72: #{linker_forward.1} parent=67 // pred_fallthru
          _
      $region68: #{linker_forward.1} parent=5 // pred_fallthru
        _
    $region6: #{linker_forward.1} parent=1 // loop_footer
      %s23 = sadd.s32 1, %s19
    $region7: #{linker_forward.1} parent=1 // loop_footer_branch
      %18 = sbr.rel target = $region3
    $region8: #{linker_forward.1} parent=1 // loop_exit
      _
    %4363 = vsyncpa [#allocation3], 1
    %s4364 = scalar_lea.sflag [#allocation3], 1
    %4365 = vsyncpa %s4364, 1

</llo_original>
